<compile_context>
chip_gen: v7x
topology: tpu7x:2x2x1
jax: 0.10.0
libtpu: 0.0.40
codegen_flags: <defaults>
</compile_context>

<pallas_src>
import functools

import jax
import jax.numpy as jnp
from jax import lax
from jax.experimental import pallas as pl
from jax.experimental.pallas import tpu as pltpu


# ----------------------------------------------------------------------------
# Fused forward kernel (one grid step = one batch element)
# ----------------------------------------------------------------------------
def _fused_hdr_kernel(inv_ref, x_ref, mask_ref, w1_ref, b1_ref, w2_ref, b2_ref,
                      w3_ref, b3_ref, out_ref,
                      x8_ref, feat1_ref, feat2_ref, col_ref, *, gamma, H, W):
    # inv_ref  : (B, 3) f32 in SMEM             -- 2**(-exposure) per (batch, expo)
    # x_ref    : (1, 9, HW) VMEM                -- 3 exposures x 3 channels, flat spatial
    # mask_ref : (9, HW)                        -- "same"-padding validity per 3x3 tap
    # w1_ref   : (16, 72)                       -- conv1, (tap-major, 6ch padded to 8)
    # b1_ref   : (16, 1)
    # w2_ref   : (16, 432)                      -- conv2, (tap-major, 48 channels)
    # b2_ref   : (16, 1)
    # w3_ref   : (3, 144)                       -- conv3, (tap-major, 16 channels)
    # b3_ref   : (3, 1)
    # out_ref  : (1, 3, HW)                     -- lane-dense output
    # x8_ref   : (8, HW)  scratch               -- [x(3), x**g*inv(3), zeros(2)]
    # feat1_ref: (48, HW) scratch               -- concatenated conv1 features
    # feat2_ref: (16, HW) scratch               -- conv2 features
    # col_ref  : (432, HW) scratch              -- shared im2col buffer
    b = pl.program_id(0)
    HW = H * W
    taps = tuple((dh - 1, dw - 1) for dh in range(3) for dw in range(3))

    def build_col(src_ref, cin):
        # im2col: col[k*cin:(k+1)*cin, p] = src[:, p + dy*W + dx] (0 outside image).
        src = src_ref[...]                                      # (cin, HW)
        for k, (dy, dx) in enumerate(taps):
            off = dy * W + dx
            if off == 0:
                col_ref[k * cin:(k + 1) * cin, :] = src         # center tap: no shift/mask
            else:
                shifted = jnp.roll(src, -off, axis=-1)          # static lane shift
                col_ref[k * cin:(k + 1) * cin, :] = shifted * mask_ref[k:k + 1, :]

    # Zero the two padding rows of the 8-row conv1 input once per grid step
    # (scratch is uninitialized; w1 also has zero columns there, belt+braces).
    x8_ref[6:8, :] = jnp.zeros((2, HW), jnp.float32)

    # ---- conv1 per exposure, LDR2HDR folded in (one K=72 matmul each) -------
    for e in range(3):
        x = x_ref[0, e * 3:(e + 1) * 3, :]                      # (3, HW), lane-dense
        inv = inv_ref[b, e]                                     # scalar 1/2**ev
        x8_ref[0:3, :] = x
        x8_ref[3:6, :] = jnp.power(x, gamma) * inv              # multiply, not divide
        build_col(x8_ref, 8)
        f = jnp.dot(w1_ref[...], col_ref[0:72, :],
                    preferred_element_type=jnp.float32)         # (16, HW)
        feat1_ref[e * 16:(e + 1) * 16, :] = jnp.maximum(f + b1_ref[...], 0.0)

    # ---- conv2 over the 48-channel concat (one K=432 matmul) ----------------
    build_col(feat1_ref, 48)
    f_mid = jnp.dot(w2_ref[...], col_ref[...],
                    preferred_element_type=jnp.float32)         # (16, HW)
    feat2_ref[...] = f_mid + b2_ref[...]                        # no ReLU on conv2

    # ---- conv3 + final ReLU (one K=144 matmul) -------------------------------
    build_col(feat2_ref, 16)
    f_out = jnp.dot(w3_ref[...], col_ref[0:144, :],
                    preferred_element_type=jnp.float32)         # (3, HW)
    out_ref[0] = jnp.maximum(f_out + b3_ref[...], 0.0)


# ----------------------------------------------------------------------------
# Parameters (deterministic synthetic init; shapes from ToyHDRModel.__init__)
# Weight layout: HWIO (3, 3, Cin, Cout).
# ----------------------------------------------------------------------------
def init_params(key):
    k1, k2, k3, k4, k5, k6 = jax.random.split(key, 6)
    return {
        "w1": jax.random.normal(k1, (3, 3, 6, 16), jnp.float32) * 0.10,
        "b1": jax.random.normal(k2, (16,), jnp.float32) * 0.10,
        "w2": jax.random.normal(k3, (3, 3, 48, 16), jnp.float32) * 0.05,
        "b2": jax.random.normal(k4, (16,), jnp.float32) * 0.05,
        "w3": jax.random.normal(k5, (3, 3, 16, 3), jnp.float32) * 0.10,
        "b3": jax.random.normal(k6, (3,), jnp.float32) * 0.10,
    }


def _make_tap_masks(H, W):
    # mask[k, y*W + x] = 1 iff (y+dy, x+dx) is inside the image, k = (dy+1)*3+(dx+1).
    yy, xx = jnp.meshgrid(jnp.arange(H), jnp.arange(W), indexing="ij")
    yy = yy.reshape(-1)
    xx = xx.reshape(-1)
    rows = []
    for dy in (-1, 0, 1):
        for dx in (-1, 0, 1):
            valid = ((yy + dy >= 0) & (yy + dy < H) &
                     (xx + dx >= 0) & (xx + dx < W))
            rows.append(valid)
    return jnp.stack(rows, axis=0).astype(jnp.float32)          # (9, H*W)


# ----------------------------------------------------------------------------
# Public forward pass: one pallas_call for the whole network
# ----------------------------------------------------------------------------
def toy_hdr_forward(X, exposure_values, params, gamma=2.2):
    # X: (B, 3, 3, H, W) float32; exposure_values: (B, 3)
    B, E, C, H, W = X.shape
    assert E == 3 and C == 3
    HW = H * W

    # PyTorch input is already channel-major with trailing spatial dims, so
    # these reshapes are free (no HBM transpose passes).
    x_flat = X.astype(jnp.float32).reshape(B, E * C, HW)        # (B, 9, HW)
    inv_expo = jnp.exp2(-exposure_values).astype(jnp.float32)   # (B, 3)
    masks = _make_tap_masks(H, W)                               # (9, HW)

    # Pack weights into tap-major matmul form, col row index = tap*Cin + c.
    w1 = jnp.transpose(params["w1"].reshape(9, 6, 16), (2, 0, 1))   # (16, 9, 6)
    w1 = jnp.pad(w1, ((0, 0), (0, 0), (0, 2))).reshape(16, 72)      # pad Cin 6->8
    w2 = jnp.transpose(params["w2"].reshape(9, 48, 16), (2, 0, 1)).reshape(16, 432)
    w3 = jnp.transpose(params["w3"].reshape(9, 16, 3), (2, 0, 1)).reshape(3, 144)
    b1 = params["b1"].reshape(16, 1)
    b2 = params["b2"].reshape(16, 1)
    b3 = params["b3"].reshape(3, 1)

    kernel = functools.partial(_fused_hdr_kernel, gamma=gamma, H=H, W=W)
    out_flat = pl.pallas_call(
        kernel,
        out_shape=jax.ShapeDtypeStruct((B, 3, HW), jnp.float32),
        grid=(B,),
        in_specs=[
            pl.BlockSpec(memory_space=pltpu.MemorySpace.SMEM),        # inv_expo
            pl.BlockSpec((1, E * C, HW), lambda b: (b, 0, 0)),        # x (flat)
            pl.BlockSpec((9, HW), lambda b: (0, 0)),                  # tap masks
            pl.BlockSpec((16, 72), lambda b: (0, 0)),                 # w1
            pl.BlockSpec((16, 1), lambda b: (0, 0)),                  # b1
            pl.BlockSpec((16, 432), lambda b: (0, 0)),                # w2
            pl.BlockSpec((16, 1), lambda b: (0, 0)),                  # b2
            pl.BlockSpec((3, 144), lambda b: (0, 0)),                 # w3
            pl.BlockSpec((3, 1), lambda b: (0, 0)),                   # b3
        ],
        out_specs=pl.BlockSpec((1, 3, HW), lambda b: (b, 0, 0)),
        scratch_shapes=[
            pltpu.VMEM((8, HW), jnp.float32),        # x / x_lin (6ch padded to 8)
            pltpu.VMEM((48, HW), jnp.float32),       # concatenated conv1 features
            pltpu.VMEM((16, HW), jnp.float32),       # conv2 features
            pltpu.VMEM((9 * 48, HW), jnp.float32),   # shared im2col buffer
        ],
        compiler_params=pltpu.CompilerParams(
            dimension_semantics=("parallel",),
            vmem_limit_bytes=32 * 1024 * 1024),
    )(inv_expo, x_flat, masks, w1, b1, w2, b2, w3, b3)

    # Free reshape back to PyTorch's (B, 3, H, W).
    return out_flat.reshape(B, 3, H, W)


# ----------------------------------------------------------------------------
# Pure-JAX reference (same math, XLA convolutions) for correctness check
# ----------------------------------------------------------------------------
def ref_forward(X, exposure_values, params):
    def conv(x, w, b):
        y = lax.conv_general_dilated(
            x, w, window_strides=(1, 1), padding="SAME",
            dimension_numbers=("NHWC", "HWIO", "NHWC"))
        return y + b

    feats = []
    for e in range(3):
        xe = jnp.transpose(X[:, e], (0, 2, 3, 1))
        scale = jnp.power(2.0, exposure_values[:, e])[:, None, None, None]
        xcat = jnp.concatenate([xe, jnp.power(xe, 2.2) / scale], axis=-1)
        feats.append(jnp.maximum(conv(xcat, params["w1"], params["b1"]), 0.0))
    f_cat = jnp.concatenate(feats, axis=-1)
    f_mid = conv(f_cat, params["w2"], params["b2"])
    f_out = conv(f_mid, params["w3"], params["b3"])
    return jnp.transpose(jnp.maximum(f_out, 0.0), (0, 3, 1, 2))


if __name__ == "__main__":
    key = jax.random.PRNGKey(0)
    kx, kp = jax.random.split(key, 2)

    B, H, W = 2, 16, 16
    X = jax.random.uniform(kx, (B, 3, 3, H, W), jnp.float32,
                           minval=0.01, maxval=1.0)
    exposure_values = jnp.array([[-2.0, 0.0, 2.0],
                                 [-1.0, 0.0, 1.0]], jnp.float32)
    params = init_params(kp)

    out = jax.jit(toy_hdr_forward)(X, exposure_values, params)
    out = jax.block_until_ready(out)

    ref = ref_forward(X, exposure_values, params)
    assert out.shape == (B, 3, H, W), out.shape
    max_err = float(jnp.max(jnp.abs(out - ref)))
    assert jnp.allclose(out, ref, rtol=1e-3, atol=1e-3), max_err

    print("KERNEL_OK")
</pallas_src>

<mosaic_0001>
module attributes {stable_mosaic.version = 11 : i64} {
  func.func @_fused_hdr_kernel(%arg0: i32, %arg1: memref<2x3xf32, #tpu.memory_space<smem>>, %arg2: memref<1x9x256xf32, #tpu.memory_space<vmem>>, %arg3: memref<9x256xf32, #tpu.memory_space<vmem>>, %arg4: memref<16x72xf32, #tpu.memory_space<vmem>>, %arg5: memref<16x1xf32, #tpu.memory_space<vmem>>, %arg6: memref<16x432xf32, #tpu.memory_space<vmem>>, %arg7: memref<16x1xf32, #tpu.memory_space<vmem>>, %arg8: memref<3x144xf32, #tpu.memory_space<vmem>>, %arg9: memref<3x1xf32, #tpu.memory_space<vmem>>, %arg10: memref<1x3x256xf32, #tpu.memory_space<vmem>>, %arg11: memref<8x256xf32, #tpu.memory_space<vmem>>, %arg12: memref<48x256xf32, #tpu.memory_space<vmem>>, %arg13: memref<16x256xf32, #tpu.memory_space<vmem>>, %arg14: memref<432x256xf32, #tpu.memory_space<vmem>>) attributes {dimension_semantics = [#tpu.dimension_semantics<parallel>], iteration_bounds = array<i64: 2>, scalar_prefetch = 0 : i64, scratch_operands = 4 : i64, tpu.core_type = #tpu.core_type<tc>, window_params = [{transform_indices = @transform_0, window_bounds = array<i64: 2, 3>}, {transform_indices = @transform_1, window_bounds = array<i64: 1, 9, 256>}, {pipeline_mode = #tpu.pipeline_mode<synchronous>, transform_indices = @transform_2, window_bounds = array<i64: 9, 256>}, {pipeline_mode = #tpu.pipeline_mode<synchronous>, transform_indices = @transform_3, window_bounds = array<i64: 16, 72>}, {pipeline_mode = #tpu.pipeline_mode<synchronous>, transform_indices = @transform_4, window_bounds = array<i64: 16, 1>}, {pipeline_mode = #tpu.pipeline_mode<synchronous>, transform_indices = @transform_5, window_bounds = array<i64: 16, 432>}, {pipeline_mode = #tpu.pipeline_mode<synchronous>, transform_indices = @transform_6, window_bounds = array<i64: 16, 1>}, {pipeline_mode = #tpu.pipeline_mode<synchronous>, transform_indices = @transform_7, window_bounds = array<i64: 3, 144>}, {pipeline_mode = #tpu.pipeline_mode<synchronous>, transform_indices = @transform_8, window_bounds = array<i64: 3, 1>}, {transform_indices = @transform_9, window_bounds = array<i64: 1, 3, 256>}]} {
    %cst = arith.constant 0.000000e+00 : f32
    %0 = vector.broadcast %cst : f32 to vector<2x256xf32>
    %c6 = arith.constant 6 : index
    %c0 = arith.constant 0 : index
    %1 = vector.load %arg11[%c6, %c0] : memref<8x256xf32, #tpu.memory_space<vmem>>, vector<2x256xf32>
    tpu.vector_store %arg11[%c6, %c0], %0 {strides = array<i32>} : memref<8x256xf32, #tpu.memory_space<vmem>>, vector<2x256xf32>,
    %c0_0 = arith.constant 0 : index
    %c0_1 = arith.constant 0 : index
    %c0_2 = arith.constant 0 : index
    %2 = vector.load %arg2[%c0_0, %c0_1, %c0_2] : memref<1x9x256xf32, #tpu.memory_space<vmem>>, vector<1x3x256xf32>
    %3 = vector.shape_cast %2 : vector<1x3x256xf32> to vector<3x256xf32>
    %4 = arith.index_cast %arg0 : i32 to index
    %c0_3 = arith.constant 0 : index
    %5 = memref.load %arg1[%4, %c0_3] : memref<2x3xf32, #tpu.memory_space<smem>>
    %c0_4 = arith.constant 0 : index
    %c0_5 = arith.constant 0 : index
    %6 = vector.load %arg11[%c0_4, %c0_5] : memref<8x256xf32, #tpu.memory_space<vmem>>, vector<3x256xf32>
    tpu.vector_store %arg11[%c0_4, %c0_5], %3 {strides = array<i32>} : memref<8x256xf32, #tpu.memory_space<vmem>>, vector<3x256xf32>,
    %cst_6 = arith.constant 2.200000e+00 : f32
    %7 = vector.broadcast %cst_6 : f32 to vector<3x256xf32>
    %8 = math.powf %3, %7 : vector<3x256xf32>
    %9 = vector.broadcast %5 : f32 to vector<3x256xf32>
    %10 = arith.mulf %8, %9 : vector<3x256xf32>
    %c3 = arith.constant 3 : index
    %c0_7 = arith.constant 0 : index
    %11 = vector.load %arg11[%c3, %c0_7] : memref<8x256xf32, #tpu.memory_space<vmem>>, vector<3x256xf32>
    tpu.vector_store %arg11[%c3, %c0_7], %10 {strides = array<i32>} : memref<8x256xf32, #tpu.memory_space<vmem>>, vector<3x256xf32>,
    %c0_8 = arith.constant 0 : index
    %c0_9 = arith.constant 0 : index
    %12 = vector.load %arg11[%c0_8, %c0_9] : memref<8x256xf32, #tpu.memory_space<vmem>>, vector<8x256xf32>
    %13 = vector.extract_strided_slice %12 {offsets = [0, 239], sizes = [8, 17], strides = [1, 1]} : vector<8x256xf32> to vector<8x17xf32>
    %14 = vector.extract_strided_slice %12 {offsets = [0, 0], sizes = [8, 239], strides = [1, 1]} : vector<8x256xf32> to vector<8x239xf32>
    %15 = tpu.concatenate %13, %14 in 1 : vector<8x17xf32>, vector<8x239xf32> -> vector<8x256xf32>
    %c0_10 = arith.constant 0 : index
    %c0_11 = arith.constant 0 : index
    %16 = vector.load %arg3[%c0_10, %c0_11] : memref<9x256xf32, #tpu.memory_space<vmem>>, vector<1x256xf32>
    %17 = vector.broadcast %16 : vector<1x256xf32> to vector<8x256xf32>
    %18 = arith.mulf %15, %17 : vector<8x256xf32>
    %c0_12 = arith.constant 0 : index
    %c0_13 = arith.constant 0 : index
    %19 = vector.load %arg14[%c0_12, %c0_13] : memref<432x256xf32, #tpu.memory_space<vmem>>, vector<8x256xf32>
    tpu.vector_store %arg14[%c0_12, %c0_13], %18 {strides = array<i32>} : memref<432x256xf32, #tpu.memory_space<vmem>>, vector<8x256xf32>,
    %20 = vector.extract_strided_slice %12 {offsets = [0, 240], sizes = [8, 16], strides = [1, 1]} : vector<8x256xf32> to vector<8x16xf32>
    %21 = vector.extract_strided_slice %12 {offsets = [0, 0], sizes = [8, 240], strides = [1, 1]} : vector<8x256xf32> to vector<8x240xf32>
    %22 = tpu.concatenate %20, %21 in 1 : vector<8x16xf32>, vector<8x240xf32> -> vector<8x256xf32>
    %c1 = arith.constant 1 : index
    %c0_14 = arith.constant 0 : index
    %23 = vector.load %arg3[%c1, %c0_14] : memref<9x256xf32, #tpu.memory_space<vmem>>, vector<1x256xf32>
    %24 = vector.broadcast %23 : vector<1x256xf32> to vector<8x256xf32>
    %25 = arith.mulf %22, %24 : vector<8x256xf32>
    %c8 = arith.constant 8 : index
    %c0_15 = arith.constant 0 : index
    %26 = vector.load %arg14[%c8, %c0_15] : memref<432x256xf32, #tpu.memory_space<vmem>>, vector<8x256xf32>
    tpu.vector_store %arg14[%c8, %c0_15], %25 {strides = array<i32>} : memref<432x256xf32, #tpu.memory_space<vmem>>, vector<8x256xf32>,
    %27 = vector.extract_strided_slice %12 {offsets = [0, 241], sizes = [8, 15], strides = [1, 1]} : vector<8x256xf32> to vector<8x15xf32>
    %28 = vector.extract_strided_slice %12 {offsets = [0, 0], sizes = [8, 241], strides = [1, 1]} : vector<8x256xf32> to vector<8x241xf32>
    %29 = tpu.concatenate %27, %28 in 1 : vector<8x15xf32>, vector<8x241xf32> -> vector<8x256xf32>
    %c2 = arith.constant 2 : index
    %c0_16 = arith.constant 0 : index
    %30 = vector.load %arg3[%c2, %c0_16] : memref<9x256xf32, #tpu.memory_space<vmem>>, vector<1x256xf32>
    %31 = vector.broadcast %30 : vector<1x256xf32> to vector<8x256xf32>
    %32 = arith.mulf %29, %31 : vector<8x256xf32>
    %c16 = arith.constant 16 : index
    %c0_17 = arith.constant 0 : index
    %33 = vector.load %arg14[%c16, %c0_17] : memref<432x256xf32, #tpu.memory_space<vmem>>, vector<8x256xf32>
    tpu.vector_store %arg14[%c16, %c0_17], %32 {strides = array<i32>} : memref<432x256xf32, #tpu.memory_space<vmem>>, vector<8x256xf32>,
    %34 = vector.extract_strided_slice %12 {offsets = [0, 255], sizes = [8, 1], strides = [1, 1]} : vector<8x256xf32> to vector<8x1xf32>
    %35 = vector.extract_strided_slice %12 {offsets = [0, 0], sizes = [8, 255], strides = [1, 1]} : vector<8x256xf32> to vector<8x255xf32>
    %36 = tpu.concatenate %34, %35 in 1 : vector<8x1xf32>, vector<8x255xf32> -> vector<8x256xf32>
    %c3_18 = arith.constant 3 : index
    %c0_19 = arith.constant 0 : index
    %37 = vector.load %arg3[%c3_18, %c0_19] : memref<9x256xf32, #tpu.memory_space<vmem>>, vector<1x256xf32>
    %38 = vector.broadcast %37 : vector<1x256xf32> to vector<8x256xf32>
    %39 = arith.mulf %36, %38 : vector<8x256xf32>
    %c24 = arith.constant 24 : index
    %c0_20 = arith.constant 0 : index
    %40 = vector.load %arg14[%c24, %c0_20] : memref<432x256xf32, #tpu.memory_space<vmem>>, vector<8x256xf32>
    tpu.vector_store %arg14[%c24, %c0_20], %39 {strides = array<i32>} : memref<432x256xf32, #tpu.memory_space<vmem>>, vector<8x256xf32>,
    %c32 = arith.constant 32 : index
    %c0_21 = arith.constant 0 : index
    %41 = vector.load %arg14[%c32, %c0_21] : memref<432x256xf32, #tpu.memory_space<vmem>>, vector<8x256xf32>
    tpu.vector_store %arg14[%c32, %c0_21], %12 {strides = array<i32>} : memref<432x256xf32, #tpu.memory_space<vmem>>, vector<8x256xf32>,
    %42 = vector.extract_strided_slice %12 {offsets = [0, 1], sizes = [8, 255], strides = [1, 1]} : vector<8x256xf32> to vector<8x255xf32>
    %43 = vector.extract_strided_slice %12 {offsets = [0, 0], sizes = [8, 1], strides = [1, 1]} : vector<8x256xf32> to vector<8x1xf32>
    %44 = tpu.concatenate %42, %43 in 1 : vector<8x255xf32>, vector<8x1xf32> -> vector<8x256xf32>
    %c5 = arith.constant 5 : index
    %c0_22 = arith.constant 0 : index
    %45 = vector.load %arg3[%c5, %c0_22] : memref<9x256xf32, #tpu.memory_space<vmem>>, vector<1x256xf32>
    %46 = vector.broadcast %45 : vector<1x256xf32> to vector<8x256xf32>
    %47 = arith.mulf %44, %46 : vector<8x256xf32>
    %c40 = arith.constant 40 : index
    %c0_23 = arith.constant 0 : index
    %48 = vector.load %arg14[%c40, %c0_23] : memref<432x256xf32, #tpu.memory_space<vmem>>, vector<8x256xf32>
    tpu.vector_store %arg14[%c40, %c0_23], %47 {strides = array<i32>} : memref<432x256xf32, #tpu.memory_space<vmem>>, vector<8x256xf32>,
    %49 = vector.extract_strided_slice %12 {offsets = [0, 15], sizes = [8, 241], strides = [1, 1]} : vector<8x256xf32> to vector<8x241xf32>
    %50 = vector.extract_strided_slice %12 {offsets = [0, 0], sizes = [8, 15], strides = [1, 1]} : vector<8x256xf32> to vector<8x15xf32>
    %51 = tpu.concatenate %49, %50 in 1 : vector<8x241xf32>, vector<8x15xf32> -> vector<8x256xf32>
    %c6_24 = arith.constant 6 : index
    %c0_25 = arith.constant 0 : index
    %52 = vector.load %arg3[%c6_24, %c0_25] : memref<9x256xf32, #tpu.memory_space<vmem>>, vector<1x256xf32>
    %53 = vector.broadcast %52 : vector<1x256xf32> to vector<8x256xf32>
    %54 = arith.mulf %51, %53 : vector<8x256xf32>
    %c48 = arith.constant 48 : index
    %c0_26 = arith.constant 0 : index
    %55 = vector.load %arg14[%c48, %c0_26] : memref<432x256xf32, #tpu.memory_space<vmem>>, vector<8x256xf32>
    tpu.vector_store %arg14[%c48, %c0_26], %54 {strides = array<i32>} : memref<432x256xf32, #tpu.memory_space<vmem>>, vector<8x256xf32>,
    %56 = vector.extract_strided_slice %12 {offsets = [0, 16], sizes = [8, 240], strides = [1, 1]} : vector<8x256xf32> to vector<8x240xf32>
    %57 = vector.extract_strided_slice %12 {offsets = [0, 0], sizes = [8, 16], strides = [1, 1]} : vector<8x256xf32> to vector<8x16xf32>
    %58 = tpu.concatenate %56, %57 in 1 : vector<8x240xf32>, vector<8x16xf32> -> vector<8x256xf32>
    %c7 = arith.constant 7 : index
    %c0_27 = arith.constant 0 : index
    %59 = vector.load %arg3[%c7, %c0_27] : memref<9x256xf32, #tpu.memory_space<vmem>>, vector<1x256xf32>
    %60 = vector.broadcast %59 : vector<1x256xf32> to vector<8x256xf32>
    %61 = arith.mulf %58, %60 : vector<8x256xf32>
    %c56 = arith.constant 56 : index
    %c0_28 = arith.constant 0 : index
    %62 = vector.load %arg14[%c56, %c0_28] : memref<432x256xf32, #tpu.memory_space<vmem>>, vector<8x256xf32>
    tpu.vector_store %arg14[%c56, %c0_28], %61 {strides = array<i32>} : memref<432x256xf32, #tpu.memory_space<vmem>>, vector<8x256xf32>,
    %63 = vector.extract_strided_slice %12 {offsets = [0, 17], sizes = [8, 239], strides = [1, 1]} : vector<8x256xf32> to vector<8x239xf32>
    %64 = vector.extract_strided_slice %12 {offsets = [0, 0], sizes = [8, 17], strides = [1, 1]} : vector<8x256xf32> to vector<8x17xf32>
    %65 = tpu.concatenate %63, %64 in 1 : vector<8x239xf32>, vector<8x17xf32> -> vector<8x256xf32>
    %c8_29 = arith.constant 8 : index
    %c0_30 = arith.constant 0 : index
    %66 = vector.load %arg3[%c8_29, %c0_30] : memref<9x256xf32, #tpu.memory_space<vmem>>, vector<1x256xf32>
    %67 = vector.broadcast %66 : vector<1x256xf32> to vector<8x256xf32>
    %68 = arith.mulf %65, %67 : vector<8x256xf32>
    %c64 = arith.constant 64 : index
    %c0_31 = arith.constant 0 : index
    %69 = vector.load %arg14[%c64, %c0_31] : memref<432x256xf32, #tpu.memory_space<vmem>>, vector<8x256xf32>
    tpu.vector_store %arg14[%c64, %c0_31], %68 {strides = array<i32>} : memref<432x256xf32, #tpu.memory_space<vmem>>, vector<8x256xf32>,
    %c0_32 = arith.constant 0 : index
    %c0_33 = arith.constant 0 : index
    %70 = vector.load %arg4[%c0_32, %c0_33] : memref<16x72xf32, #tpu.memory_space<vmem>>, vector<16x72xf32>
    %c0_34 = arith.constant 0 : index
    %c0_35 = arith.constant 0 : index
    %71 = vector.load %arg14[%c0_34, %c0_35] : memref<432x256xf32, #tpu.memory_space<vmem>>, vector<72x256xf32>
    %cst_36 = arith.constant dense<0.000000e+00> : vector<16x256xf32>
    %72 = tpu.matmul %70, %71, %cst_36 {dimension_numbers = #tpu.dot_dimension_numbers<[1], [0], [0], [1], [0, 0, 1, 1], [], []>} : vector<16x72xf32>, vector<72x256xf32>, vector<16x256xf32> -> vector<16x256xf32>
    %c0_37 = arith.constant 0 : index
    %c0_38 = arith.constant 0 : index
    %73 = vector.load %arg5[%c0_37, %c0_38] : memref<16x1xf32, #tpu.memory_space<vmem>>, vector<16x1xf32>
    %74 = vector.broadcast %73 : vector<16x1xf32> to vector<16x256xf32>
    %75 = arith.addf %72, %74 : vector<16x256xf32>
    %cst_39 = arith.constant 0.000000e+00 : f32
    %76 = vector.broadcast %cst_39 : f32 to vector<16x256xf32>
    %77 = arith.maximumf %75, %76 : vector<16x256xf32>
    %c0_40 = arith.constant 0 : index
    %c0_41 = arith.constant 0 : index
    %78 = vector.load %arg12[%c0_40, %c0_41] : memref<48x256xf32, #tpu.memory_space<vmem>>, vector<16x256xf32>
    tpu.vector_store %arg12[%c0_40, %c0_41], %77 {strides = array<i32>} : memref<48x256xf32, #tpu.memory_space<vmem>>, vector<16x256xf32>,
    %c0_42 = arith.constant 0 : index
    %c3_43 = arith.constant 3 : index
    %c0_44 = arith.constant 0 : index
    %79 = vector.load %arg2[%c0_42, %c3_43, %c0_44] : memref<1x9x256xf32, #tpu.memory_space<vmem>>, vector<1x3x256xf32>
    %80 = vector.shape_cast %79 : vector<1x3x256xf32> to vector<3x256xf32>
    %81 = arith.index_cast %arg0 : i32 to index
    %c1_45 = arith.constant 1 : index
    %82 = memref.load %arg1[%81, %c1_45] : memref<2x3xf32, #tpu.memory_space<smem>>
    %c0_46 = arith.constant 0 : index
    %c0_47 = arith.constant 0 : index
    %83 = vector.load %arg11[%c0_46, %c0_47] : memref<8x256xf32, #tpu.memory_space<vmem>>, vector<3x256xf32>
    tpu.vector_store %arg11[%c0_46, %c0_47], %80 {strides = array<i32>} : memref<8x256xf32, #tpu.memory_space<vmem>>, vector<3x256xf32>,
    %cst_48 = arith.constant 2.200000e+00 : f32
    %84 = vector.broadcast %cst_48 : f32 to vector<3x256xf32>
    %85 = math.powf %80, %84 : vector<3x256xf32>
    %86 = vector.broadcast %82 : f32 to vector<3x256xf32>
    %87 = arith.mulf %85, %86 : vector<3x256xf32>
    %c3_49 = arith.constant 3 : index
    %c0_50 = arith.constant 0 : index
    %88 = vector.load %arg11[%c3_49, %c0_50] : memref<8x256xf32, #tpu.memory_space<vmem>>, vector<3x256xf32>
    tpu.vector_store %arg11[%c3_49, %c0_50], %87 {strides = array<i32>} : memref<8x256xf32, #tpu.memory_space<vmem>>, vector<3x256xf32>,
    %c0_51 = arith.constant 0 : index
    %c0_52 = arith.constant 0 : index
    %89 = vector.load %arg11[%c0_51, %c0_52] : memref<8x256xf32, #tpu.memory_space<vmem>>, vector<8x256xf32>
    %90 = vector.extract_strided_slice %89 {offsets = [0, 239], sizes = [8, 17], strides = [1, 1]} : vector<8x256xf32> to vector<8x17xf32>
    %91 = vector.extract_strided_slice %89 {offsets = [0, 0], sizes = [8, 239], strides = [1, 1]} : vector<8x256xf32> to vector<8x239xf32>
    %92 = tpu.concatenate %90, %91 in 1 : vector<8x17xf32>, vector<8x239xf32> -> vector<8x256xf32>
    %c0_53 = arith.constant 0 : index
    %c0_54 = arith.constant 0 : index
    %93 = vector.load %arg3[%c0_53, %c0_54] : memref<9x256xf32, #tpu.memory_space<vmem>>, vector<1x256xf32>
    %94 = vector.broadcast %93 : vector<1x256xf32> to vector<8x256xf32>
    %95 = arith.mulf %92, %94 : vector<8x256xf32>
    %c0_55 = arith.constant 0 : index
    %c0_56 = arith.constant 0 : index
    %96 = vector.load %arg14[%c0_55, %c0_56] : memref<432x256xf32, #tpu.memory_space<vmem>>, vector<8x256xf32>
    tpu.vector_store %arg14[%c0_55, %c0_56], %95 {strides = array<i32>} : memref<432x256xf32, #tpu.memory_space<vmem>>, vector<8x256xf32>,
    %97 = vector.extract_strided_slice %89 {offsets = [0, 240], sizes = [8, 16], strides = [1, 1]} : vector<8x256xf32> to vector<8x16xf32>
    %98 = vector.extract_strided_slice %89 {offsets = [0, 0], sizes = [8, 240], strides = [1, 1]} : vector<8x256xf32> to vector<8x240xf32>
    %99 = tpu.concatenate %97, %98 in 1 : vector<8x16xf32>, vector<8x240xf32> -> vector<8x256xf32>
    %c1_57 = arith.constant 1 : index
    %c0_58 = arith.constant 0 : index
    %100 = vector.load %arg3[%c1_57, %c0_58] : memref<9x256xf32, #tpu.memory_space<vmem>>, vector<1x256xf32>
    %101 = vector.broadcast %100 : vector<1x256xf32> to vector<8x256xf32>
    %102 = arith.mulf %99, %101 : vector<8x256xf32>
    %c8_59 = arith.constant 8 : index
    %c0_60 = arith.constant 0 : index
    %103 = vector.load %arg14[%c8_59, %c0_60] : memref<432x256xf32, #tpu.memory_space<vmem>>, vector<8x256xf32>
    tpu.vector_store %arg14[%c8_59, %c0_60], %102 {strides = array<i32>} : memref<432x256xf32, #tpu.memory_space<vmem>>, vector<8x256xf32>,
    %104 = vector.extract_strided_slice %89 {offsets = [0, 241], sizes = [8, 15], strides = [1, 1]} : vector<8x256xf32> to vector<8x15xf32>
    %105 = vector.extract_strided_slice %89 {offsets = [0, 0], sizes = [8, 241], strides = [1, 1]} : vector<8x256xf32> to vector<8x241xf32>
    %106 = tpu.concatenate %104, %105 in 1 : vector<8x15xf32>, vector<8x241xf32> -> vector<8x256xf32>
    %c2_61 = arith.constant 2 : index
    %c0_62 = arith.constant 0 : index
    %107 = vector.load %arg3[%c2_61, %c0_62] : memref<9x256xf32, #tpu.memory_space<vmem>>, vector<1x256xf32>
    %108 = vector.broadcast %107 : vector<1x256xf32> to vector<8x256xf32>
    %109 = arith.mulf %106, %108 : vector<8x256xf32>
    %c16_63 = arith.constant 16 : index
    %c0_64 = arith.constant 0 : index
    %110 = vector.load %arg14[%c16_63, %c0_64] : memref<432x256xf32, #tpu.memory_space<vmem>>, vector<8x256xf32>
    tpu.vector_store %arg14[%c16_63, %c0_64], %109 {strides = array<i32>} : memref<432x256xf32, #tpu.memory_space<vmem>>, vector<8x256xf32>,
    %111 = vector.extract_strided_slice %89 {offsets = [0, 255], sizes = [8, 1], strides = [1, 1]} : vector<8x256xf32> to vector<8x1xf32>
    %112 = vector.extract_strided_slice %89 {offsets = [0, 0], sizes = [8, 255], strides = [1, 1]} : vector<8x256xf32> to vector<8x255xf32>
    %113 = tpu.concatenate %111, %112 in 1 : vector<8x1xf32>, vector<8x255xf32> -> vector<8x256xf32>
    %c3_65 = arith.constant 3 : index
    %c0_66 = arith.constant 0 : index
    %114 = vector.load %arg3[%c3_65, %c0_66] : memref<9x256xf32, #tpu.memory_space<vmem>>, vector<1x256xf32>
    %115 = vector.broadcast %114 : vector<1x256xf32> to vector<8x256xf32>
    %116 = arith.mulf %113, %115 : vector<8x256xf32>
    %c24_67 = arith.constant 24 : index
    %c0_68 = arith.constant 0 : index
    %117 = vector.load %arg14[%c24_67, %c0_68] : memref<432x256xf32, #tpu.memory_space<vmem>>, vector<8x256xf32>
    tpu.vector_store %arg14[%c24_67, %c0_68], %116 {strides = array<i32>} : memref<432x256xf32, #tpu.memory_space<vmem>>, vector<8x256xf32>,
    %c32_69 = arith.constant 32 : index
    %c0_70 = arith.constant 0 : index
    %118 = vector.load %arg14[%c32_69, %c0_70] : memref<432x256xf32, #tpu.memory_space<vmem>>, vector<8x256xf32>
    tpu.vector_store %arg14[%c32_69, %c0_70], %89 {strides = array<i32>} : memref<432x256xf32, #tpu.memory_space<vmem>>, vector<8x256xf32>,
    %119 = vector.extract_strided_slice %89 {offsets = [0, 1], sizes = [8, 255], strides = [1, 1]} : vector<8x256xf32> to vector<8x255xf32>
    %120 = vector.extract_strided_slice %89 {offsets = [0, 0], sizes = [8, 1], strides = [1, 1]} : vector<8x256xf32> to vector<8x1xf32>
    %121 = tpu.concatenate %119, %120 in 1 : vector<8x255xf32>, vector<8x1xf32> -> vector<8x256xf32>
    %c5_71 = arith.constant 5 : index
    %c0_72 = arith.constant 0 : index
    %122 = vector.load %arg3[%c5_71, %c0_72] : memref<9x256xf32, #tpu.memory_space<vmem>>, vector<1x256xf32>
    %123 = vector.broadcast %122 : vector<1x256xf32> to vector<8x256xf32>
    %124 = arith.mulf %121, %123 : vector<8x256xf32>
    %c40_73 = arith.constant 40 : index
    %c0_74 = arith.constant 0 : index
    %125 = vector.load %arg14[%c40_73, %c0_74] : memref<432x256xf32, #tpu.memory_space<vmem>>, vector<8x256xf32>
    tpu.vector_store %arg14[%c40_73, %c0_74], %124 {strides = array<i32>} : memref<432x256xf32, #tpu.memory_space<vmem>>, vector<8x256xf32>,
    %126 = vector.extract_strided_slice %89 {offsets = [0, 15], sizes = [8, 241], strides = [1, 1]} : vector<8x256xf32> to vector<8x241xf32>
    %127 = vector.extract_strided_slice %89 {offsets = [0, 0], sizes = [8, 15], strides = [1, 1]} : vector<8x256xf32> to vector<8x15xf32>
    %128 = tpu.concatenate %126, %127 in 1 : vector<8x241xf32>, vector<8x15xf32> -> vector<8x256xf32>
    %c6_75 = arith.constant 6 : index
    %c0_76 = arith.constant 0 : index
    %129 = vector.load %arg3[%c6_75, %c0_76] : memref<9x256xf32, #tpu.memory_space<vmem>>, vector<1x256xf32>
    %130 = vector.broadcast %129 : vector<1x256xf32> to vector<8x256xf32>
    %131 = arith.mulf %128, %130 : vector<8x256xf32>
    %c48_77 = arith.constant 48 : index
    %c0_78 = arith.constant 0 : index
    %132 = vector.load %arg14[%c48_77, %c0_78] : memref<432x256xf32, #tpu.memory_space<vmem>>, vector<8x256xf32>
    tpu.vector_store %arg14[%c48_77, %c0_78], %131 {strides = array<i32>} : memref<432x256xf32, #tpu.memory_space<vmem>>, vector<8x256xf32>,
    %133 = vector.extract_strided_slice %89 {offsets = [0, 16], sizes = [8, 240], strides = [1, 1]} : vector<8x256xf32> to vector<8x240xf32>
    %134 = vector.extract_strided_slice %89 {offsets = [0, 0], sizes = [8, 16], strides = [1, 1]} : vector<8x256xf32> to vector<8x16xf32>
    %135 = tpu.concatenate %133, %134 in 1 : vector<8x240xf32>, vector<8x16xf32> -> vector<8x256xf32>
    %c7_79 = arith.constant 7 : index
    %c0_80 = arith.constant 0 : index
    %136 = vector.load %arg3[%c7_79, %c0_80] : memref<9x256xf32, #tpu.memory_space<vmem>>, vector<1x256xf32>
    %137 = vector.broadcast %136 : vector<1x256xf32> to vector<8x256xf32>
    %138 = arith.mulf %135, %137 : vector<8x256xf32>
    %c56_81 = arith.constant 56 : index
    %c0_82 = arith.constant 0 : index
    %139 = vector.load %arg14[%c56_81, %c0_82] : memref<432x256xf32, #tpu.memory_space<vmem>>, vector<8x256xf32>
    tpu.vector_store %arg14[%c56_81, %c0_82], %138 {strides = array<i32>} : memref<432x256xf32, #tpu.memory_space<vmem>>, vector<8x256xf32>,
    %140 = vector.extract_strided_slice %89 {offsets = [0, 17], sizes = [8, 239], strides = [1, 1]} : vector<8x256xf32> to vector<8x239xf32>
    %141 = vector.extract_strided_slice %89 {offsets = [0, 0], sizes = [8, 17], strides = [1, 1]} : vector<8x256xf32> to vector<8x17xf32>
    %142 = tpu.concatenate %140, %141 in 1 : vector<8x239xf32>, vector<8x17xf32> -> vector<8x256xf32>
    %c8_83 = arith.constant 8 : index
    %c0_84 = arith.constant 0 : index
    %143 = vector.load %arg3[%c8_83, %c0_84] : memref<9x256xf32, #tpu.memory_space<vmem>>, vector<1x256xf32>
    %144 = vector.broadcast %143 : vector<1x256xf32> to vector<8x256xf32>
    %145 = arith.mulf %142, %144 : vector<8x256xf32>
    %c64_85 = arith.constant 64 : index
    %c0_86 = arith.constant 0 : index
    %146 = vector.load %arg14[%c64_85, %c0_86] : memref<432x256xf32, #tpu.memory_space<vmem>>, vector<8x256xf32>
    tpu.vector_store %arg14[%c64_85, %c0_86], %145 {strides = array<i32>} : memref<432x256xf32, #tpu.memory_space<vmem>>, vector<8x256xf32>,
    %c0_87 = arith.constant 0 : index
    %c0_88 = arith.constant 0 : index
    %147 = vector.load %arg4[%c0_87, %c0_88] : memref<16x72xf32, #tpu.memory_space<vmem>>, vector<16x72xf32>
    %c0_89 = arith.constant 0 : index
    %c0_90 = arith.constant 0 : index
    %148 = vector.load %arg14[%c0_89, %c0_90] : memref<432x256xf32, #tpu.memory_space<vmem>>, vector<72x256xf32>
    %cst_91 = arith.constant dense<0.000000e+00> : vector<16x256xf32>
    %149 = tpu.matmul %147, %148, %cst_91 {dimension_numbers = #tpu.dot_dimension_numbers<[1], [0], [0], [1], [0, 0, 1, 1], [], []>} : vector<16x72xf32>, vector<72x256xf32>, vector<16x256xf32> -> vector<16x256xf32>
    %c0_92 = arith.constant 0 : index
    %c0_93 = arith.constant 0 : index
    %150 = vector.load %arg5[%c0_92, %c0_93] : memref<16x1xf32, #tpu.memory_space<vmem>>, vector<16x1xf32>
    %151 = vector.broadcast %150 : vector<16x1xf32> to vector<16x256xf32>
    %152 = arith.addf %149, %151 : vector<16x256xf32>
    %cst_94 = arith.constant 0.000000e+00 : f32
    %153 = vector.broadcast %cst_94 : f32 to vector<16x256xf32>
    %154 = arith.maximumf %152, %153 : vector<16x256xf32>
    %c16_95 = arith.constant 16 : index
    %c0_96 = arith.constant 0 : index
    %155 = vector.load %arg12[%c16_95, %c0_96] : memref<48x256xf32, #tpu.memory_space<vmem>>, vector<16x256xf32>
    tpu.vector_store %arg12[%c16_95, %c0_96], %154 {strides = array<i32>} : memref<48x256xf32, #tpu.memory_space<vmem>>, vector<16x256xf32>,
    %c0_97 = arith.constant 0 : index
    %c6_98 = arith.constant 6 : index
    %c0_99 = arith.constant 0 : index
    %156 = vector.load %arg2[%c0_97, %c6_98, %c0_99] : memref<1x9x256xf32, #tpu.memory_space<vmem>>, vector<1x3x256xf32>
    %157 = vector.shape_cast %156 : vector<1x3x256xf32> to vector<3x256xf32>
    %158 = arith.index_cast %arg0 : i32 to index
    %c2_100 = arith.constant 2 : index
    %159 = memref.load %arg1[%158, %c2_100] : memref<2x3xf32, #tpu.memory_space<smem>>
    %c0_101 = arith.constant 0 : index
    %c0_102 = arith.constant 0 : index
    %160 = vector.load %arg11[%c0_101, %c0_102] : memref<8x256xf32, #tpu.memory_space<vmem>>, vector<3x256xf32>
    tpu.vector_store %arg11[%c0_101, %c0_102], %157 {strides = array<i32>} : memref<8x256xf32, #tpu.memory_space<vmem>>, vector<3x256xf32>,
    %cst_103 = arith.constant 2.200000e+00 : f32
    %161 = vector.broadcast %cst_103 : f32 to vector<3x256xf32>
    %162 = math.powf %157, %161 : vector<3x256xf32>
    %163 = vector.broadcast %159 : f32 to vector<3x256xf32>
    %164 = arith.mulf %162, %163 : vector<3x256xf32>
    %c3_104 = arith.constant 3 : index
    %c0_105 = arith.constant 0 : index
    %165 = vector.load %arg11[%c3_104, %c0_105] : memref<8x256xf32, #tpu.memory_space<vmem>>, vector<3x256xf32>
    tpu.vector_store %arg11[%c3_104, %c0_105], %164 {strides = array<i32>} : memref<8x256xf32, #tpu.memory_space<vmem>>, vector<3x256xf32>,
    %c0_106 = arith.constant 0 : index
    %c0_107 = arith.constant 0 : index
    %166 = vector.load %arg11[%c0_106, %c0_107] : memref<8x256xf32, #tpu.memory_space<vmem>>, vector<8x256xf32>
    %167 = vector.extract_strided_slice %166 {offsets = [0, 239], sizes = [8, 17], strides = [1, 1]} : vector<8x256xf32> to vector<8x17xf32>
    %168 = vector.extract_strided_slice %166 {offsets = [0, 0], sizes = [8, 239], strides = [1, 1]} : vector<8x256xf32> to vector<8x239xf32>
    %169 = tpu.concatenate %167, %168 in 1 : vector<8x17xf32>, vector<8x239xf32> -> vector<8x256xf32>
    %c0_108 = arith.constant 0 : index
    %c0_109 = arith.constant 0 : index
    %170 = vector.load %arg3[%c0_108, %c0_109] : memref<9x256xf32, #tpu.memory_space<vmem>>, vector<1x256xf32>
    %171 = vector.broadcast %170 : vector<1x256xf32> to vector<8x256xf32>
    %172 = arith.mulf %169, %171 : vector<8x256xf32>
    %c0_110 = arith.constant 0 : index
    %c0_111 = arith.constant 0 : index
    %173 = vector.load %arg14[%c0_110, %c0_111] : memref<432x256xf32, #tpu.memory_space<vmem>>, vector<8x256xf32>
    tpu.vector_store %arg14[%c0_110, %c0_111], %172 {strides = array<i32>} : memref<432x256xf32, #tpu.memory_space<vmem>>, vector<8x256xf32>,
    %174 = vector.extract_strided_slice %166 {offsets = [0, 240], sizes = [8, 16], strides = [1, 1]} : vector<8x256xf32> to vector<8x16xf32>
    %175 = vector.extract_strided_slice %166 {offsets = [0, 0], sizes = [8, 240], strides = [1, 1]} : vector<8x256xf32> to vector<8x240xf32>
    %176 = tpu.concatenate %174, %175 in 1 : vector<8x16xf32>, vector<8x240xf32> -> vector<8x256xf32>
    %c1_112 = arith.constant 1 : index
    %c0_113 = arith.constant 0 : index
    %177 = vector.load %arg3[%c1_112, %c0_113] : memref<9x256xf32, #tpu.memory_space<vmem>>, vector<1x256xf32>
    %178 = vector.broadcast %177 : vector<1x256xf32> to vector<8x256xf32>
    %179 = arith.mulf %176, %178 : vector<8x256xf32>
    %c8_114 = arith.constant 8 : index
    %c0_115 = arith.constant 0 : index
    %180 = vector.load %arg14[%c8_114, %c0_115] : memref<432x256xf32, #tpu.memory_space<vmem>>, vector<8x256xf32>
    tpu.vector_store %arg14[%c8_114, %c0_115], %179 {strides = array<i32>} : memref<432x256xf32, #tpu.memory_space<vmem>>, vector<8x256xf32>,
    %181 = vector.extract_strided_slice %166 {offsets = [0, 241], sizes = [8, 15], strides = [1, 1]} : vector<8x256xf32> to vector<8x15xf32>
    %182 = vector.extract_strided_slice %166 {offsets = [0, 0], sizes = [8, 241], strides = [1, 1]} : vector<8x256xf32> to vector<8x241xf32>
    %183 = tpu.concatenate %181, %182 in 1 : vector<8x15xf32>, vector<8x241xf32> -> vector<8x256xf32>
    %c2_116 = arith.constant 2 : index
    %c0_117 = arith.constant 0 : index
    %184 = vector.load %arg3[%c2_116, %c0_117] : memref<9x256xf32, #tpu.memory_space<vmem>>, vector<1x256xf32>
    %185 = vector.broadcast %184 : vector<1x256xf32> to vector<8x256xf32>
    %186 = arith.mulf %183, %185 : vector<8x256xf32>
    %c16_118 = arith.constant 16 : index
    %c0_119 = arith.constant 0 : index
    %187 = vector.load %arg14[%c16_118, %c0_119] : memref<432x256xf32, #tpu.memory_space<vmem>>, vector<8x256xf32>
    tpu.vector_store %arg14[%c16_118, %c0_119], %186 {strides = array<i32>} : memref<432x256xf32, #tpu.memory_space<vmem>>, vector<8x256xf32>,
    %188 = vector.extract_strided_slice %166 {offsets = [0, 255], sizes = [8, 1], strides = [1, 1]} : vector<8x256xf32> to vector<8x1xf32>
    %189 = vector.extract_strided_slice %166 {offsets = [0, 0], sizes = [8, 255], strides = [1, 1]} : vector<8x256xf32> to vector<8x255xf32>
    %190 = tpu.concatenate %188, %189 in 1 : vector<8x1xf32>, vector<8x255xf32> -> vector<8x256xf32>
    %c3_120 = arith.constant 3 : index
    %c0_121 = arith.constant 0 : index
    %191 = vector.load %arg3[%c3_120, %c0_121] : memref<9x256xf32, #tpu.memory_space<vmem>>, vector<1x256xf32>
    %192 = vector.broadcast %191 : vector<1x256xf32> to vector<8x256xf32>
    %193 = arith.mulf %190, %192 : vector<8x256xf32>
    %c24_122 = arith.constant 24 : index
    %c0_123 = arith.constant 0 : index
    %194 = vector.load %arg14[%c24_122, %c0_123] : memref<432x256xf32, #tpu.memory_space<vmem>>, vector<8x256xf32>
    tpu.vector_store %arg14[%c24_122, %c0_123], %193 {strides = array<i32>} : memref<432x256xf32, #tpu.memory_space<vmem>>, vector<8x256xf32>,
    %c32_124 = arith.constant 32 : index
    %c0_125 = arith.constant 0 : index
    %195 = vector.load %arg14[%c32_124, %c0_125] : memref<432x256xf32, #tpu.memory_space<vmem>>, vector<8x256xf32>
    tpu.vector_store %arg14[%c32_124, %c0_125], %166 {strides = array<i32>} : memref<432x256xf32, #tpu.memory_space<vmem>>, vector<8x256xf32>,
    %196 = vector.extract_strided_slice %166 {offsets = [0, 1], sizes = [8, 255], strides = [1, 1]} : vector<8x256xf32> to vector<8x255xf32>
    %197 = vector.extract_strided_slice %166 {offsets = [0, 0], sizes = [8, 1], strides = [1, 1]} : vector<8x256xf32> to vector<8x1xf32>
    %198 = tpu.concatenate %196, %197 in 1 : vector<8x255xf32>, vector<8x1xf32> -> vector<8x256xf32>
    %c5_126 = arith.constant 5 : index
    %c0_127 = arith.constant 0 : index
    %199 = vector.load %arg3[%c5_126, %c0_127] : memref<9x256xf32, #tpu.memory_space<vmem>>, vector<1x256xf32>
    %200 = vector.broadcast %199 : vector<1x256xf32> to vector<8x256xf32>
    %201 = arith.mulf %198, %200 : vector<8x256xf32>
    %c40_128 = arith.constant 40 : index
    %c0_129 = arith.constant 0 : index
    %202 = vector.load %arg14[%c40_128, %c0_129] : memref<432x256xf32, #tpu.memory_space<vmem>>, vector<8x256xf32>
    tpu.vector_store %arg14[%c40_128, %c0_129], %201 {strides = array<i32>} : memref<432x256xf32, #tpu.memory_space<vmem>>, vector<8x256xf32>,
    %203 = vector.extract_strided_slice %166 {offsets = [0, 15], sizes = [8, 241], strides = [1, 1]} : vector<8x256xf32> to vector<8x241xf32>
    %204 = vector.extract_strided_slice %166 {offsets = [0, 0], sizes = [8, 15], strides = [1, 1]} : vector<8x256xf32> to vector<8x15xf32>
    %205 = tpu.concatenate %203, %204 in 1 : vector<8x241xf32>, vector<8x15xf32> -> vector<8x256xf32>
    %c6_130 = arith.constant 6 : index
    %c0_131 = arith.constant 0 : index
    %206 = vector.load %arg3[%c6_130, %c0_131] : memref<9x256xf32, #tpu.memory_space<vmem>>, vector<1x256xf32>
    %207 = vector.broadcast %206 : vector<1x256xf32> to vector<8x256xf32>
    %208 = arith.mulf %205, %207 : vector<8x256xf32>
    %c48_132 = arith.constant 48 : index
    %c0_133 = arith.constant 0 : index
    %209 = vector.load %arg14[%c48_132, %c0_133] : memref<432x256xf32, #tpu.memory_space<vmem>>, vector<8x256xf32>
    tpu.vector_store %arg14[%c48_132, %c0_133], %208 {strides = array<i32>} : memref<432x256xf32, #tpu.memory_space<vmem>>, vector<8x256xf32>,
    %210 = vector.extract_strided_slice %166 {offsets = [0, 16], sizes = [8, 240], strides = [1, 1]} : vector<8x256xf32> to vector<8x240xf32>
    %211 = vector.extract_strided_slice %166 {offsets = [0, 0], sizes = [8, 16], strides = [1, 1]} : vector<8x256xf32> to vector<8x16xf32>
    %212 = tpu.concatenate %210, %211 in 1 : vector<8x240xf32>, vector<8x16xf32> -> vector<8x256xf32>
    %c7_134 = arith.constant 7 : index
    %c0_135 = arith.constant 0 : index
    %213 = vector.load %arg3[%c7_134, %c0_135] : memref<9x256xf32, #tpu.memory_space<vmem>>, vector<1x256xf32>
    %214 = vector.broadcast %213 : vector<1x256xf32> to vector<8x256xf32>
    %215 = arith.mulf %212, %214 : vector<8x256xf32>
    %c56_136 = arith.constant 56 : index
    %c0_137 = arith.constant 0 : index
    %216 = vector.load %arg14[%c56_136, %c0_137] : memref<432x256xf32, #tpu.memory_space<vmem>>, vector<8x256xf32>
    tpu.vector_store %arg14[%c56_136, %c0_137], %215 {strides = array<i32>} : memref<432x256xf32, #tpu.memory_space<vmem>>, vector<8x256xf32>,
    %217 = vector.extract_strided_slice %166 {offsets = [0, 17], sizes = [8, 239], strides = [1, 1]} : vector<8x256xf32> to vector<8x239xf32>
    %218 = vector.extract_strided_slice %166 {offsets = [0, 0], sizes = [8, 17], strides = [1, 1]} : vector<8x256xf32> to vector<8x17xf32>
    %219 = tpu.concatenate %217, %218 in 1 : vector<8x239xf32>, vector<8x17xf32> -> vector<8x256xf32>
    %c8_138 = arith.constant 8 : index
    %c0_139 = arith.constant 0 : index
    %220 = vector.load %arg3[%c8_138, %c0_139] : memref<9x256xf32, #tpu.memory_space<vmem>>, vector<1x256xf32>
    %221 = vector.broadcast %220 : vector<1x256xf32> to vector<8x256xf32>
    %222 = arith.mulf %219, %221 : vector<8x256xf32>
    %c64_140 = arith.constant 64 : index
    %c0_141 = arith.constant 0 : index
    %223 = vector.load %arg14[%c64_140, %c0_141] : memref<432x256xf32, #tpu.memory_space<vmem>>, vector<8x256xf32>
    tpu.vector_store %arg14[%c64_140, %c0_141], %222 {strides = array<i32>} : memref<432x256xf32, #tpu.memory_space<vmem>>, vector<8x256xf32>,
    %c0_142 = arith.constant 0 : index
    %c0_143 = arith.constant 0 : index
    %224 = vector.load %arg4[%c0_142, %c0_143] : memref<16x72xf32, #tpu.memory_space<vmem>>, vector<16x72xf32>
    %c0_144 = arith.constant 0 : index
    %c0_145 = arith.constant 0 : index
    %225 = vector.load %arg14[%c0_144, %c0_145] : memref<432x256xf32, #tpu.memory_space<vmem>>, vector<72x256xf32>
    %cst_146 = arith.constant dense<0.000000e+00> : vector<16x256xf32>
    %226 = tpu.matmul %224, %225, %cst_146 {dimension_numbers = #tpu.dot_dimension_numbers<[1], [0], [0], [1], [0, 0, 1, 1], [], []>} : vector<16x72xf32>, vector<72x256xf32>, vector<16x256xf32> -> vector<16x256xf32>
    %c0_147 = arith.constant 0 : index
    %c0_148 = arith.constant 0 : index
    %227 = vector.load %arg5[%c0_147, %c0_148] : memref<16x1xf32, #tpu.memory_space<vmem>>, vector<16x1xf32>
    %228 = vector.broadcast %227 : vector<16x1xf32> to vector<16x256xf32>
    %229 = arith.addf %226, %228 : vector<16x256xf32>
    %cst_149 = arith.constant 0.000000e+00 : f32
    %230 = vector.broadcast %cst_149 : f32 to vector<16x256xf32>
    %231 = arith.maximumf %229, %230 : vector<16x256xf32>
    %c32_150 = arith.constant 32 : index
    %c0_151 = arith.constant 0 : index
    %232 = vector.load %arg12[%c32_150, %c0_151] : memref<48x256xf32, #tpu.memory_space<vmem>>, vector<16x256xf32>
    tpu.vector_store %arg12[%c32_150, %c0_151], %231 {strides = array<i32>} : memref<48x256xf32, #tpu.memory_space<vmem>>, vector<16x256xf32>,
    %c0_152 = arith.constant 0 : index
    %c0_153 = arith.constant 0 : index
    %233 = vector.load %arg12[%c0_152, %c0_153] : memref<48x256xf32, #tpu.memory_space<vmem>>, vector<48x256xf32>
    %234 = vector.extract_strided_slice %233 {offsets = [0, 239], sizes = [48, 17], strides = [1, 1]} : vector<48x256xf32> to vector<48x17xf32>
    %235 = vector.extract_strided_slice %233 {offsets = [0, 0], sizes = [48, 239], strides = [1, 1]} : vector<48x256xf32> to vector<48x239xf32>
    %236 = tpu.concatenate %234, %235 in 1 : vector<48x17xf32>, vector<48x239xf32> -> vector<48x256xf32>
    %c0_154 = arith.constant 0 : index
    %c0_155 = arith.constant 0 : index
    %237 = vector.load %arg3[%c0_154, %c0_155] : memref<9x256xf32, #tpu.memory_space<vmem>>, vector<1x256xf32>
    %238 = vector.broadcast %237 : vector<1x256xf32> to vector<48x256xf32>
    %239 = arith.mulf %236, %238 : vector<48x256xf32>
    %c0_156 = arith.constant 0 : index
    %c0_157 = arith.constant 0 : index
    %240 = vector.load %arg14[%c0_156, %c0_157] : memref<432x256xf32, #tpu.memory_space<vmem>>, vector<48x256xf32>
    tpu.vector_store %arg14[%c0_156, %c0_157], %239 {strides = array<i32>} : memref<432x256xf32, #tpu.memory_space<vmem>>, vector<48x256xf32>,
    %241 = vector.extract_strided_slice %233 {offsets = [0, 240], sizes = [48, 16], strides = [1, 1]} : vector<48x256xf32> to vector<48x16xf32>
    %242 = vector.extract_strided_slice %233 {offsets = [0, 0], sizes = [48, 240], strides = [1, 1]} : vector<48x256xf32> to vector<48x240xf32>
    %243 = tpu.concatenate %241, %242 in 1 : vector<48x16xf32>, vector<48x240xf32> -> vector<48x256xf32>
    %c1_158 = arith.constant 1 : index
    %c0_159 = arith.constant 0 : index
    %244 = vector.load %arg3[%c1_158, %c0_159] : memref<9x256xf32, #tpu.memory_space<vmem>>, vector<1x256xf32>
    %245 = vector.broadcast %244 : vector<1x256xf32> to vector<48x256xf32>
    %246 = arith.mulf %243, %245 : vector<48x256xf32>
    %c48_160 = arith.constant 48 : index
    %c0_161 = arith.constant 0 : index
    %247 = vector.load %arg14[%c48_160, %c0_161] : memref<432x256xf32, #tpu.memory_space<vmem>>, vector<48x256xf32>
    tpu.vector_store %arg14[%c48_160, %c0_161], %246 {strides = array<i32>} : memref<432x256xf32, #tpu.memory_space<vmem>>, vector<48x256xf32>,
    %248 = vector.extract_strided_slice %233 {offsets = [0, 241], sizes = [48, 15], strides = [1, 1]} : vector<48x256xf32> to vector<48x15xf32>
    %249 = vector.extract_strided_slice %233 {offsets = [0, 0], sizes = [48, 241], strides = [1, 1]} : vector<48x256xf32> to vector<48x241xf32>
    %250 = tpu.concatenate %248, %249 in 1 : vector<48x15xf32>, vector<48x241xf32> -> vector<48x256xf32>
    %c2_162 = arith.constant 2 : index
    %c0_163 = arith.constant 0 : index
    %251 = vector.load %arg3[%c2_162, %c0_163] : memref<9x256xf32, #tpu.memory_space<vmem>>, vector<1x256xf32>
    %252 = vector.broadcast %251 : vector<1x256xf32> to vector<48x256xf32>
    %253 = arith.mulf %250, %252 : vector<48x256xf32>
    %c96 = arith.constant 96 : index
    %c0_164 = arith.constant 0 : index
    %254 = vector.load %arg14[%c96, %c0_164] : memref<432x256xf32, #tpu.memory_space<vmem>>, vector<48x256xf32>
    tpu.vector_store %arg14[%c96, %c0_164], %253 {strides = array<i32>} : memref<432x256xf32, #tpu.memory_space<vmem>>, vector<48x256xf32>,
    %255 = vector.extract_strided_slice %233 {offsets = [0, 255], sizes = [48, 1], strides = [1, 1]} : vector<48x256xf32> to vector<48x1xf32>
    %256 = vector.extract_strided_slice %233 {offsets = [0, 0], sizes = [48, 255], strides = [1, 1]} : vector<48x256xf32> to vector<48x255xf32>
    %257 = tpu.concatenate %255, %256 in 1 : vector<48x1xf32>, vector<48x255xf32> -> vector<48x256xf32>
    %c3_165 = arith.constant 3 : index
    %c0_166 = arith.constant 0 : index
    %258 = vector.load %arg3[%c3_165, %c0_166] : memref<9x256xf32, #tpu.memory_space<vmem>>, vector<1x256xf32>
    %259 = vector.broadcast %258 : vector<1x256xf32> to vector<48x256xf32>
    %260 = arith.mulf %257, %259 : vector<48x256xf32>
    %c144 = arith.constant 144 : index
    %c0_167 = arith.constant 0 : index
    %261 = vector.load %arg14[%c144, %c0_167] : memref<432x256xf32, #tpu.memory_space<vmem>>, vector<48x256xf32>
    tpu.vector_store %arg14[%c144, %c0_167], %260 {strides = array<i32>} : memref<432x256xf32, #tpu.memory_space<vmem>>, vector<48x256xf32>,
    %c192 = arith.constant 192 : index
    %c0_168 = arith.constant 0 : index
    %262 = vector.load %arg14[%c192, %c0_168] : memref<432x256xf32, #tpu.memory_space<vmem>>, vector<48x256xf32>
    tpu.vector_store %arg14[%c192, %c0_168], %233 {strides = array<i32>} : memref<432x256xf32, #tpu.memory_space<vmem>>, vector<48x256xf32>,
    %263 = vector.extract_strided_slice %233 {offsets = [0, 1], sizes = [48, 255], strides = [1, 1]} : vector<48x256xf32> to vector<48x255xf32>
    %264 = vector.extract_strided_slice %233 {offsets = [0, 0], sizes = [48, 1], strides = [1, 1]} : vector<48x256xf32> to vector<48x1xf32>
    %265 = tpu.concatenate %263, %264 in 1 : vector<48x255xf32>, vector<48x1xf32> -> vector<48x256xf32>
    %c5_169 = arith.constant 5 : index
    %c0_170 = arith.constant 0 : index
    %266 = vector.load %arg3[%c5_169, %c0_170] : memref<9x256xf32, #tpu.memory_space<vmem>>, vector<1x256xf32>
    %267 = vector.broadcast %266 : vector<1x256xf32> to vector<48x256xf32>
    %268 = arith.mulf %265, %267 : vector<48x256xf32>
    %c240 = arith.constant 240 : index
    %c0_171 = arith.constant 0 : index
    %269 = vector.load %arg14[%c240, %c0_171] : memref<432x256xf32, #tpu.memory_space<vmem>>, vector<48x256xf32>
    tpu.vector_store %arg14[%c240, %c0_171], %268 {strides = array<i32>} : memref<432x256xf32, #tpu.memory_space<vmem>>, vector<48x256xf32>,
    %270 = vector.extract_strided_slice %233 {offsets = [0, 15], sizes = [48, 241], strides = [1, 1]} : vector<48x256xf32> to vector<48x241xf32>
    %271 = vector.extract_strided_slice %233 {offsets = [0, 0], sizes = [48, 15], strides = [1, 1]} : vector<48x256xf32> to vector<48x15xf32>
    %272 = tpu.concatenate %270, %271 in 1 : vector<48x241xf32>, vector<48x15xf32> -> vector<48x256xf32>
    %c6_172 = arith.constant 6 : index
    %c0_173 = arith.constant 0 : index
    %273 = vector.load %arg3[%c6_172, %c0_173] : memref<9x256xf32, #tpu.memory_space<vmem>>, vector<1x256xf32>
    %274 = vector.broadcast %273 : vector<1x256xf32> to vector<48x256xf32>
    %275 = arith.mulf %272, %274 : vector<48x256xf32>
    %c288 = arith.constant 288 : index
    %c0_174 = arith.constant 0 : index
    %276 = vector.load %arg14[%c288, %c0_174] : memref<432x256xf32, #tpu.memory_space<vmem>>, vector<48x256xf32>
    tpu.vector_store %arg14[%c288, %c0_174], %275 {strides = array<i32>} : memref<432x256xf32, #tpu.memory_space<vmem>>, vector<48x256xf32>,
    %277 = vector.extract_strided_slice %233 {offsets = [0, 16], sizes = [48, 240], strides = [1, 1]} : vector<48x256xf32> to vector<48x240xf32>
    %278 = vector.extract_strided_slice %233 {offsets = [0, 0], sizes = [48, 16], strides = [1, 1]} : vector<48x256xf32> to vector<48x16xf32>
    %279 = tpu.concatenate %277, %278 in 1 : vector<48x240xf32>, vector<48x16xf32> -> vector<48x256xf32>
    %c7_175 = arith.constant 7 : index
    %c0_176 = arith.constant 0 : index
    %280 = vector.load %arg3[%c7_175, %c0_176] : memref<9x256xf32, #tpu.memory_space<vmem>>, vector<1x256xf32>
    %281 = vector.broadcast %280 : vector<1x256xf32> to vector<48x256xf32>
    %282 = arith.mulf %279, %281 : vector<48x256xf32>
    %c336 = arith.constant 336 : index
    %c0_177 = arith.constant 0 : index
    %283 = vector.load %arg14[%c336, %c0_177] : memref<432x256xf32, #tpu.memory_space<vmem>>, vector<48x256xf32>
    tpu.vector_store %arg14[%c336, %c0_177], %282 {strides = array<i32>} : memref<432x256xf32, #tpu.memory_space<vmem>>, vector<48x256xf32>,
    %284 = vector.extract_strided_slice %233 {offsets = [0, 17], sizes = [48, 239], strides = [1, 1]} : vector<48x256xf32> to vector<48x239xf32>
    %285 = vector.extract_strided_slice %233 {offsets = [0, 0], sizes = [48, 17], strides = [1, 1]} : vector<48x256xf32> to vector<48x17xf32>
    %286 = tpu.concatenate %284, %285 in 1 : vector<48x239xf32>, vector<48x17xf32> -> vector<48x256xf32>
    %c8_178 = arith.constant 8 : index
    %c0_179 = arith.constant 0 : index
    %287 = vector.load %arg3[%c8_178, %c0_179] : memref<9x256xf32, #tpu.memory_space<vmem>>, vector<1x256xf32>
    %288 = vector.broadcast %287 : vector<1x256xf32> to vector<48x256xf32>
    %289 = arith.mulf %286, %288 : vector<48x256xf32>
    %c384 = arith.constant 384 : index
    %c0_180 = arith.constant 0 : index
    %290 = vector.load %arg14[%c384, %c0_180] : memref<432x256xf32, #tpu.memory_space<vmem>>, vector<48x256xf32>
    tpu.vector_store %arg14[%c384, %c0_180], %289 {strides = array<i32>} : memref<432x256xf32, #tpu.memory_space<vmem>>, vector<48x256xf32>,
    %c0_181 = arith.constant 0 : index
    %c0_182 = arith.constant 0 : index
    %291 = vector.load %arg6[%c0_181, %c0_182] : memref<16x432xf32, #tpu.memory_space<vmem>>, vector<16x432xf32>
    %c0_183 = arith.constant 0 : index
    %c0_184 = arith.constant 0 : index
    %292 = vector.load %arg14[%c0_183, %c0_184] : memref<432x256xf32, #tpu.memory_space<vmem>>, vector<432x256xf32>
    %cst_185 = arith.constant dense<0.000000e+00> : vector<16x256xf32>
    %293 = tpu.matmul %291, %292, %cst_185 {dimension_numbers = #tpu.dot_dimension_numbers<[1], [0], [0], [1], [0, 0, 1, 1], [], []>} : vector<16x432xf32>, vector<432x256xf32>, vector<16x256xf32> -> vector<16x256xf32>
    %c0_186 = arith.constant 0 : index
    %c0_187 = arith.constant 0 : index
    %294 = vector.load %arg7[%c0_186, %c0_187] : memref<16x1xf32, #tpu.memory_space<vmem>>, vector<16x1xf32>
    %295 = vector.broadcast %294 : vector<16x1xf32> to vector<16x256xf32>
    %296 = arith.addf %293, %295 : vector<16x256xf32>
    %c0_188 = arith.constant 0 : index
    %c0_189 = arith.constant 0 : index
    %297 = vector.load %arg13[%c0_188, %c0_189] : memref<16x256xf32, #tpu.memory_space<vmem>>, vector<16x256xf32>
    tpu.vector_store %arg13[%c0_188, %c0_189], %296 {strides = array<i32>} : memref<16x256xf32, #tpu.memory_space<vmem>>, vector<16x256xf32>,
    %c0_190 = arith.constant 0 : index
    %c0_191 = arith.constant 0 : index
    %298 = vector.load %arg13[%c0_190, %c0_191] : memref<16x256xf32, #tpu.memory_space<vmem>>, vector<16x256xf32>
    %299 = vector.extract_strided_slice %298 {offsets = [0, 239], sizes = [16, 17], strides = [1, 1]} : vector<16x256xf32> to vector<16x17xf32>
    %300 = vector.extract_strided_slice %298 {offsets = [0, 0], sizes = [16, 239], strides = [1, 1]} : vector<16x256xf32> to vector<16x239xf32>
    %301 = tpu.concatenate %299, %300 in 1 : vector<16x17xf32>, vector<16x239xf32> -> vector<16x256xf32>
    %c0_192 = arith.constant 0 : index
    %c0_193 = arith.constant 0 : index
    %302 = vector.load %arg3[%c0_192, %c0_193] : memref<9x256xf32, #tpu.memory_space<vmem>>, vector<1x256xf32>
    %303 = vector.broadcast %302 : vector<1x256xf32> to vector<16x256xf32>
    %304 = arith.mulf %301, %303 : vector<16x256xf32>
    %c0_194 = arith.constant 0 : index
    %c0_195 = arith.constant 0 : index
    %305 = vector.load %arg14[%c0_194, %c0_195] : memref<432x256xf32, #tpu.memory_space<vmem>>, vector<16x256xf32>
    tpu.vector_store %arg14[%c0_194, %c0_195], %304 {strides = array<i32>} : memref<432x256xf32, #tpu.memory_space<vmem>>, vector<16x256xf32>,
    %306 = vector.extract_strided_slice %298 {offsets = [0, 240], sizes = [16, 16], strides = [1, 1]} : vector<16x256xf32> to vector<16x16xf32>
    %307 = vector.extract_strided_slice %298 {offsets = [0, 0], sizes = [16, 240], strides = [1, 1]} : vector<16x256xf32> to vector<16x240xf32>
    %308 = tpu.concatenate %306, %307 in 1 : vector<16x16xf32>, vector<16x240xf32> -> vector<16x256xf32>
    %c1_196 = arith.constant 1 : index
    %c0_197 = arith.constant 0 : index
    %309 = vector.load %arg3[%c1_196, %c0_197] : memref<9x256xf32, #tpu.memory_space<vmem>>, vector<1x256xf32>
    %310 = vector.broadcast %309 : vector<1x256xf32> to vector<16x256xf32>
    %311 = arith.mulf %308, %310 : vector<16x256xf32>
    %c16_198 = arith.constant 16 : index
    %c0_199 = arith.constant 0 : index
    %312 = vector.load %arg14[%c16_198, %c0_199] : memref<432x256xf32, #tpu.memory_space<vmem>>, vector<16x256xf32>
    tpu.vector_store %arg14[%c16_198, %c0_199], %311 {strides = array<i32>} : memref<432x256xf32, #tpu.memory_space<vmem>>, vector<16x256xf32>,
    %313 = vector.extract_strided_slice %298 {offsets = [0, 241], sizes = [16, 15], strides = [1, 1]} : vector<16x256xf32> to vector<16x15xf32>
    %314 = vector.extract_strided_slice %298 {offsets = [0, 0], sizes = [16, 241], strides = [1, 1]} : vector<16x256xf32> to vector<16x241xf32>
    %315 = tpu.concatenate %313, %314 in 1 : vector<16x15xf32>, vector<16x241xf32> -> vector<16x256xf32>
    %c2_200 = arith.constant 2 : index
    %c0_201 = arith.constant 0 : index
    %316 = vector.load %arg3[%c2_200, %c0_201] : memref<9x256xf32, #tpu.memory_space<vmem>>, vector<1x256xf32>
    %317 = vector.broadcast %316 : vector<1x256xf32> to vector<16x256xf32>
    %318 = arith.mulf %315, %317 : vector<16x256xf32>
    %c32_202 = arith.constant 32 : index
    %c0_203 = arith.constant 0 : index
    %319 = vector.load %arg14[%c32_202, %c0_203] : memref<432x256xf32, #tpu.memory_space<vmem>>, vector<16x256xf32>
    tpu.vector_store %arg14[%c32_202, %c0_203], %318 {strides = array<i32>} : memref<432x256xf32, #tpu.memory_space<vmem>>, vector<16x256xf32>,
    %320 = vector.extract_strided_slice %298 {offsets = [0, 255], sizes = [16, 1], strides = [1, 1]} : vector<16x256xf32> to vector<16x1xf32>
    %321 = vector.extract_strided_slice %298 {offsets = [0, 0], sizes = [16, 255], strides = [1, 1]} : vector<16x256xf32> to vector<16x255xf32>
    %322 = tpu.concatenate %320, %321 in 1 : vector<16x1xf32>, vector<16x255xf32> -> vector<16x256xf32>
    %c3_204 = arith.constant 3 : index
    %c0_205 = arith.constant 0 : index
    %323 = vector.load %arg3[%c3_204, %c0_205] : memref<9x256xf32, #tpu.memory_space<vmem>>, vector<1x256xf32>
    %324 = vector.broadcast %323 : vector<1x256xf32> to vector<16x256xf32>
    %325 = arith.mulf %322, %324 : vector<16x256xf32>
    %c48_206 = arith.constant 48 : index
    %c0_207 = arith.constant 0 : index
    %326 = vector.load %arg14[%c48_206, %c0_207] : memref<432x256xf32, #tpu.memory_space<vmem>>, vector<16x256xf32>
    tpu.vector_store %arg14[%c48_206, %c0_207], %325 {strides = array<i32>} : memref<432x256xf32, #tpu.memory_space<vmem>>, vector<16x256xf32>,
    %c64_208 = arith.constant 64 : index
    %c0_209 = arith.constant 0 : index
    %327 = vector.load %arg14[%c64_208, %c0_209] : memref<432x256xf32, #tpu.memory_space<vmem>>, vector<16x256xf32>
    tpu.vector_store %arg14[%c64_208, %c0_209], %298 {strides = array<i32>} : memref<432x256xf32, #tpu.memory_space<vmem>>, vector<16x256xf32>,
    %328 = vector.extract_strided_slice %298 {offsets = [0, 1], sizes = [16, 255], strides = [1, 1]} : vector<16x256xf32> to vector<16x255xf32>
    %329 = vector.extract_strided_slice %298 {offsets = [0, 0], sizes = [16, 1], strides = [1, 1]} : vector<16x256xf32> to vector<16x1xf32>
    %330 = tpu.concatenate %328, %329 in 1 : vector<16x255xf32>, vector<16x1xf32> -> vector<16x256xf32>
    %c5_210 = arith.constant 5 : index
    %c0_211 = arith.constant 0 : index
    %331 = vector.load %arg3[%c5_210, %c0_211] : memref<9x256xf32, #tpu.memory_space<vmem>>, vector<1x256xf32>
    %332 = vector.broadcast %331 : vector<1x256xf32> to vector<16x256xf32>
    %333 = arith.mulf %330, %332 : vector<16x256xf32>
    %c80 = arith.constant 80 : index
    %c0_212 = arith.constant 0 : index
    %334 = vector.load %arg14[%c80, %c0_212] : memref<432x256xf32, #tpu.memory_space<vmem>>, vector<16x256xf32>
    tpu.vector_store %arg14[%c80, %c0_212], %333 {strides = array<i32>} : memref<432x256xf32, #tpu.memory_space<vmem>>, vector<16x256xf32>,
    %335 = vector.extract_strided_slice %298 {offsets = [0, 15], sizes = [16, 241], strides = [1, 1]} : vector<16x256xf32> to vector<16x241xf32>
    %336 = vector.extract_strided_slice %298 {offsets = [0, 0], sizes = [16, 15], strides = [1, 1]} : vector<16x256xf32> to vector<16x15xf32>
    %337 = tpu.concatenate %335, %336 in 1 : vector<16x241xf32>, vector<16x15xf32> -> vector<16x256xf32>
    %c6_213 = arith.constant 6 : index
    %c0_214 = arith.constant 0 : index
    %338 = vector.load %arg3[%c6_213, %c0_214] : memref<9x256xf32, #tpu.memory_space<vmem>>, vector<1x256xf32>
    %339 = vector.broadcast %338 : vector<1x256xf32> to vector<16x256xf32>
    %340 = arith.mulf %337, %339 : vector<16x256xf32>
    %c96_215 = arith.constant 96 : index
    %c0_216 = arith.constant 0 : index
    %341 = vector.load %arg14[%c96_215, %c0_216] : memref<432x256xf32, #tpu.memory_space<vmem>>, vector<16x256xf32>
    tpu.vector_store %arg14[%c96_215, %c0_216], %340 {strides = array<i32>} : memref<432x256xf32, #tpu.memory_space<vmem>>, vector<16x256xf32>,
    %342 = vector.extract_strided_slice %298 {offsets = [0, 16], sizes = [16, 240], strides = [1, 1]} : vector<16x256xf32> to vector<16x240xf32>
    %343 = vector.extract_strided_slice %298 {offsets = [0, 0], sizes = [16, 16], strides = [1, 1]} : vector<16x256xf32> to vector<16x16xf32>
    %344 = tpu.concatenate %342, %343 in 1 : vector<16x240xf32>, vector<16x16xf32> -> vector<16x256xf32>
    %c7_217 = arith.constant 7 : index
    %c0_218 = arith.constant 0 : index
    %345 = vector.load %arg3[%c7_217, %c0_218] : memref<9x256xf32, #tpu.memory_space<vmem>>, vector<1x256xf32>
    %346 = vector.broadcast %345 : vector<1x256xf32> to vector<16x256xf32>
    %347 = arith.mulf %344, %346 : vector<16x256xf32>
    %c112 = arith.constant 112 : index
    %c0_219 = arith.constant 0 : index
    %348 = vector.load %arg14[%c112, %c0_219] : memref<432x256xf32, #tpu.memory_space<vmem>>, vector<16x256xf32>
    tpu.vector_store %arg14[%c112, %c0_219], %347 {strides = array<i32>} : memref<432x256xf32, #tpu.memory_space<vmem>>, vector<16x256xf32>,
    %349 = vector.extract_strided_slice %298 {offsets = [0, 17], sizes = [16, 239], strides = [1, 1]} : vector<16x256xf32> to vector<16x239xf32>
    %350 = vector.extract_strided_slice %298 {offsets = [0, 0], sizes = [16, 17], strides = [1, 1]} : vector<16x256xf32> to vector<16x17xf32>
    %351 = tpu.concatenate %349, %350 in 1 : vector<16x239xf32>, vector<16x17xf32> -> vector<16x256xf32>
    %c8_220 = arith.constant 8 : index
    %c0_221 = arith.constant 0 : index
    %352 = vector.load %arg3[%c8_220, %c0_221] : memref<9x256xf32, #tpu.memory_space<vmem>>, vector<1x256xf32>
    %353 = vector.broadcast %352 : vector<1x256xf32> to vector<16x256xf32>
    %354 = arith.mulf %351, %353 : vector<16x256xf32>
    %c128 = arith.constant 128 : index
    %c0_222 = arith.constant 0 : index
    %355 = vector.load %arg14[%c128, %c0_222] : memref<432x256xf32, #tpu.memory_space<vmem>>, vector<16x256xf32>
    tpu.vector_store %arg14[%c128, %c0_222], %354 {strides = array<i32>} : memref<432x256xf32, #tpu.memory_space<vmem>>, vector<16x256xf32>,
    %c0_223 = arith.constant 0 : index
    %c0_224 = arith.constant 0 : index
    %356 = vector.load %arg8[%c0_223, %c0_224] : memref<3x144xf32, #tpu.memory_space<vmem>>, vector<3x144xf32>
    %c0_225 = arith.constant 0 : index
    %c0_226 = arith.constant 0 : index
    %357 = vector.load %arg14[%c0_225, %c0_226] : memref<432x256xf32, #tpu.memory_space<vmem>>, vector<144x256xf32>
    %cst_227 = arith.constant dense<0.000000e+00> : vector<3x256xf32>
    %358 = tpu.matmul %356, %357, %cst_227 {dimension_numbers = #tpu.dot_dimension_numbers<[1], [0], [0], [1], [0, 0, 1, 1], [], []>} : vector<3x144xf32>, vector<144x256xf32>, vector<3x256xf32> -> vector<3x256xf32>
    %c0_228 = arith.constant 0 : index
    %c0_229 = arith.constant 0 : index
    %359 = vector.load %arg9[%c0_228, %c0_229] : memref<3x1xf32, #tpu.memory_space<vmem>>, vector<3x1xf32>
    %360 = vector.broadcast %359 : vector<3x1xf32> to vector<3x256xf32>
    %361 = arith.addf %358, %360 : vector<3x256xf32>
    %cst_230 = arith.constant 0.000000e+00 : f32
    %362 = vector.broadcast %cst_230 : f32 to vector<3x256xf32>
    %363 = arith.maximumf %361, %362 : vector<3x256xf32>
    %c0_231 = arith.constant 0 : index
    %c0_232 = arith.constant 0 : index
    %c0_233 = arith.constant 0 : index
    %364 = vector.load %arg10[%c0_231, %c0_232, %c0_233] : memref<1x3x256xf32, #tpu.memory_space<vmem>>, vector<1x3x256xf32>
    %365 = vector.shape_cast %364 : vector<1x3x256xf32> to vector<3x256xf32>
    %366 = vector.shape_cast %363 : vector<3x256xf32> to vector<1x3x256xf32>
    tpu.vector_store %arg10[%c0_231, %c0_232, %c0_233], %366 {strides = array<i32>} : memref<1x3x256xf32, #tpu.memory_space<vmem>>, vector<1x3x256xf32>,
    return
  }
  func.func @transform_0(%arg0: i32) -> (i32, i32) {
    %c0_i32 = arith.constant 0 : i32
    %c0_i32_0 = arith.constant 0 : i32
    %c0_i32_1 = arith.constant 0 : i32
    return %c0_i32, %c0_i32_0 : i32, i32
  }
  func.func @transform_1(%arg0: i32) -> (i32, i32, i32) {
    %c0_i32 = arith.constant 0 : i32
    %c0_i32_0 = arith.constant 0 : i32
    %c0_i32_1 = arith.constant 0 : i32
    return %arg0, %c0_i32, %c0_i32_0 : i32, i32, i32
  }
  func.func @transform_2(%arg0: i32) -> (i32, i32) {
    %c0_i32 = arith.constant 0 : i32
    %c0_i32_0 = arith.constant 0 : i32
    %c0_i32_1 = arith.constant 0 : i32
    return %c0_i32, %c0_i32_0 : i32, i32
  }
  func.func @transform_3(%arg0: i32) -> (i32, i32) {
    %c0_i32 = arith.constant 0 : i32
    %c0_i32_0 = arith.constant 0 : i32
    %c0_i32_1 = arith.constant 0 : i32
    return %c0_i32, %c0_i32_0 : i32, i32
  }
  func.func @transform_4(%arg0: i32) -> (i32, i32) {
    %c0_i32 = arith.constant 0 : i32
    %c0_i32_0 = arith.constant 0 : i32
    %c0_i32_1 = arith.constant 0 : i32
    return %c0_i32, %c0_i32_0 : i32, i32
  }
  func.func @transform_5(%arg0: i32) -> (i32, i32) {
    %c0_i32 = arith.constant 0 : i32
    %c0_i32_0 = arith.constant 0 : i32
    %c0_i32_1 = arith.constant 0 : i32
    return %c0_i32, %c0_i32_0 : i32, i32
  }
  func.func @transform_6(%arg0: i32) -> (i32, i32) {
    %c0_i32 = arith.constant 0 : i32
    %c0_i32_0 = arith.constant 0 : i32
    %c0_i32_1 = arith.constant 0 : i32
    return %c0_i32, %c0_i32_0 : i32, i32
  }
  func.func @transform_7(%arg0: i32) -> (i32, i32) {
    %c0_i32 = arith.constant 0 : i32
    %c0_i32_0 = arith.constant 0 : i32
    %c0_i32_1 = arith.constant 0 : i32
    return %c0_i32, %c0_i32_0 : i32, i32
  }
  func.func @transform_8(%arg0: i32) -> (i32, i32) {
    %c0_i32 = arith.constant 0 : i32
    %c0_i32_0 = arith.constant 0 : i32
    %c0_i32_1 = arith.constant 0 : i32
    return %c0_i32, %c0_i32_0 : i32, i32
  }
  func.func @transform_9(%arg0: i32) -> (i32, i32, i32) {
    %c0_i32 = arith.constant 0 : i32
    %c0_i32_0 = arith.constant 0 : i32
    %c0_i32_1 = arith.constant 0 : i32
    return %arg0, %c0_i32, %c0_i32_0 : i32, i32, i32
  }
}

</mosaic_0001>

<llo_original>
// kernel: toy_hdr_forward.1
$region0: #{toy_hdr_forward.1}
  #allocation0 [shape = 'u32[]', space=smem, size = 0x4, offset = 0x4, fixed_abs, tag = 'smem constant byte address 0x4 - core index']
  #allocation1 [shape = 'u32[144,128]{1,0:T(1,128)}', space=vmem, size = 0x12000, scoped, tag = 'internal scratch']
  #allocation2 [shape = 'f32[8,256]{1,0:T(8,128)}', space=vmem, size = 0x2000, scoped, tag = 'scratch operand']
  #allocation3 [shape = 'f32[48,256]{1,0:T(8,128)}', space=vmem, size = 0xc000, scoped, tag = 'scratch operand']
  #allocation4 [shape = 'f32[16,256]{1,0:T(8,128)}', space=vmem, size = 0x4000, scoped, tag = 'scratch operand']
  #allocation5 [shape = 'f32[432,256]{1,0:T(8,128)}', space=vmem, size = 0x6c000, scoped, tag = 'scratch operand']
  %s0 = inlined_call_operand.vmem [shape: f32[2,3], index: 0, kind: input, shape index: {}]
  %s1 = inlined_call_operand.vmem [shape: f32[2,9,256], index: 1, kind: input, shape index: {}]
  %s2 = inlined_call_operand.vmem [shape: f32[9,256], index: 2, kind: input, shape index: {}]
  %s3 = inlined_call_operand.vmem [shape: f32[16,72], index: 3, kind: input, shape index: {}]
  %s4 = inlined_call_operand.vmem [shape: f32[16,1], index: 4, kind: input, shape index: {}]
  %s5 = inlined_call_operand.vmem [shape: f32[16,432], index: 5, kind: input, shape index: {}]
  %s6 = inlined_call_operand.vmem [shape: f32[16,1], index: 6, kind: input, shape index: {}]
  %s7 = inlined_call_operand.vmem [shape: f32[3,144], index: 7, kind: input, shape index: {}]
  %s8 = inlined_call_operand.vmem [shape: f32[3,1], index: 8, kind: input, shape index: {}]
  %s9 = inlined_call_operand.vmem [shape: f32[2,3,256], index: 9, kind: output, shape index: {}]
  %s10 = sld [smem:[#allocation0]]
  $region73: #{toy_hdr_forward.1} parent=0
    _
  %s12 = ssub.s32 1, %s10
  %s13 = scalar_select 0, %s12, %s10
  $region1: #{toy_hdr_forward.1} parent=0
    #allocation6 [shape = 'u8[1024]{0}', space=smem, size = 0x400, scoped, tag = 'input window, operand 0, single buffered']
    #allocation7 [shape = 's32[2]{0}', space=sflag, size = 0x8, scoped, tag = 'scoped memory for toy_hdr_forward.1']
    %14 = vsyncpa [#allocation7], 0
    loop: start=0, step=1, limit=4
    $region2: #{toy_hdr_forward.1} parent=1 // loop_pre_header
      _
    $region3: #{toy_hdr_forward.1} parent=1 // loop_header
      %s16 = sphi 0, %s20
      %p17 = scmp.ge.s32.totalorder %s16, 4
      %s24 = sphi 0, %s24
      %s26 = sphi 0, %s24
      %s27 = sphi 0, %s26
      %s41 = sphi 0, %s27
      %s47 = sphi 0, %s49
      %s50 = sphi 0, %s47
      %s51 = sphi 0, %s50
      %s67 = sphi 0, %s51
      %s71 = sphi 0, %s71
      %s73 = sphi 0, %s71
      %s74 = sphi 0, %s73
      %s88 = sphi 0, %s74
      %s92 = sphi 0, %s92
      %s94 = sphi 0, %s92
      %s95 = sphi 0, %s94
      %s109 = sphi 0, %s95
      %s113 = sphi 0, %s113
      %s115 = sphi 0, %s113
      %s116 = sphi 0, %s115
      %s130 = sphi 0, %s116
      %s134 = sphi 0, %s134
      %s136 = sphi 0, %s134
      %s137 = sphi 0, %s136
      %s151 = sphi 0, %s137
      %s155 = sphi 0, %s155
      %s157 = sphi 0, %s155
      %s158 = sphi 0, %s157
      %s172 = sphi 0, %s158
      %s176 = sphi 0, %s176
      %s178 = sphi 0, %s176
      %s179 = sphi 0, %s178
      %s193 = sphi 0, %s179
      %s197 = sphi 0, %s197
      %s199 = sphi 0, %s197
      %s200 = sphi 0, %s199
      %s214 = sphi 0, %s200
      %s220 = sphi 0, %s222
      %s223 = sphi 0, %s220
      %s224 = sphi 0, %s223
      %s240 = sphi 0, %s224
    $region4: #{toy_hdr_forward.1} parent=1 // loop_header_branch
      %19 = sbr.rel (%p17) target = $region8
    $region5: #{toy_hdr_forward.1} parent=1 // loop_body
      %s21 = ssub.s32 %s16, 1
      %s22 = ssub.s32 %s16, 2
      %s23 = sadd.s32 %s16, 1
      %s25 = sadd.s32 %s24, 1
      %p28 = scmp.eq.s32.totalorder %s16, 1
      %p29 = scmp.ne.s32.totalorder %s24, %s26
      %p30 = scmp.eq.s32.totalorder %s16, 0
      %p31 = por %p29, %p30
      %p32 = scmp.ne.s32.totalorder %s24, %s26
      %p33 = scmp.eq.s32.totalorder %s21, 1
      %p34 = por %p32, %p33
      %p35 = scmp.ne.s32.totalorder %s26, %s27
      %p36 = scmp.eq.s32.totalorder %s21, 0
      %p37 = por %p35, %p36
      %p38 = scmp.ne.s32.totalorder %s26, %s27
      %p39 = scmp.eq.s32.totalorder %s22, 1
      %p40 = por %p38, %p39
      %p42 = scmp.ne.s32.totalorder %s27, %s41
      %p43 = scmp.eq.s32.totalorder %s22, 0
      %p44 = por %p42, %p43
      %s45 = ssub.s32 %s16, %s23
      %p46 = scmp.eq.s32.totalorder %s45, 0
      %s48 = sadd.s32 %s47, 1
      %s49 = scalar_select %p46, %s47, %s48
      %p52 = pneg %p46
      %p53 = scmp.eq.s32.totalorder %s16, 1
      %p54 = por %p52, %p53
      %p55 = scmp.ne.s32.totalorder %s47, %s50
      %p56 = scmp.eq.s32.totalorder %s16, 0
      %p57 = por %p55, %p56
      %p58 = scmp.ne.s32.totalorder %s47, %s50
      %p59 = scmp.eq.s32.totalorder %s21, 1
      %p60 = por %p58, %p59
      %p61 = scmp.ne.s32.totalorder %s50, %s51
      %p62 = scmp.eq.s32.totalorder %s21, 0
      %p63 = por %p61, %p62
      %p64 = scmp.ne.s32.totalorder %s50, %s51
      %p65 = scmp.eq.s32.totalorder %s22, 1
      %p66 = por %p64, %p65
      %p68 = scmp.ne.s32.totalorder %s51, %s67
      %p69 = scmp.eq.s32.totalorder %s22, 0
      %p70 = por %p68, %p69
      %s72 = sadd.s32 %s71, 1
      %p75 = scmp.eq.s32.totalorder %s16, 1
      %p76 = scmp.ne.s32.totalorder %s71, %s73
      %p77 = scmp.eq.s32.totalorder %s16, 0
      %p78 = por %p76, %p77
      %p79 = scmp.ne.s32.totalorder %s71, %s73
      %p80 = scmp.eq.s32.totalorder %s21, 1
      %p81 = por %p79, %p80
      %p82 = scmp.ne.s32.totalorder %s73, %s74
      %p83 = scmp.eq.s32.totalorder %s21, 0
      %p84 = por %p82, %p83
      %p85 = scmp.ne.s32.totalorder %s73, %s74
      %p86 = scmp.eq.s32.totalorder %s22, 1
      %p87 = por %p85, %p86
      %p89 = scmp.ne.s32.totalorder %s74, %s88
      %p90 = scmp.eq.s32.totalorder %s22, 0
      %p91 = por %p89, %p90
      %s93 = sadd.s32 %s92, 1
      %p96 = scmp.eq.s32.totalorder %s16, 1
      %p97 = scmp.ne.s32.totalorder %s92, %s94
      %p98 = scmp.eq.s32.totalorder %s16, 0
      %p99 = por %p97, %p98
      %p100 = scmp.ne.s32.totalorder %s92, %s94
      %p101 = scmp.eq.s32.totalorder %s21, 1
      %p102 = por %p100, %p101
      %p103 = scmp.ne.s32.totalorder %s94, %s95
      %p104 = scmp.eq.s32.totalorder %s21, 0
      %p105 = por %p103, %p104
      %p106 = scmp.ne.s32.totalorder %s94, %s95
      %p107 = scmp.eq.s32.totalorder %s22, 1
      %p108 = por %p106, %p107
      %p110 = scmp.ne.s32.totalorder %s95, %s109
      %p111 = scmp.eq.s32.totalorder %s22, 0
      %p112 = por %p110, %p111
      %s114 = sadd.s32 %s113, 1
      %p117 = scmp.eq.s32.totalorder %s16, 1
      %p118 = scmp.ne.s32.totalorder %s113, %s115
      %p119 = scmp.eq.s32.totalorder %s16, 0
      %p120 = por %p118, %p119
      %p121 = scmp.ne.s32.totalorder %s113, %s115
      %p122 = scmp.eq.s32.totalorder %s21, 1
      %p123 = por %p121, %p122
      %p124 = scmp.ne.s32.totalorder %s115, %s116
      %p125 = scmp.eq.s32.totalorder %s21, 0
      %p126 = por %p124, %p125
      %p127 = scmp.ne.s32.totalorder %s115, %s116
      %p128 = scmp.eq.s32.totalorder %s22, 1
      %p129 = por %p127, %p128
      %p131 = scmp.ne.s32.totalorder %s116, %s130
      %p132 = scmp.eq.s32.totalorder %s22, 0
      %p133 = por %p131, %p132
      %s135 = sadd.s32 %s134, 1
      %p138 = scmp.eq.s32.totalorder %s16, 1
      %p139 = scmp.ne.s32.totalorder %s134, %s136
      %p140 = scmp.eq.s32.totalorder %s16, 0
      %p141 = por %p139, %p140
      %p142 = scmp.ne.s32.totalorder %s134, %s136
      %p143 = scmp.eq.s32.totalorder %s21, 1
      %p144 = por %p142, %p143
      %p145 = scmp.ne.s32.totalorder %s136, %s137
      %p146 = scmp.eq.s32.totalorder %s21, 0
      %p147 = por %p145, %p146
      %p148 = scmp.ne.s32.totalorder %s136, %s137
      %p149 = scmp.eq.s32.totalorder %s22, 1
      %p150 = por %p148, %p149
      %p152 = scmp.ne.s32.totalorder %s137, %s151
      %p153 = scmp.eq.s32.totalorder %s22, 0
      %p154 = por %p152, %p153
      %s156 = sadd.s32 %s155, 1
      %p159 = scmp.eq.s32.totalorder %s16, 1
      %p160 = scmp.ne.s32.totalorder %s155, %s157
      %p161 = scmp.eq.s32.totalorder %s16, 0
      %p162 = por %p160, %p161
      %p163 = scmp.ne.s32.totalorder %s155, %s157
      %p164 = scmp.eq.s32.totalorder %s21, 1
      %p165 = por %p163, %p164
      %p166 = scmp.ne.s32.totalorder %s157, %s158
      %p167 = scmp.eq.s32.totalorder %s21, 0
      %p168 = por %p166, %p167
      %p169 = scmp.ne.s32.totalorder %s157, %s158
      %p170 = scmp.eq.s32.totalorder %s22, 1
      %p171 = por %p169, %p170
      %p173 = scmp.ne.s32.totalorder %s158, %s172
      %p174 = scmp.eq.s32.totalorder %s22, 0
      %p175 = por %p173, %p174
      %s177 = sadd.s32 %s176, 1
      %p180 = scmp.eq.s32.totalorder %s16, 1
      %p181 = scmp.ne.s32.totalorder %s176, %s178
      %p182 = scmp.eq.s32.totalorder %s16, 0
      %p183 = por %p181, %p182
      %p184 = scmp.ne.s32.totalorder %s176, %s178
      %p185 = scmp.eq.s32.totalorder %s21, 1
      %p186 = por %p184, %p185
      %p187 = scmp.ne.s32.totalorder %s178, %s179
      %p188 = scmp.eq.s32.totalorder %s21, 0
      %p189 = por %p187, %p188
      %p190 = scmp.ne.s32.totalorder %s178, %s179
      %p191 = scmp.eq.s32.totalorder %s22, 1
      %p192 = por %p190, %p191
      %p194 = scmp.ne.s32.totalorder %s179, %s193
      %p195 = scmp.eq.s32.totalorder %s22, 0
      %p196 = por %p194, %p195
      %s198 = sadd.s32 %s197, 1
      %p201 = scmp.eq.s32.totalorder %s16, 1
      %p202 = scmp.ne.s32.totalorder %s197, %s199
      %p203 = scmp.eq.s32.totalorder %s16, 0
      %p204 = por %p202, %p203
      %p205 = scmp.ne.s32.totalorder %s197, %s199
      %p206 = scmp.eq.s32.totalorder %s21, 1
      %p207 = por %p205, %p206
      %p208 = scmp.ne.s32.totalorder %s199, %s200
      %p209 = scmp.eq.s32.totalorder %s21, 0
      %p210 = por %p208, %p209
      %p211 = scmp.ne.s32.totalorder %s199, %s200
      %p212 = scmp.eq.s32.totalorder %s22, 1
      %p213 = por %p211, %p212
      %p215 = scmp.ne.s32.totalorder %s200, %s214
      %p216 = scmp.eq.s32.totalorder %s22, 0
      %p217 = por %p215, %p216
      %s218 = ssub.s32 %s16, %s23
      %p219 = scmp.eq.s32.totalorder %s218, 0
      %s221 = sadd.s32 %s220, 1
      %s222 = scalar_select %p219, %s220, %s221
      %p225 = pneg %p219
      %p226 = scmp.eq.s32.totalorder %s16, 1
      %p227 = por %p225, %p226
      %p228 = scmp.ne.s32.totalorder %s220, %s223
      %p229 = scmp.eq.s32.totalorder %s16, 0
      %p230 = por %p228, %p229
      %p231 = scmp.ne.s32.totalorder %s220, %s223
      %p232 = scmp.eq.s32.totalorder %s21, 1
      %p233 = por %p231, %p232
      %p234 = scmp.ne.s32.totalorder %s223, %s224
      %p235 = scmp.eq.s32.totalorder %s21, 0
      %p236 = por %p234, %p235
      %p237 = scmp.ne.s32.totalorder %s223, %s224
      %p238 = scmp.eq.s32.totalorder %s22, 1
      %p239 = por %p237, %p238
      %p241 = scmp.ne.s32.totalorder %s224, %s240
      %p242 = scmp.eq.s32.totalorder %s22, 0
      %p243 = por %p241, %p242
      %p244 = scmp.le.s32.totalorder 1, %s16
      %p245 = scmp.lt.s32.totalorder %s16, 3
      %p246 = pnand %p244, %p245
      %p247 = pneg %p246
      // Predicated region
      $region9: #{toy_hdr_forward.1} parent=5 // pred_check
        _
      $region10: #{toy_hdr_forward.1} parent=5 // pred_check_branch
        %249 = sbr.rel (%p246) target = $region12
      $region11: #{toy_hdr_forward.1} parent=5 // pred_region
        %s250 = ssub.s32 %s16, 1
        // Predicated region
        $region13: #{toy_hdr_forward.1} parent=11 // pred_check
          %p251 = pneg %p37
        $region14: #{toy_hdr_forward.1} parent=11 // pred_check_branch
          %253 = sbr.rel (%p251) target = $region16
        $region15: #{toy_hdr_forward.1} parent=11 // pred_region
          %s255 = ssub.s32 32, 32
          %256 = vsyncadd [#allocation7], %s255
          %s258 = sshll.u32 %s0, 4
          %s259 = int_to_ptr.vmem [resolvable:$true] %s258
          %261 = dma.vmem_to_smem %s259, 32, [#allocation6], [#allocation7]
        $region16: #{toy_hdr_forward.1} parent=11 // pred_fallthru
          _
        // Predicated region
        $region17: #{toy_hdr_forward.1} parent=11 // pred_check
          %p262 = pneg %p84
        $region18: #{toy_hdr_forward.1} parent=11 // pred_check_branch
          %264 = sbr.rel (%p262) target = $region20
        $region19: #{toy_hdr_forward.1} parent=11 // pred_region
          _
        $region20: #{toy_hdr_forward.1} parent=11 // pred_fallthru
          _
        // Predicated region
        $region21: #{toy_hdr_forward.1} parent=11 // pred_check
          %p265 = pneg %p105
        $region22: #{toy_hdr_forward.1} parent=11 // pred_check_branch
          %267 = sbr.rel (%p265) target = $region24
        $region23: #{toy_hdr_forward.1} parent=11 // pred_region
          _
        $region24: #{toy_hdr_forward.1} parent=11 // pred_fallthru
          _
        // Predicated region
        $region25: #{toy_hdr_forward.1} parent=11 // pred_check
          %p268 = pneg %p126
        $region26: #{toy_hdr_forward.1} parent=11 // pred_check_branch
          %270 = sbr.rel (%p268) target = $region28
        $region27: #{toy_hdr_forward.1} parent=11 // pred_region
          _
        $region28: #{toy_hdr_forward.1} parent=11 // pred_fallthru
          _
        // Predicated region
        $region29: #{toy_hdr_forward.1} parent=11 // pred_check
          %p271 = pneg %p147
        $region30: #{toy_hdr_forward.1} parent=11 // pred_check_branch
          %273 = sbr.rel (%p271) target = $region32
        $region31: #{toy_hdr_forward.1} parent=11 // pred_region
          _
        $region32: #{toy_hdr_forward.1} parent=11 // pred_fallthru
          _
        // Predicated region
        $region33: #{toy_hdr_forward.1} parent=11 // pred_check
          %p274 = pneg %p168
        $region34: #{toy_hdr_forward.1} parent=11 // pred_check_branch
          %276 = sbr.rel (%p274) target = $region36
        $region35: #{toy_hdr_forward.1} parent=11 // pred_region
          _
        $region36: #{toy_hdr_forward.1} parent=11 // pred_fallthru
          _
        // Predicated region
        $region37: #{toy_hdr_forward.1} parent=11 // pred_check
          %p277 = pneg %p189
        $region38: #{toy_hdr_forward.1} parent=11 // pred_check_branch
          %279 = sbr.rel (%p277) target = $region40
        $region39: #{toy_hdr_forward.1} parent=11 // pred_region
          _
        $region40: #{toy_hdr_forward.1} parent=11 // pred_fallthru
          _
        // Predicated region
        $region41: #{toy_hdr_forward.1} parent=11 // pred_check
          %p280 = pneg %p210
        $region42: #{toy_hdr_forward.1} parent=11 // pred_check_branch
          %282 = sbr.rel (%p280) target = $region44
        $region43: #{toy_hdr_forward.1} parent=11 // pred_region
          _
        $region44: #{toy_hdr_forward.1} parent=11 // pred_fallthru
          _
      $region12: #{toy_hdr_forward.1} parent=5 // pred_fallthru
        _
      %p283 = scmp.lt.s32.totalorder %s16, 2
      // Predicated region
      $region45: #{toy_hdr_forward.1} parent=5 // pred_check
        %p284 = pneg %p283
      $region46: #{toy_hdr_forward.1} parent=5 // pred_check_branch
        %286 = sbr.rel (%p284) target = $region48
      $region47: #{toy_hdr_forward.1} parent=5 // pred_region
        // Predicated region
        $region49: #{toy_hdr_forward.1} parent=47 // pred_check
          %p287 = pneg %p57
        $region50: #{toy_hdr_forward.1} parent=47 // pred_check_branch
          %289 = sbr.rel (%p287) target = $region52
        $region51: #{toy_hdr_forward.1} parent=47 // pred_region
          %p290 = scmp.lt.s32.totalorder %s16, 1
          %s291 = scalar_select %p290, %s16, 1
          %s292 = smul.addr %s291, 4
          %s293 = smul.addr %s292, 8
          %s294 = scalar_lea.vmem %s1, %s293
        $region52: #{toy_hdr_forward.1} parent=47 // pred_fallthru
          _
      $region48: #{toy_hdr_forward.1} parent=5 // pred_fallthru
        _
      %p295 = scmp.le.s32.totalorder 1, %s16
      %p296 = scmp.lt.s32.totalorder %s16, 3
      %p297 = pnand %p295, %p296
      %p298 = pneg %p297
      // Predicated region
      $region53: #{toy_hdr_forward.1} parent=5 // pred_check
        _
      $region54: #{toy_hdr_forward.1} parent=5 // pred_check_branch
        %300 = sbr.rel (%p297) target = $region56
      $region55: #{toy_hdr_forward.1} parent=5 // pred_region
        %s301 = ssub.s32 %s16, 1
        // Predicated region
        $region57: #{toy_hdr_forward.1} parent=55 // pred_check
          %p302 = pneg %p37
        $region58: #{toy_hdr_forward.1} parent=55 // pred_check_branch
          %304 = sbr.rel (%p302) target = $region60
        $region59: #{toy_hdr_forward.1} parent=55 // pred_region
          %305 = dma.done [#allocation7], 32
        $region60: #{toy_hdr_forward.1} parent=55 // pred_fallthru
          _
        %306 = sfence
        %p307 = pneg %p37
        %p308 = pneg %p34
        %p309 = scmp.lt.s32.totalorder %s21, 1
        %s310 = scalar_select %p309, %s21, 1
        %s311 = smul.addr %s310, 4
        %s312 = smul.addr %s311, 8
        %s313 = scalar_lea.vmem %s1, %s312
        %p314 = pneg %p63
        %p315 = pneg %p60
        %p316 = pneg %p84
        %p317 = pneg %p81
        %p318 = pneg %p105
        %p319 = pneg %p102
        %p320 = pneg %p126
        %p321 = pneg %p123
        %p322 = pneg %p147
        %p323 = pneg %p144
        %p324 = pneg %p168
        %p325 = pneg %p165
        %p326 = pneg %p189
        %p327 = pneg %p186
        %p328 = pneg %p210
        %p329 = pneg %p207
        %p330 = pneg %p236
        %p331 = pneg %p233
        %p332 = scmp.lt.s32.totalorder %s21, 1
        %s333 = scalar_select %p332, %s21, 1
        %s334 = smul.addr %s333, 2
        %s335 = smul.addr %s334, 4
        %s336 = scalar_lea.vmem %s9, %s335
        %p337 = scmp.lt.s32.totalorder %s21, 1
        %s338 = scalar_select %p337, %s21, 1
        %s339 = smul.addr %s338, 4
        %s340 = smul.addr %s339, 8
        %s341 = scalar_lea.vmem %s1, %s340
        %p342 = scmp.lt.s32.totalorder %s21, 1
        %s343 = scalar_select %p342, %s21, 1
        %s344 = smul.addr %s343, 2
        %s345 = smul.addr %s344, 4
        %s346 = scalar_lea.vmem %s9, %s345
        %347 = vst [vmem:[#allocation2] sm:$0xc0] 0.0
        %348 = vst [vmem:[#allocation2 + $0x8] sm:$0xc0] 0.0
        %v349 = vld [vmem:[%s341] sm:$0x7]
        %v350 = vld [vmem:[%s341 + $0x8] sm:$0x7]
        %s351 = smul.u32 %s21, 128
        %s352 = sld [smem:[#allocation6 + %s351]]
        %353 = vst [vmem:[#allocation2] sm:$0x7] %v349
        %354 = vst [vmem:[#allocation2 + $0x8] sm:$0x7] %v350
        %v355 = vpow.f32 %v349, 2.2
        %v356 = vpow.f32 %v350, 2.2
        %v357 = vstv %s352
        %v358 = vmul.f32 %v355, %v357
        %v359 = vmul.f32 %v356, %v357
        %v362 = vrot.slane %v358, 5
        %v363 = vrot.slane %v359, 5
        %366 = vst [vmem:[#allocation2] sm:$0x38] %v362
        %367 = vst [vmem:[#allocation2 + $0x8] sm:$0x38] %v363
        %v368 = vld [vmem:[#allocation2] sm:$0xff]
        %v369 = vld [vmem:[#allocation2 + $0x8] sm:$0xff]
        %371 = vrot.lane.b32.xlu0 %v369, 17
        %v372 = vpop.permute.xlu0 %371
        %375 = vrot.lane.b32.xlu0 %v368, 17
        %v376 = vpop.permute.xlu0 %375
        %vm377 = vcmask 138240
        %v378 = vsel %vm377, %v376, %v372
        %v381 = vsel %vm377, %v372, %v376
        %v382 = vld [vmem:[%s2] ss:$8 sm:$0x3]
        %v384 = vlaneseq
        %v385 = vshrl.u32 %v384, 7
        %v386 = vsub.s32 0, %v385
        %v387 = vrot.slane %v382, %v386
        %v388 = vlaneseq
        %v389 = vshrl.u32 %v388, 7
        %v390 = vsub.s32 1, %v389
        %v391 = vrot.slane %v382, %v390
        %v394 = vmul.f32 %v381, %v387
        %v395 = vmul.f32 %v378, %v391
        %396 = vst [vmem:[#allocation5] sm:$0xff] %v394
        %397 = vst [vmem:[#allocation5 + $0x8] sm:$0xff] %v395
        %398 = vrot.lane.b32.xlu0 %v369, 16
        %v399 = vpop.permute.xlu0 %398
        %401 = vrot.lane.b32.xlu0 %v368, 16
        %v402 = vpop.permute.xlu0 %401
        %vm403 = vcmask 130048
        %v404 = vsel %vm403, %v402, %v399
        %v407 = vsel %vm403, %v399, %v402
        %s408 = scalar_lea.vmem %s2, 1
        %v409 = vld [vmem:[%s408] ss:$8 sm:$0x3]
        %v411 = vlaneseq
        %v412 = vshrl.u32 %v411, 7
        %v413 = vsub.s32 0, %v412
        %v414 = vrot.slane %v409, %v413
        %v415 = vlaneseq
        %v416 = vshrl.u32 %v415, 7
        %v417 = vsub.s32 1, %v416
        %v418 = vrot.slane %v409, %v417
        %v421 = vmul.f32 %v407, %v414
        %v422 = vmul.f32 %v404, %v418
        %423 = vst [vmem:[#allocation5 + $0x10] sm:$0xff] %v421
        %424 = vst [vmem:[#allocation5 + $0x18] sm:$0xff] %v422
        %425 = vrot.lane.b32.xlu0 %v369, 15
        %v426 = vpop.permute.xlu0 %425
        %428 = vrot.lane.b32.xlu0 %v368, 15
        %v429 = vpop.permute.xlu0 %428
        %vm430 = vcmask 121856
        %v431 = vsel %vm430, %v429, %v426
        %v434 = vsel %vm430, %v426, %v429
        %s435 = scalar_lea.vmem %s2, 2
        %v436 = vld [vmem:[%s435] ss:$8 sm:$0x3]
        %v438 = vlaneseq
        %v439 = vshrl.u32 %v438, 7
        %v440 = vsub.s32 0, %v439
        %v441 = vrot.slane %v436, %v440
        %v442 = vlaneseq
        %v443 = vshrl.u32 %v442, 7
        %v444 = vsub.s32 1, %v443
        %v445 = vrot.slane %v436, %v444
        %v448 = vmul.f32 %v434, %v441
        %v449 = vmul.f32 %v431, %v445
        %450 = vst [vmem:[#allocation5 + $0x20] sm:$0xff] %v448
        %451 = vst [vmem:[#allocation5 + $0x28] sm:$0xff] %v449
        %452 = vrot.lane.b32.xlu0 %v369, 1
        %v453 = vpop.permute.xlu0 %452
        %455 = vrot.lane.b32.xlu0 %v368, 1
        %v456 = vpop.permute.xlu0 %455
        %vm457 = vcmask 7168
        %v458 = vsel %vm457, %v456, %v453
        %v461 = vsel %vm457, %v453, %v456
        %s462 = scalar_lea.vmem %s2, 3
        %v463 = vld [vmem:[%s462] ss:$8 sm:$0x3]
        %v465 = vlaneseq
        %v466 = vshrl.u32 %v465, 7
        %v467 = vsub.s32 0, %v466
        %v468 = vrot.slane %v463, %v467
        %v469 = vlaneseq
        %v470 = vshrl.u32 %v469, 7
        %v471 = vsub.s32 1, %v470
        %v472 = vrot.slane %v463, %v471
        %v475 = vmul.f32 %v461, %v468
        %v476 = vmul.f32 %v458, %v472
        %477 = vst [vmem:[#allocation5 + $0x30] sm:$0xff] %v475
        %478 = vst [vmem:[#allocation5 + $0x38] sm:$0xff] %v476
        %479 = vst [vmem:[#allocation5 + $0x40] sm:$0xff] %v368
        %480 = vst [vmem:[#allocation5 + $0x48] sm:$0xff] %v369
        %481 = vrot.lane.b32.xlu0 %v368, 127
        %v482 = vpop.permute.xlu0 %481
        %483 = vrot.lane.b32.xlu0 %v369, 127
        %v484 = vpop.permute.xlu0 %483
        %vm485 = vcmask 1039360
        %v486 = vsel %vm485, %v482, %v484
        %v490 = vsel %vm485, %v484, %v482
        %s491 = scalar_lea.vmem %s2, 5
        %v492 = vld [vmem:[%s491] ss:$8 sm:$0x3]
        %v494 = vlaneseq
        %v495 = vshrl.u32 %v494, 7
        %v496 = vsub.s32 0, %v495
        %v497 = vrot.slane %v492, %v496
        %v498 = vlaneseq
        %v499 = vshrl.u32 %v498, 7
        %v500 = vsub.s32 1, %v499
        %v501 = vrot.slane %v492, %v500
        %v504 = vmul.f32 %v486, %v497
        %v505 = vmul.f32 %v490, %v501
        %506 = vst [vmem:[#allocation5 + $0x50] sm:$0xff] %v504
        %507 = vst [vmem:[#allocation5 + $0x58] sm:$0xff] %v505
        %508 = vrot.lane.b32.xlu0 %v368, 113
        %v509 = vpop.permute.xlu0 %508
        %510 = vrot.lane.b32.xlu0 %v369, 113
        %v511 = vpop.permute.xlu0 %510
        %vm512 = vcmask 924672
        %v513 = vsel %vm512, %v509, %v511
        %v517 = vsel %vm512, %v511, %v509
        %s518 = scalar_lea.vmem %s2, 6
        %v519 = vld [vmem:[%s518] ss:$8 sm:$0x3]
        %v521 = vlaneseq
        %v522 = vshrl.u32 %v521, 7
        %v523 = vsub.s32 0, %v522
        %v524 = vrot.slane %v519, %v523
        %v525 = vlaneseq
        %v526 = vshrl.u32 %v525, 7
        %v527 = vsub.s32 1, %v526
        %v528 = vrot.slane %v519, %v527
        %v531 = vmul.f32 %v513, %v524
        %v532 = vmul.f32 %v517, %v528
        %533 = vst [vmem:[#allocation5 + $0x60] sm:$0xff] %v531
        %534 = vst [vmem:[#allocation5 + $0x68] sm:$0xff] %v532
        %535 = vrot.lane.b32.xlu0 %v368, 112
        %v536 = vpop.permute.xlu0 %535
        %537 = vrot.lane.b32.xlu0 %v369, 112
        %v538 = vpop.permute.xlu0 %537
        %vm539 = vcmask 916480
        %v540 = vsel %vm539, %v536, %v538
        %v544 = vsel %vm539, %v538, %v536
        %s545 = scalar_lea.vmem %s2, 7
        %v546 = vld [vmem:[%s545] ss:$8 sm:$0x3]
        %v548 = vlaneseq
        %v549 = vshrl.u32 %v548, 7
        %v550 = vsub.s32 0, %v549
        %v551 = vrot.slane %v546, %v550
        %v552 = vlaneseq
        %v553 = vshrl.u32 %v552, 7
        %v554 = vsub.s32 1, %v553
        %v555 = vrot.slane %v546, %v554
        %v558 = vmul.f32 %v540, %v551
        %v559 = vmul.f32 %v544, %v555
        %560 = vst [vmem:[#allocation5 + $0x70] sm:$0xff] %v558
        %561 = vst [vmem:[#allocation5 + $0x78] sm:$0xff] %v559
        %562 = vrot.lane.b32.xlu0 %v368, 111
        %v563 = vpop.permute.xlu0 %562
        %564 = vrot.lane.b32.xlu0 %v369, 111
        %v565 = vpop.permute.xlu0 %564
        %vm566 = vcmask 908288
        %v567 = vsel %vm566, %v563, %v565
        %v571 = vsel %vm566, %v565, %v563
        %s572 = scalar_lea.vmem %s2, 16
        %v573 = vld [vmem:[%s572] ss:$8 sm:$0x3]
        %v575 = vlaneseq
        %v576 = vshrl.u32 %v575, 7
        %v577 = vsub.s32 0, %v576
        %v578 = vrot.slane %v573, %v577
        %v579 = vlaneseq
        %v580 = vshrl.u32 %v579, 7
        %v581 = vsub.s32 1, %v580
        %v582 = vrot.slane %v573, %v581
        %v585 = vmul.f32 %v567, %v578
        %v586 = vmul.f32 %v571, %v582
        %587 = vst [vmem:[#allocation5 + $0x80] sm:$0xff] %v585
        %588 = vst [vmem:[#allocation5 + $0x88] sm:$0xff] %v586
        %v589 = vld [vmem:[%s3] sm:$0xff]
        %v590 = vld [vmem:[%s3 + $0x8] sm:$0xff]
        %v591 = vld [vmem:[#allocation5] sm:$0xff]
        %v592 = vld [vmem:[#allocation5 + $0x8] sm:$0xff]
        %v593 = vld [vmem:[#allocation5 + $0x10] sm:$0xff]
        %v594 = vld [vmem:[#allocation5 + $0x18] sm:$0xff]
        %v595 = vld [vmem:[#allocation5 + $0x20] sm:$0xff]
        %v596 = vld [vmem:[#allocation5 + $0x28] sm:$0xff]
        %v597 = vld [vmem:[#allocation5 + $0x30] sm:$0xff]
        %v598 = vld [vmem:[#allocation5 + $0x38] sm:$0xff]
        %v599 = vld [vmem:[#allocation5 + $0x40] sm:$0xff]
        %v600 = vld [vmem:[#allocation5 + $0x48] sm:$0xff]
        %v601 = vld [vmem:[#allocation5 + $0x50] sm:$0xff]
        %v602 = vld [vmem:[#allocation5 + $0x58] sm:$0xff]
        %v603 = vld [vmem:[#allocation5 + $0x60] sm:$0xff]
        %v604 = vld [vmem:[#allocation5 + $0x68] sm:$0xff]
        %v605 = vld [vmem:[#allocation5 + $0x70] sm:$0xff]
        %v606 = vld [vmem:[#allocation5 + $0x78] sm:$0xff]
        %v607 = vld [vmem:[#allocation5 + $0x80] sm:$0xff]
        %v608 = vld [vmem:[#allocation5 + $0x88] sm:$0xff]
        %v609 = vld [vmem:[%s4] sm:$0xff]
        %v610 = vld [vmem:[%s4 + $0x8] sm:$0xff]
        %612 = vset.pattern.permute.xlu0 0
        %613 = vperm.xlu0 %612, %v609
        %v614 = vpop.permute.xlu0 %613
        %617 = vset.pattern.permute.xlu0 0
        %618 = vperm.xlu0 %617, %v610
        %v619 = vpop.permute.xlu0 %618
        %vm621 = vcmask 588800
        %v623 = vsel %vm621, %v589, 0
        %v626 = vsel %vm621, %v590, 0
        %628 = vmatprep.subr.mxu0 %v592
        %629 = vmatpush1.msra.mxu0 %v591
        %630 = vmatprep.subr.mxu0 %v594
        %631 = vmatpush1.msra.mxu0 %v593
        %632 = vmatprep.subr.mxu0 %v596
        %633 = vmatpush1.msra.mxu0 %v595
        %634 = vmatprep.subr.mxu0 %v598
        %635 = vmatpush1.msra.mxu0 %v597
        %636 = vmatprep.subr.mxu0 %v600
        %637 = vmatpush1.msra.mxu0 %v599
        %638 = vmatprep.subr.mxu0 %v602
        %639 = vmatpush1.msra.mxu0 %v601
        %640 = vmatprep.subr.mxu0 %v604
        %641 = vmatpush1.msra.mxu0 %v603
        %642 = vmatprep.subr.mxu0 %v606
        %643 = vmatpush1.msra.mxu0 %v605
        %644 = vmatprep.subr.mxu0 %v608
        %645 = vmatpush1.msra.mxu0 %v607
        %646 = vmatprep.subr.mxu0 0.0
        %647 = vmatpush1.msra.mxu0 0.0
        %648 = vmatprep.subr.mxu0 0.0
        %649 = vmatpush1.msra.mxu0 0.0
        %650 = vmatprep.subr.mxu0 0.0
        %651 = vmatpush1.msra.mxu0 0.0
        %652 = vmatprep.subr.mxu0 0.0
        %653 = vmatpush1.msra.mxu0 0.0
        %654 = vmatprep.subr.mxu0 0.0
        %655 = vmatpush1.msra.mxu0 0.0
        %656 = vmatprep.subr.mxu0 0.0
        %657 = vmatpush1.msra.mxu0 0.0
        %658 = vmatprep.subr.mxu0 0.0
        %659 = vmatpush1.msra.mxu0 0.0
        %660 = vmatprep.subr.mxu0 0.0
        %661 = vmatpush1.msra.mxu0 0.0
        %662 = vmatprep.subr.mxu0 0.0
        %663 = vmatpush1.msra.mxu0 0.0
        %664 = vmatprep.subr.mxu0 0.0
        %665 = vmatpush1.msra.mxu0 0.0
        %666 = vmatprep.subr.mxu0 0.0
        %667 = vmatpush1.msra.mxu0 0.0
        %668 = vmatprep.subr.mxu0 0.0
        %669 = vmatpush1.msra.mxu0 0.0
        %670 = vmatprep.subr.mxu0 0.0
        %671 = vmatpush1.msra.mxu0 0.0
        %672 = vmatprep.subr.mxu0 0.0
        %673 = vmatpush1.msra.mxu0 0.0
        %674 = vmatprep.subr.mxu0 0.0
        %675 = vmatpush1.msra.mxu0 0.0
        %676 = vmatprep.subr.mxu0 0.0
        %677 = vmatpush1.msra.mxu0 0.0
        %678 = vmatprep.subr.mxu0 0.0
        %679 = vmatpush1.msra.mxu0 0.0
        %680 = vmatprep.subr.mxu0 0.0
        %681 = vmatpush1.msra.mxu0 0.0
        %682 = vmatprep.subr.mxu0 0.0
        %683 = vmatpush1.msra.mxu0 0.0
        %684 = vmatprep.subr.mxu0 0.0
        %685 = vmatpush1.msra.mxu0 0.0
        %686 = vmatprep.subr.mxu0 0.0
        %687 = vmatpush1.msra.mxu0 0.0
        %688 = vmatprep.subr.mxu0 0.0
        %689 = vmatpush1.msra.mxu0 0.0
        %690 = vmatprep.subr.mxu0 0.0
        %691 = vmatpush1.msra.mxu0 0.0
        %692 = vmatprep.mubr.f32.mxu0 0.0
        %693 = vmatmul.mubr.f32.gmra.mrb[0].mxu0 %v623
        %v694 = vpop.f32.mrb[0].mxu0
        %v695 = vadd.f32 %v614, %v694
        %v696 = vpop.f32.mrb[0].mxu0
        %v697 = vadd.f32 %v614, %v696
        %698 = vmatprep.mubr.f32.mxu0 0.0
        %699 = vmatmul.mubr.f32.gmra.mrb[0].mxu0 %v626
        %v700 = vpop.f32.mrb[0].mxu0
        %v701 = vadd.f32 %v619, %v700
        %v702 = vpop.f32.mrb[0].mxu0
        %v703 = vadd.f32 %v619, %v702
        %704 = vdwg.mxu0
        %v705 = vmax.f32 %v695, 0.0
        %v706 = vmax.f32 %v697, 0.0
        %v707 = vmax.f32 %v701, 0.0
        %v708 = vmax.f32 %v703, 0.0
        %709 = vst [vmem:[#allocation3] sm:$0xff] %v705
        %710 = vst [vmem:[#allocation3 + $0x8] sm:$0xff] %v706
        %711 = vst [vmem:[#allocation3 + $0x10] sm:$0xff] %v707
        %712 = vst [vmem:[#allocation3 + $0x18] sm:$0xff] %v708
        %v713 = vld [vmem:[%s341] sm:$0x38]
        %v714 = vld [vmem:[%s341 + $0x8] sm:$0x38]
        %s715 = sadd.s32 %s351, 1
        %s716 = sld [smem:[#allocation6 + %s715]]
        %v719 = vrot.slane %v713, 3
        %v720 = vrot.slane %v714, 3
        %723 = vst [vmem:[#allocation2] sm:$0x7] %v719
        %724 = vst [vmem:[#allocation2 + $0x8] sm:$0x7] %v720
        %v725 = vpow.f32 %v713, 2.2
        %v726 = vpow.f32 %v714, 2.2
        %v727 = vstv %s716
        %v728 = vmul.f32 %v725, %v727
        %v729 = vmul.f32 %v726, %v727
        %730 = vst [vmem:[#allocation2] sm:$0x38] %v728
        %731 = vst [vmem:[#allocation2 + $0x8] sm:$0x38] %v729
        %v732 = vld [vmem:[#allocation2] sm:$0xff]
        %v733 = vld [vmem:[#allocation2 + $0x8] sm:$0xff]
        %735 = vrot.lane.b32.xlu0 %v733, 17
        %v736 = vpop.permute.xlu0 %735
        %739 = vrot.lane.b32.xlu0 %v732, 17
        %v740 = vpop.permute.xlu0 %739
        %v741 = vsel %vm377, %v740, %v736
        %v744 = vsel %vm377, %v736, %v740
        %v745 = vld [vmem:[%s2] ss:$8 sm:$0x3]
        %v747 = vlaneseq
        %v748 = vshrl.u32 %v747, 7
        %v749 = vsub.s32 0, %v748
        %v750 = vrot.slane %v745, %v749
        %v751 = vlaneseq
        %v752 = vshrl.u32 %v751, 7
        %v753 = vsub.s32 1, %v752
        %v754 = vrot.slane %v745, %v753
        %v757 = vmul.f32 %v744, %v750
        %v758 = vmul.f32 %v741, %v754
        %759 = vst [vmem:[#allocation5] sm:$0xff] %v757
        %760 = vst [vmem:[#allocation5 + $0x8] sm:$0xff] %v758
        %761 = vrot.lane.b32.xlu0 %v733, 16
        %v762 = vpop.permute.xlu0 %761
        %764 = vrot.lane.b32.xlu0 %v732, 16
        %v765 = vpop.permute.xlu0 %764
        %v766 = vsel %vm403, %v765, %v762
        %v769 = vsel %vm403, %v762, %v765
        %v770 = vld [vmem:[%s408] ss:$8 sm:$0x3]
        %v772 = vlaneseq
        %v773 = vshrl.u32 %v772, 7
        %v774 = vsub.s32 0, %v773
        %v775 = vrot.slane %v770, %v774
        %v776 = vlaneseq
        %v777 = vshrl.u32 %v776, 7
        %v778 = vsub.s32 1, %v777
        %v779 = vrot.slane %v770, %v778
        %v782 = vmul.f32 %v769, %v775
        %v783 = vmul.f32 %v766, %v779
        %784 = vst [vmem:[#allocation5 + $0x10] sm:$0xff] %v782
        %785 = vst [vmem:[#allocation5 + $0x18] sm:$0xff] %v783
        %786 = vrot.lane.b32.xlu0 %v733, 15
        %v787 = vpop.permute.xlu0 %786
        %789 = vrot.lane.b32.xlu0 %v732, 15
        %v790 = vpop.permute.xlu0 %789
        %v791 = vsel %vm430, %v790, %v787
        %v794 = vsel %vm430, %v787, %v790
        %v795 = vld [vmem:[%s435] ss:$8 sm:$0x3]
        %v797 = vlaneseq
        %v798 = vshrl.u32 %v797, 7
        %v799 = vsub.s32 0, %v798
        %v800 = vrot.slane %v795, %v799
        %v801 = vlaneseq
        %v802 = vshrl.u32 %v801, 7
        %v803 = vsub.s32 1, %v802
        %v804 = vrot.slane %v795, %v803
        %v807 = vmul.f32 %v794, %v800
        %v808 = vmul.f32 %v791, %v804
        %809 = vst [vmem:[#allocation5 + $0x20] sm:$0xff] %v807
        %810 = vst [vmem:[#allocation5 + $0x28] sm:$0xff] %v808
        %811 = vrot.lane.b32.xlu0 %v733, 1
        %v812 = vpop.permute.xlu0 %811
        %814 = vrot.lane.b32.xlu0 %v732, 1
        %v815 = vpop.permute.xlu0 %814
        %v816 = vsel %vm457, %v815, %v812
        %v819 = vsel %vm457, %v812, %v815
        %v820 = vld [vmem:[%s462] ss:$8 sm:$0x3]
        %v822 = vlaneseq
        %v823 = vshrl.u32 %v822, 7
        %v824 = vsub.s32 0, %v823
        %v825 = vrot.slane %v820, %v824
        %v826 = vlaneseq
        %v827 = vshrl.u32 %v826, 7
        %v828 = vsub.s32 1, %v827
        %v829 = vrot.slane %v820, %v828
        %v832 = vmul.f32 %v819, %v825
        %v833 = vmul.f32 %v816, %v829
        %834 = vst [vmem:[#allocation5 + $0x30] sm:$0xff] %v832
        %835 = vst [vmem:[#allocation5 + $0x38] sm:$0xff] %v833
        %836 = vst [vmem:[#allocation5 + $0x40] sm:$0xff] %v732
        %837 = vst [vmem:[#allocation5 + $0x48] sm:$0xff] %v733
        %838 = vrot.lane.b32.xlu0 %v732, 127
        %v839 = vpop.permute.xlu0 %838
        %840 = vrot.lane.b32.xlu0 %v733, 127
        %v841 = vpop.permute.xlu0 %840
        %v842 = vsel %vm485, %v839, %v841
        %v846 = vsel %vm485, %v841, %v839
        %v847 = vld [vmem:[%s491] ss:$8 sm:$0x3]
        %v849 = vlaneseq
        %v850 = vshrl.u32 %v849, 7
        %v851 = vsub.s32 0, %v850
        %v852 = vrot.slane %v847, %v851
        %v853 = vlaneseq
        %v854 = vshrl.u32 %v853, 7
        %v855 = vsub.s32 1, %v854
        %v856 = vrot.slane %v847, %v855
        %v859 = vmul.f32 %v842, %v852
        %v860 = vmul.f32 %v846, %v856
        %861 = vst [vmem:[#allocation5 + $0x50] sm:$0xff] %v859
        %862 = vst [vmem:[#allocation5 + $0x58] sm:$0xff] %v860
        %863 = vrot.lane.b32.xlu0 %v732, 113
        %v864 = vpop.permute.xlu0 %863
        %865 = vrot.lane.b32.xlu0 %v733, 113
        %v866 = vpop.permute.xlu0 %865
        %v867 = vsel %vm512, %v864, %v866
        %v871 = vsel %vm512, %v866, %v864
        %v872 = vld [vmem:[%s518] ss:$8 sm:$0x3]
        %v874 = vlaneseq
        %v875 = vshrl.u32 %v874, 7
        %v876 = vsub.s32 0, %v875
        %v877 = vrot.slane %v872, %v876
        %v878 = vlaneseq
        %v879 = vshrl.u32 %v878, 7
        %v880 = vsub.s32 1, %v879
        %v881 = vrot.slane %v872, %v880
        %v884 = vmul.f32 %v867, %v877
        %v885 = vmul.f32 %v871, %v881
        %886 = vst [vmem:[#allocation5 + $0x60] sm:$0xff] %v884
        %887 = vst [vmem:[#allocation5 + $0x68] sm:$0xff] %v885
        %888 = vrot.lane.b32.xlu0 %v732, 112
        %v889 = vpop.permute.xlu0 %888
        %890 = vrot.lane.b32.xlu0 %v733, 112
        %v891 = vpop.permute.xlu0 %890
        %v892 = vsel %vm539, %v889, %v891
        %v896 = vsel %vm539, %v891, %v889
        %v897 = vld [vmem:[%s545] ss:$8 sm:$0x3]
        %v899 = vlaneseq
        %v900 = vshrl.u32 %v899, 7
        %v901 = vsub.s32 0, %v900
        %v902 = vrot.slane %v897, %v901
        %v903 = vlaneseq
        %v904 = vshrl.u32 %v903, 7
        %v905 = vsub.s32 1, %v904
        %v906 = vrot.slane %v897, %v905
        %v909 = vmul.f32 %v892, %v902
        %v910 = vmul.f32 %v896, %v906
        %911 = vst [vmem:[#allocation5 + $0x70] sm:$0xff] %v909
        %912 = vst [vmem:[#allocation5 + $0x78] sm:$0xff] %v910
        %913 = vrot.lane.b32.xlu0 %v732, 111
        %v914 = vpop.permute.xlu0 %913
        %915 = vrot.lane.b32.xlu0 %v733, 111
        %v916 = vpop.permute.xlu0 %915
        %v917 = vsel %vm566, %v914, %v916
        %v921 = vsel %vm566, %v916, %v914
        %v922 = vld [vmem:[%s572] ss:$8 sm:$0x3]
        %v924 = vlaneseq
        %v925 = vshrl.u32 %v924, 7
        %v926 = vsub.s32 0, %v925
        %v927 = vrot.slane %v922, %v926
        %v928 = vlaneseq
        %v929 = vshrl.u32 %v928, 7
        %v930 = vsub.s32 1, %v929
        %v931 = vrot.slane %v922, %v930
        %v934 = vmul.f32 %v917, %v927
        %v935 = vmul.f32 %v921, %v931
        %936 = vst [vmem:[#allocation5 + $0x80] sm:$0xff] %v934
        %937 = vst [vmem:[#allocation5 + $0x88] sm:$0xff] %v935
        %v938 = vld [vmem:[%s3] sm:$0xff]
        %v939 = vld [vmem:[%s3 + $0x8] sm:$0xff]
        %v940 = vld [vmem:[#allocation5] sm:$0xff]
        %v941 = vld [vmem:[#allocation5 + $0x8] sm:$0xff]
        %v942 = vld [vmem:[#allocation5 + $0x10] sm:$0xff]
        %v943 = vld [vmem:[#allocation5 + $0x18] sm:$0xff]
        %v944 = vld [vmem:[#allocation5 + $0x20] sm:$0xff]
        %v945 = vld [vmem:[#allocation5 + $0x28] sm:$0xff]
        %v946 = vld [vmem:[#allocation5 + $0x30] sm:$0xff]
        %v947 = vld [vmem:[#allocation5 + $0x38] sm:$0xff]
        %v948 = vld [vmem:[#allocation5 + $0x40] sm:$0xff]
        %v949 = vld [vmem:[#allocation5 + $0x48] sm:$0xff]
        %v950 = vld [vmem:[#allocation5 + $0x50] sm:$0xff]
        %v951 = vld [vmem:[#allocation5 + $0x58] sm:$0xff]
        %v952 = vld [vmem:[#allocation5 + $0x60] sm:$0xff]
        %v953 = vld [vmem:[#allocation5 + $0x68] sm:$0xff]
        %v954 = vld [vmem:[#allocation5 + $0x70] sm:$0xff]
        %v955 = vld [vmem:[#allocation5 + $0x78] sm:$0xff]
        %v956 = vld [vmem:[#allocation5 + $0x80] sm:$0xff]
        %v957 = vld [vmem:[#allocation5 + $0x88] sm:$0xff]
        %v958 = vld [vmem:[%s4] sm:$0xff]
        %v959 = vld [vmem:[%s4 + $0x8] sm:$0xff]
        %961 = vset.pattern.permute.xlu0 0
        %962 = vperm.xlu0 %961, %v958
        %v963 = vpop.permute.xlu0 %962
        %966 = vset.pattern.permute.xlu0 0
        %967 = vperm.xlu0 %966, %v959
        %v968 = vpop.permute.xlu0 %967
        %v971 = vsel %vm621, %v938, 0
        %v974 = vsel %vm621, %v939, 0
        %976 = vmatprep.subr.mxu0 %v941
        %977 = vmatpush1.msra.mxu0 %v940
        %978 = vmatprep.subr.mxu0 %v943
        %979 = vmatpush1.msra.mxu0 %v942
        %980 = vmatprep.subr.mxu0 %v945
        %981 = vmatpush1.msra.mxu0 %v944
        %982 = vmatprep.subr.mxu0 %v947
        %983 = vmatpush1.msra.mxu0 %v946
        %984 = vmatprep.subr.mxu0 %v949
        %985 = vmatpush1.msra.mxu0 %v948
        %986 = vmatprep.subr.mxu0 %v951
        %987 = vmatpush1.msra.mxu0 %v950
        %988 = vmatprep.subr.mxu0 %v953
        %989 = vmatpush1.msra.mxu0 %v952
        %990 = vmatprep.subr.mxu0 %v955
        %991 = vmatpush1.msra.mxu0 %v954
        %992 = vmatprep.subr.mxu0 %v957
        %993 = vmatpush1.msra.mxu0 %v956
        %994 = vmatprep.subr.mxu0 0.0
        %995 = vmatpush1.msra.mxu0 0.0
        %996 = vmatprep.subr.mxu0 0.0
        %997 = vmatpush1.msra.mxu0 0.0
        %998 = vmatprep.subr.mxu0 0.0
        %999 = vmatpush1.msra.mxu0 0.0
        %1000 = vmatprep.subr.mxu0 0.0
        %1001 = vmatpush1.msra.mxu0 0.0
        %1002 = vmatprep.subr.mxu0 0.0
        %1003 = vmatpush1.msra.mxu0 0.0
        %1004 = vmatprep.subr.mxu0 0.0
        %1005 = vmatpush1.msra.mxu0 0.0
        %1006 = vmatprep.subr.mxu0 0.0
        %1007 = vmatpush1.msra.mxu0 0.0
        %1008 = vmatprep.subr.mxu0 0.0
        %1009 = vmatpush1.msra.mxu0 0.0
        %1010 = vmatprep.subr.mxu0 0.0
        %1011 = vmatpush1.msra.mxu0 0.0
        %1012 = vmatprep.subr.mxu0 0.0
        %1013 = vmatpush1.msra.mxu0 0.0
        %1014 = vmatprep.subr.mxu0 0.0
        %1015 = vmatpush1.msra.mxu0 0.0
        %1016 = vmatprep.subr.mxu0 0.0
        %1017 = vmatpush1.msra.mxu0 0.0
        %1018 = vmatprep.subr.mxu0 0.0
        %1019 = vmatpush1.msra.mxu0 0.0
        %1020 = vmatprep.subr.mxu0 0.0
        %1021 = vmatpush1.msra.mxu0 0.0
        %1022 = vmatprep.subr.mxu0 0.0
        %1023 = vmatpush1.msra.mxu0 0.0
        %1024 = vmatprep.subr.mxu0 0.0
        %1025 = vmatpush1.msra.mxu0 0.0
        %1026 = vmatprep.subr.mxu0 0.0
        %1027 = vmatpush1.msra.mxu0 0.0
        %1028 = vmatprep.subr.mxu0 0.0
        %1029 = vmatpush1.msra.mxu0 0.0
        %1030 = vmatprep.subr.mxu0 0.0
        %1031 = vmatpush1.msra.mxu0 0.0
        %1032 = vmatprep.subr.mxu0 0.0
        %1033 = vmatpush1.msra.mxu0 0.0
        %1034 = vmatprep.subr.mxu0 0.0
        %1035 = vmatpush1.msra.mxu0 0.0
        %1036 = vmatprep.subr.mxu0 0.0
        %1037 = vmatpush1.msra.mxu0 0.0
        %1038 = vmatprep.subr.mxu0 0.0
        %1039 = vmatpush1.msra.mxu0 0.0
        %1040 = vmatprep.mubr.f32.mxu0 0.0
        %1041 = vmatmul.mubr.f32.gmra.mrb[0].mxu0 %v971
        %v1042 = vpop.f32.mrb[0].mxu0
        %v1043 = vadd.f32 %v963, %v1042
        %v1044 = vpop.f32.mrb[0].mxu0
        %v1045 = vadd.f32 %v963, %v1044
        %1046 = vmatprep.mubr.f32.mxu0 0.0
        %1047 = vmatmul.mubr.f32.gmra.mrb[0].mxu0 %v974
        %v1048 = vpop.f32.mrb[0].mxu0
        %v1049 = vadd.f32 %v968, %v1048
        %v1050 = vpop.f32.mrb[0].mxu0
        %v1051 = vadd.f32 %v968, %v1050
        %1052 = vdwg.mxu0
        %v1053 = vmax.f32 %v1043, 0.0
        %v1054 = vmax.f32 %v1045, 0.0
        %v1055 = vmax.f32 %v1049, 0.0
        %v1056 = vmax.f32 %v1051, 0.0
        %1057 = vst [vmem:[#allocation3 + $0x20] sm:$0xff] %v1053
        %1058 = vst [vmem:[#allocation3 + $0x28] sm:$0xff] %v1054
        %1059 = vst [vmem:[#allocation3 + $0x30] sm:$0xff] %v1055
        %1060 = vst [vmem:[#allocation3 + $0x38] sm:$0xff] %v1056
        %v1061 = vld [vmem:[%s341] sm:$0xc0]
        %v1062 = vld [vmem:[%s341 + $0x8] sm:$0xc0]
        %v1063 = vld [vmem:[%s341 + $0x10] sm:$0x1]
        %v1064 = vld [vmem:[%s341 + $0x18] sm:$0x1]
        %s1065 = sadd.s32 %s351, 2
        %s1066 = sld [smem:[#allocation6 + %s1065]]
        %vm1071 = vcmask 1041408
        %v1072 = vrot.slane %v1061, 6
        %v1073 = vrot.slane %v1063, 6
        %v1074 = vsel %vm1071, %v1072, %v1073
        %v1075 = vrot.slane %v1062, 6
        %v1076 = vrot.slane %v1064, 6
        %v1077 = vsel %vm1071, %v1075, %v1076
        %1080 = vst [vmem:[#allocation2] sm:$0x7] %v1074
        %1081 = vst [vmem:[#allocation2 + $0x8] sm:$0x7] %v1077
        %v1082 = vpow.f32 %v1061, 2.2
        %v1083 = vpow.f32 %v1062, 2.2
        %v1084 = vpow.f32 %v1063, 2.2
        %v1085 = vpow.f32 %v1064, 2.2
        %v1086 = vstv %s1066
        %v1087 = vmul.f32 %v1082, %v1086
        %v1088 = vmul.f32 %v1083, %v1086
        %v1089 = vmul.f32 %v1084, %v1086
        %v1090 = vmul.f32 %v1085, %v1086
        %vm1095 = vcmask 1044480
        %v1096 = vrot.slane %v1087, 3
        %v1097 = vrot.slane %v1089, 3
        %v1098 = vsel %vm1095, %v1096, %v1097
        %v1099 = vrot.slane %v1088, 3
        %v1100 = vrot.slane %v1090, 3
        %v1101 = vsel %vm1095, %v1099, %v1100
        %1104 = vst [vmem:[#allocation2] sm:$0x38] %v1098
        %1105 = vst [vmem:[#allocation2 + $0x8] sm:$0x38] %v1101
        %v1106 = vld [vmem:[#allocation2] sm:$0xff]
        %v1107 = vld [vmem:[#allocation2 + $0x8] sm:$0xff]
        %1109 = vrot.lane.b32.xlu0 %v1107, 17
        %v1110 = vpop.permute.xlu0 %1109
        %1113 = vrot.lane.b32.xlu0 %v1106, 17
        %v1114 = vpop.permute.xlu0 %1113
        %v1115 = vsel %vm377, %v1114, %v1110
        %v1118 = vsel %vm377, %v1110, %v1114
        %v1119 = vld [vmem:[%s2] ss:$8 sm:$0x3]
        %v1121 = vlaneseq
        %v1122 = vshrl.u32 %v1121, 7
        %v1123 = vsub.s32 0, %v1122
        %v1124 = vrot.slane %v1119, %v1123
        %v1125 = vlaneseq
        %v1126 = vshrl.u32 %v1125, 7
        %v1127 = vsub.s32 1, %v1126
        %v1128 = vrot.slane %v1119, %v1127
        %v1131 = vmul.f32 %v1118, %v1124
        %v1132 = vmul.f32 %v1115, %v1128
        %1133 = vst [vmem:[#allocation5] sm:$0xff] %v1131
        %1134 = vst [vmem:[#allocation5 + $0x8] sm:$0xff] %v1132
        %1135 = vrot.lane.b32.xlu0 %v1107, 16
        %v1136 = vpop.permute.xlu0 %1135
        %1138 = vrot.lane.b32.xlu0 %v1106, 16
        %v1139 = vpop.permute.xlu0 %1138
        %v1140 = vsel %vm403, %v1139, %v1136
        %v1143 = vsel %vm403, %v1136, %v1139
        %v1144 = vld [vmem:[%s408] ss:$8 sm:$0x3]
        %v1146 = vlaneseq
        %v1147 = vshrl.u32 %v1146, 7
        %v1148 = vsub.s32 0, %v1147
        %v1149 = vrot.slane %v1144, %v1148
        %v1150 = vlaneseq
        %v1151 = vshrl.u32 %v1150, 7
        %v1152 = vsub.s32 1, %v1151
        %v1153 = vrot.slane %v1144, %v1152
        %v1156 = vmul.f32 %v1143, %v1149
        %v1157 = vmul.f32 %v1140, %v1153
        %1158 = vst [vmem:[#allocation5 + $0x10] sm:$0xff] %v1156
        %1159 = vst [vmem:[#allocation5 + $0x18] sm:$0xff] %v1157
        %1160 = vrot.lane.b32.xlu0 %v1107, 15
        %v1161 = vpop.permute.xlu0 %1160
        %1163 = vrot.lane.b32.xlu0 %v1106, 15
        %v1164 = vpop.permute.xlu0 %1163
        %v1165 = vsel %vm430, %v1164, %v1161
        %v1168 = vsel %vm430, %v1161, %v1164
        %v1169 = vld [vmem:[%s435] ss:$8 sm:$0x3]
        %v1171 = vlaneseq
        %v1172 = vshrl.u32 %v1171, 7
        %v1173 = vsub.s32 0, %v1172
        %v1174 = vrot.slane %v1169, %v1173
        %v1175 = vlaneseq
        %v1176 = vshrl.u32 %v1175, 7
        %v1177 = vsub.s32 1, %v1176
        %v1178 = vrot.slane %v1169, %v1177
        %v1181 = vmul.f32 %v1168, %v1174
        %v1182 = vmul.f32 %v1165, %v1178
        %1183 = vst [vmem:[#allocation5 + $0x20] sm:$0xff] %v1181
        %1184 = vst [vmem:[#allocation5 + $0x28] sm:$0xff] %v1182
        %1185 = vrot.lane.b32.xlu0 %v1107, 1
        %v1186 = vpop.permute.xlu0 %1185
        %1188 = vrot.lane.b32.xlu0 %v1106, 1
        %v1189 = vpop.permute.xlu0 %1188
        %v1190 = vsel %vm457, %v1189, %v1186
        %v1193 = vsel %vm457, %v1186, %v1189
        %v1194 = vld [vmem:[%s462] ss:$8 sm:$0x3]
        %v1196 = vlaneseq
        %v1197 = vshrl.u32 %v1196, 7
        %v1198 = vsub.s32 0, %v1197
        %v1199 = vrot.slane %v1194, %v1198
        %v1200 = vlaneseq
        %v1201 = vshrl.u32 %v1200, 7
        %v1202 = vsub.s32 1, %v1201
        %v1203 = vrot.slane %v1194, %v1202
        %v1206 = vmul.f32 %v1193, %v1199
        %v1207 = vmul.f32 %v1190, %v1203
        %1208 = vst [vmem:[#allocation5 + $0x30] sm:$0xff] %v1206
        %1209 = vst [vmem:[#allocation5 + $0x38] sm:$0xff] %v1207
        %1210 = vst [vmem:[#allocation5 + $0x40] sm:$0xff] %v1106
        %1211 = vst [vmem:[#allocation5 + $0x48] sm:$0xff] %v1107
        %1212 = vrot.lane.b32.xlu0 %v1106, 127
        %v1213 = vpop.permute.xlu0 %1212
        %1214 = vrot.lane.b32.xlu0 %v1107, 127
        %v1215 = vpop.permute.xlu0 %1214
        %v1216 = vsel %vm485, %v1213, %v1215
        %v1220 = vsel %vm485, %v1215, %v1213
        %v1221 = vld [vmem:[%s491] ss:$8 sm:$0x3]
        %v1223 = vlaneseq
        %v1224 = vshrl.u32 %v1223, 7
        %v1225 = vsub.s32 0, %v1224
        %v1226 = vrot.slane %v1221, %v1225
        %v1227 = vlaneseq
        %v1228 = vshrl.u32 %v1227, 7
        %v1229 = vsub.s32 1, %v1228
        %v1230 = vrot.slane %v1221, %v1229
        %v1233 = vmul.f32 %v1216, %v1226
        %v1234 = vmul.f32 %v1220, %v1230
        %1235 = vst [vmem:[#allocation5 + $0x50] sm:$0xff] %v1233
        %1236 = vst [vmem:[#allocation5 + $0x58] sm:$0xff] %v1234
        %1237 = vrot.lane.b32.xlu0 %v1106, 113
        %v1238 = vpop.permute.xlu0 %1237
        %1239 = vrot.lane.b32.xlu0 %v1107, 113
        %v1240 = vpop.permute.xlu0 %1239
        %v1241 = vsel %vm512, %v1238, %v1240
        %v1245 = vsel %vm512, %v1240, %v1238
        %v1246 = vld [vmem:[%s518] ss:$8 sm:$0x3]
        %v1248 = vlaneseq
        %v1249 = vshrl.u32 %v1248, 7
        %v1250 = vsub.s32 0, %v1249
        %v1251 = vrot.slane %v1246, %v1250
        %v1252 = vlaneseq
        %v1253 = vshrl.u32 %v1252, 7
        %v1254 = vsub.s32 1, %v1253
        %v1255 = vrot.slane %v1246, %v1254
        %v1258 = vmul.f32 %v1241, %v1251
        %v1259 = vmul.f32 %v1245, %v1255
        %1260 = vst [vmem:[#allocation5 + $0x60] sm:$0xff] %v1258
        %1261 = vst [vmem:[#allocation5 + $0x68] sm:$0xff] %v1259
        %1262 = vrot.lane.b32.xlu0 %v1106, 112
        %v1263 = vpop.permute.xlu0 %1262
        %1264 = vrot.lane.b32.xlu0 %v1107, 112
        %v1265 = vpop.permute.xlu0 %1264
        %v1266 = vsel %vm539, %v1263, %v1265
        %v1270 = vsel %vm539, %v1265, %v1263
        %v1271 = vld [vmem:[%s545] ss:$8 sm:$0x3]
        %v1273 = vlaneseq
        %v1274 = vshrl.u32 %v1273, 7
        %v1275 = vsub.s32 0, %v1274
        %v1276 = vrot.slane %v1271, %v1275
        %v1277 = vlaneseq
        %v1278 = vshrl.u32 %v1277, 7
        %v1279 = vsub.s32 1, %v1278
        %v1280 = vrot.slane %v1271, %v1279
        %v1283 = vmul.f32 %v1266, %v1276
        %v1284 = vmul.f32 %v1270, %v1280
        %1285 = vst [vmem:[#allocation5 + $0x70] sm:$0xff] %v1283
        %1286 = vst [vmem:[#allocation5 + $0x78] sm:$0xff] %v1284
        %1287 = vrot.lane.b32.xlu0 %v1106, 111
        %v1288 = vpop.permute.xlu0 %1287
        %1289 = vrot.lane.b32.xlu0 %v1107, 111
        %v1290 = vpop.permute.xlu0 %1289
        %v1291 = vsel %vm566, %v1288, %v1290
        %v1295 = vsel %vm566, %v1290, %v1288
        %v1296 = vld [vmem:[%s572] ss:$8 sm:$0x3]
        %v1298 = vlaneseq
        %v1299 = vshrl.u32 %v1298, 7
        %v1300 = vsub.s32 0, %v1299
        %v1301 = vrot.slane %v1296, %v1300
        %v1302 = vlaneseq
        %v1303 = vshrl.u32 %v1302, 7
        %v1304 = vsub.s32 1, %v1303
        %v1305 = vrot.slane %v1296, %v1304
        %v1308 = vmul.f32 %v1291, %v1301
        %v1309 = vmul.f32 %v1295, %v1305
        %1310 = vst [vmem:[#allocation5 + $0x80] sm:$0xff] %v1308
        %1311 = vst [vmem:[#allocation5 + $0x88] sm:$0xff] %v1309
        %v1312 = vld [vmem:[%s3] sm:$0xff]
        %v1313 = vld [vmem:[%s3 + $0x8] sm:$0xff]
        %v1314 = vld [vmem:[#allocation5] sm:$0xff]
        %v1315 = vld [vmem:[#allocation5 + $0x8] sm:$0xff]
        %v1316 = vld [vmem:[#allocation5 + $0x10] sm:$0xff]
        %v1317 = vld [vmem:[#allocation5 + $0x18] sm:$0xff]
        %v1318 = vld [vmem:[#allocation5 + $0x20] sm:$0xff]
        %v1319 = vld [vmem:[#allocation5 + $0x28] sm:$0xff]
        %v1320 = vld [vmem:[#allocation5 + $0x30] sm:$0xff]
        %v1321 = vld [vmem:[#allocation5 + $0x38] sm:$0xff]
        %v1322 = vld [vmem:[#allocation5 + $0x40] sm:$0xff]
        %v1323 = vld [vmem:[#allocation5 + $0x48] sm:$0xff]
        %v1324 = vld [vmem:[#allocation5 + $0x50] sm:$0xff]
        %v1325 = vld [vmem:[#allocation5 + $0x58] sm:$0xff]
        %v1326 = vld [vmem:[#allocation5 + $0x60] sm:$0xff]
        %v1327 = vld [vmem:[#allocation5 + $0x68] sm:$0xff]
        %v1328 = vld [vmem:[#allocation5 + $0x70] sm:$0xff]
        %v1329 = vld [vmem:[#allocation5 + $0x78] sm:$0xff]
        %v1330 = vld [vmem:[#allocation5 + $0x80] sm:$0xff]
        %v1331 = vld [vmem:[#allocation5 + $0x88] sm:$0xff]
        %v1332 = vld [vmem:[%s4] sm:$0xff]
        %v1333 = vld [vmem:[%s4 + $0x8] sm:$0xff]
        %1335 = vset.pattern.permute.xlu0 0
        %1336 = vperm.xlu0 %1335, %v1332
        %v1337 = vpop.permute.xlu0 %1336
        %1340 = vset.pattern.permute.xlu0 0
        %1341 = vperm.xlu0 %1340, %v1333
        %v1342 = vpop.permute.xlu0 %1341
        %v1345 = vsel %vm621, %v1312, 0
        %v1348 = vsel %vm621, %v1313, 0
        %1350 = vmatprep.subr.mxu0 %v1315
        %1351 = vmatpush1.msra.mxu0 %v1314
        %1352 = vmatprep.subr.mxu0 %v1317
        %1353 = vmatpush1.msra.mxu0 %v1316
        %1354 = vmatprep.subr.mxu0 %v1319
        %1355 = vmatpush1.msra.mxu0 %v1318
        %1356 = vmatprep.subr.mxu0 %v1321
        %1357 = vmatpush1.msra.mxu0 %v1320
        %1358 = vmatprep.subr.mxu0 %v1323
        %1359 = vmatpush1.msra.mxu0 %v1322
        %1360 = vmatprep.subr.mxu0 %v1325
        %1361 = vmatpush1.msra.mxu0 %v1324
        %1362 = vmatprep.subr.mxu0 %v1327
        %1363 = vmatpush1.msra.mxu0 %v1326
        %1364 = vmatprep.subr.mxu0 %v1329
        %1365 = vmatpush1.msra.mxu0 %v1328
        %1366 = vmatprep.subr.mxu0 %v1331
        %1367 = vmatpush1.msra.mxu0 %v1330
        %1368 = vmatprep.subr.mxu0 0.0
        %1369 = vmatpush1.msra.mxu0 0.0
        %1370 = vmatprep.subr.mxu0 0.0
        %1371 = vmatpush1.msra.mxu0 0.0
        %1372 = vmatprep.subr.mxu0 0.0
        %1373 = vmatpush1.msra.mxu0 0.0
        %1374 = vmatprep.subr.mxu0 0.0
        %1375 = vmatpush1.msra.mxu0 0.0
        %1376 = vmatprep.subr.mxu0 0.0
        %1377 = vmatpush1.msra.mxu0 0.0
        %1378 = vmatprep.subr.mxu0 0.0
        %1379 = vmatpush1.msra.mxu0 0.0
        %1380 = vmatprep.subr.mxu0 0.0
        %1381 = vmatpush1.msra.mxu0 0.0
        %1382 = vmatprep.subr.mxu0 0.0
        %1383 = vmatpush1.msra.mxu0 0.0
        %1384 = vmatprep.subr.mxu0 0.0
        %1385 = vmatpush1.msra.mxu0 0.0
        %1386 = vmatprep.subr.mxu0 0.0
        %1387 = vmatpush1.msra.mxu0 0.0
        %1388 = vmatprep.subr.mxu0 0.0
        %1389 = vmatpush1.msra.mxu0 0.0
        %1390 = vmatprep.subr.mxu0 0.0
        %1391 = vmatpush1.msra.mxu0 0.0
        %1392 = vmatprep.subr.mxu0 0.0
        %1393 = vmatpush1.msra.mxu0 0.0
        %1394 = vmatprep.subr.mxu0 0.0
        %1395 = vmatpush1.msra.mxu0 0.0
        %1396 = vmatprep.subr.mxu0 0.0
        %1397 = vmatpush1.msra.mxu0 0.0
        %1398 = vmatprep.subr.mxu0 0.0
        %1399 = vmatpush1.msra.mxu0 0.0
        %1400 = vmatprep.subr.mxu0 0.0
        %1401 = vmatpush1.msra.mxu0 0.0
        %1402 = vmatprep.subr.mxu0 0.0
        %1403 = vmatpush1.msra.mxu0 0.0
        %1404 = vmatprep.subr.mxu0 0.0
        %1405 = vmatpush1.msra.mxu0 0.0
        %1406 = vmatprep.subr.mxu0 0.0
        %1407 = vmatpush1.msra.mxu0 0.0
        %1408 = vmatprep.subr.mxu0 0.0
        %1409 = vmatpush1.msra.mxu0 0.0
        %1410 = vmatprep.subr.mxu0 0.0
        %1411 = vmatpush1.msra.mxu0 0.0
        %1412 = vmatprep.subr.mxu0 0.0
        %1413 = vmatpush1.msra.mxu0 0.0
        %1414 = vmatprep.mubr.f32.mxu0 0.0
        %1415 = vmatmul.mubr.f32.gmra.mrb[0].mxu0 %v1345
        %v1416 = vpop.f32.mrb[0].mxu0
        %v1417 = vadd.f32 %v1337, %v1416
        %v1418 = vpop.f32.mrb[0].mxu0
        %v1419 = vadd.f32 %v1337, %v1418
        %1420 = vmatprep.mubr.f32.mxu0 0.0
        %1421 = vmatmul.mubr.f32.gmra.mrb[0].mxu0 %v1348
        %v1422 = vpop.f32.mrb[0].mxu0
        %v1423 = vadd.f32 %v1342, %v1422
        %v1424 = vpop.f32.mrb[0].mxu0
        %v1425 = vadd.f32 %v1342, %v1424
        %1426 = vdwg.mxu0
        %v1427 = vmax.f32 %v1417, 0.0
        %v1428 = vmax.f32 %v1419, 0.0
        %v1429 = vmax.f32 %v1423, 0.0
        %v1430 = vmax.f32 %v1425, 0.0
        %1431 = vst [vmem:[#allocation3 + $0x40] sm:$0xff] %v1427
        %1432 = vst [vmem:[#allocation3 + $0x48] sm:$0xff] %v1428
        %1433 = vst [vmem:[#allocation3 + $0x50] sm:$0xff] %v1429
        %1434 = vst [vmem:[#allocation3 + $0x58] sm:$0xff] %v1430
        %v1435 = vld [vmem:[#allocation3] sm:$0xff]
        %v1436 = vld [vmem:[#allocation3 + $0x8] sm:$0xff]
        %v1437 = vld [vmem:[#allocation3 + $0x10] sm:$0xff]
        %v1438 = vld [vmem:[#allocation3 + $0x18] sm:$0xff]
        %v1439 = vld [vmem:[#allocation3 + $0x20] sm:$0xff]
        %v1440 = vld [vmem:[#allocation3 + $0x28] sm:$0xff]
        %v1441 = vld [vmem:[#allocation3 + $0x30] sm:$0xff]
        %v1442 = vld [vmem:[#allocation3 + $0x38] sm:$0xff]
        %v1443 = vld [vmem:[#allocation3 + $0x40] sm:$0xff]
        %v1444 = vld [vmem:[#allocation3 + $0x48] sm:$0xff]
        %v1445 = vld [vmem:[#allocation3 + $0x50] sm:$0xff]
        %v1446 = vld [vmem:[#allocation3 + $0x58] sm:$0xff]
        %1453 = vrot.lane.b32.xlu0 %v1436, 17
        %v1454 = vpop.permute.xlu0 %1453
        %1455 = vrot.lane.b32.xlu0 %v1438, 17
        %v1456 = vpop.permute.xlu0 %1455
        %1457 = vrot.lane.b32.xlu0 %v1440, 17
        %v1458 = vpop.permute.xlu0 %1457
        %1459 = vrot.lane.b32.xlu0 %v1442, 17
        %v1460 = vpop.permute.xlu0 %1459
        %1461 = vrot.lane.b32.xlu0 %v1444, 17
        %v1462 = vpop.permute.xlu0 %1461
        %1463 = vrot.lane.b32.xlu0 %v1446, 17
        %v1464 = vpop.permute.xlu0 %1463
        %1477 = vrot.lane.b32.xlu0 %v1435, 17
        %v1478 = vpop.permute.xlu0 %1477
        %1479 = vrot.lane.b32.xlu0 %v1437, 17
        %v1480 = vpop.permute.xlu0 %1479
        %1481 = vrot.lane.b32.xlu0 %v1439, 17
        %v1482 = vpop.permute.xlu0 %1481
        %1483 = vrot.lane.b32.xlu0 %v1441, 17
        %v1484 = vpop.permute.xlu0 %1483
        %1485 = vrot.lane.b32.xlu0 %v1443, 17
        %v1486 = vpop.permute.xlu0 %1485
        %1487 = vrot.lane.b32.xlu0 %v1445, 17
        %v1488 = vpop.permute.xlu0 %1487
        %v1489 = vsel %vm377, %v1478, %v1454
        %v1490 = vsel %vm377, %v1480, %v1456
        %v1491 = vsel %vm377, %v1482, %v1458
        %v1492 = vsel %vm377, %v1484, %v1460
        %v1493 = vsel %vm377, %v1486, %v1462
        %v1494 = vsel %vm377, %v1488, %v1464
        %v1507 = vsel %vm377, %v1454, %v1478
        %v1508 = vsel %vm377, %v1456, %v1480
        %v1509 = vsel %vm377, %v1458, %v1482
        %v1510 = vsel %vm377, %v1460, %v1484
        %v1511 = vsel %vm377, %v1462, %v1486
        %v1512 = vsel %vm377, %v1464, %v1488
        %v1513 = vld [vmem:[%s2] ss:$8 sm:$0x3]
        %v1515 = vlaneseq
        %v1516 = vshrl.u32 %v1515, 7
        %v1517 = vsub.s32 0, %v1516
        %v1518 = vrot.slane %v1513, %v1517
        %v1519 = vlaneseq
        %v1520 = vshrl.u32 %v1519, 7
        %v1521 = vsub.s32 1, %v1520
        %v1522 = vrot.slane %v1513, %v1521
        %v1525 = vmul.f32 %v1507, %v1518
        %v1526 = vmul.f32 %v1489, %v1522
        %v1527 = vmul.f32 %v1508, %v1518
        %v1528 = vmul.f32 %v1490, %v1522
        %v1529 = vmul.f32 %v1509, %v1518
        %v1530 = vmul.f32 %v1491, %v1522
        %v1531 = vmul.f32 %v1510, %v1518
        %v1532 = vmul.f32 %v1492, %v1522
        %v1533 = vmul.f32 %v1511, %v1518
        %v1534 = vmul.f32 %v1493, %v1522
        %v1535 = vmul.f32 %v1512, %v1518
        %v1536 = vmul.f32 %v1494, %v1522
        %1537 = vst [vmem:[#allocation5] sm:$0xff] %v1525
        %1538 = vst [vmem:[#allocation5 + $0x8] sm:$0xff] %v1526
        %1539 = vst [vmem:[#allocation5 + $0x10] sm:$0xff] %v1527
        %1540 = vst [vmem:[#allocation5 + $0x18] sm:$0xff] %v1528
        %1541 = vst [vmem:[#allocation5 + $0x20] sm:$0xff] %v1529
        %1542 = vst [vmem:[#allocation5 + $0x28] sm:$0xff] %v1530
        %1543 = vst [vmem:[#allocation5 + $0x30] sm:$0xff] %v1531
        %1544 = vst [vmem:[#allocation5 + $0x38] sm:$0xff] %v1532
        %1545 = vst [vmem:[#allocation5 + $0x40] sm:$0xff] %v1533
        %1546 = vst [vmem:[#allocation5 + $0x48] sm:$0xff] %v1534
        %1547 = vst [vmem:[#allocation5 + $0x50] sm:$0xff] %v1535
        %1548 = vst [vmem:[#allocation5 + $0x58] sm:$0xff] %v1536
        %1549 = vrot.lane.b32.xlu0 %v1436, 16
        %v1550 = vpop.permute.xlu0 %1549
        %1551 = vrot.lane.b32.xlu0 %v1438, 16
        %v1552 = vpop.permute.xlu0 %1551
        %1553 = vrot.lane.b32.xlu0 %v1440, 16
        %v1554 = vpop.permute.xlu0 %1553
        %1555 = vrot.lane.b32.xlu0 %v1442, 16
        %v1556 = vpop.permute.xlu0 %1555
        %1557 = vrot.lane.b32.xlu0 %v1444, 16
        %v1558 = vpop.permute.xlu0 %1557
        %1559 = vrot.lane.b32.xlu0 %v1446, 16
        %v1560 = vpop.permute.xlu0 %1559
        %1567 = vrot.lane.b32.xlu0 %v1435, 16
        %v1568 = vpop.permute.xlu0 %1567
        %1569 = vrot.lane.b32.xlu0 %v1437, 16
        %v1570 = vpop.permute.xlu0 %1569
        %1571 = vrot.lane.b32.xlu0 %v1439, 16
        %v1572 = vpop.permute.xlu0 %1571
        %1573 = vrot.lane.b32.xlu0 %v1441, 16
        %v1574 = vpop.permute.xlu0 %1573
        %1575 = vrot.lane.b32.xlu0 %v1443, 16
        %v1576 = vpop.permute.xlu0 %1575
        %1577 = vrot.lane.b32.xlu0 %v1445, 16
        %v1578 = vpop.permute.xlu0 %1577
        %v1579 = vsel %vm403, %v1568, %v1550
        %v1580 = vsel %vm403, %v1570, %v1552
        %v1581 = vsel %vm403, %v1572, %v1554
        %v1582 = vsel %vm403, %v1574, %v1556
        %v1583 = vsel %vm403, %v1576, %v1558
        %v1584 = vsel %vm403, %v1578, %v1560
        %v1597 = vsel %vm403, %v1550, %v1568
        %v1598 = vsel %vm403, %v1552, %v1570
        %v1599 = vsel %vm403, %v1554, %v1572
        %v1600 = vsel %vm403, %v1556, %v1574
        %v1601 = vsel %vm403, %v1558, %v1576
        %v1602 = vsel %vm403, %v1560, %v1578
        %v1603 = vld [vmem:[%s408] ss:$8 sm:$0x3]
        %v1605 = vlaneseq
        %v1606 = vshrl.u32 %v1605, 7
        %v1607 = vsub.s32 0, %v1606
        %v1608 = vrot.slane %v1603, %v1607
        %v1609 = vlaneseq
        %v1610 = vshrl.u32 %v1609, 7
        %v1611 = vsub.s32 1, %v1610
        %v1612 = vrot.slane %v1603, %v1611
        %v1615 = vmul.f32 %v1597, %v1608
        %v1616 = vmul.f32 %v1579, %v1612
        %v1617 = vmul.f32 %v1598, %v1608
        %v1618 = vmul.f32 %v1580, %v1612
        %v1619 = vmul.f32 %v1599, %v1608
        %v1620 = vmul.f32 %v1581, %v1612
        %v1621 = vmul.f32 %v1600, %v1608
        %v1622 = vmul.f32 %v1582, %v1612
        %v1623 = vmul.f32 %v1601, %v1608
        %v1624 = vmul.f32 %v1583, %v1612
        %v1625 = vmul.f32 %v1602, %v1608
        %v1626 = vmul.f32 %v1584, %v1612
        %1627 = vst [vmem:[#allocation5 + $0x60] sm:$0xff] %v1615
        %1628 = vst [vmem:[#allocation5 + $0x68] sm:$0xff] %v1616
        %1629 = vst [vmem:[#allocation5 + $0x70] sm:$0xff] %v1617
        %1630 = vst [vmem:[#allocation5 + $0x78] sm:$0xff] %v1618
        %1631 = vst [vmem:[#allocation5 + $0x80] sm:$0xff] %v1619
        %1632 = vst [vmem:[#allocation5 + $0x88] sm:$0xff] %v1620
        %1633 = vst [vmem:[#allocation5 + $0x90] sm:$0xff] %v1621
        %1634 = vst [vmem:[#allocation5 + $0x98] sm:$0xff] %v1622
        %1635 = vst [vmem:[#allocation5 + $0xa0] sm:$0xff] %v1623
        %1636 = vst [vmem:[#allocation5 + $0xa8] sm:$0xff] %v1624
        %1637 = vst [vmem:[#allocation5 + $0xb0] sm:$0xff] %v1625
        %1638 = vst [vmem:[#allocation5 + $0xb8] sm:$0xff] %v1626
        %1639 = vrot.lane.b32.xlu0 %v1436, 15
        %v1640 = vpop.permute.xlu0 %1639
        %1641 = vrot.lane.b32.xlu0 %v1438, 15
        %v1642 = vpop.permute.xlu0 %1641
        %1643 = vrot.lane.b32.xlu0 %v1440, 15
        %v1644 = vpop.permute.xlu0 %1643
        %1645 = vrot.lane.b32.xlu0 %v1442, 15
        %v1646 = vpop.permute.xlu0 %1645
        %1647 = vrot.lane.b32.xlu0 %v1444, 15
        %v1648 = vpop.permute.xlu0 %1647
        %1649 = vrot.lane.b32.xlu0 %v1446, 15
        %v1650 = vpop.permute.xlu0 %1649
        %1657 = vrot.lane.b32.xlu0 %v1435, 15
        %v1658 = vpop.permute.xlu0 %1657
        %1659 = vrot.lane.b32.xlu0 %v1437, 15
        %v1660 = vpop.permute.xlu0 %1659
        %1661 = vrot.lane.b32.xlu0 %v1439, 15
        %v1662 = vpop.permute.xlu0 %1661
        %1663 = vrot.lane.b32.xlu0 %v1441, 15
        %v1664 = vpop.permute.xlu0 %1663
        %1665 = vrot.lane.b32.xlu0 %v1443, 15
        %v1666 = vpop.permute.xlu0 %1665
        %1667 = vrot.lane.b32.xlu0 %v1445, 15
        %v1668 = vpop.permute.xlu0 %1667
        %v1669 = vsel %vm430, %v1658, %v1640
        %v1670 = vsel %vm430, %v1660, %v1642
        %v1671 = vsel %vm430, %v1662, %v1644
        %v1672 = vsel %vm430, %v1664, %v1646
        %v1673 = vsel %vm430, %v1666, %v1648
        %v1674 = vsel %vm430, %v1668, %v1650
        %v1687 = vsel %vm430, %v1640, %v1658
        %v1688 = vsel %vm430, %v1642, %v1660
        %v1689 = vsel %vm430, %v1644, %v1662
        %v1690 = vsel %vm430, %v1646, %v1664
        %v1691 = vsel %vm430, %v1648, %v1666
        %v1692 = vsel %vm430, %v1650, %v1668
        %v1693 = vld [vmem:[%s435] ss:$8 sm:$0x3]
        %v1695 = vlaneseq
        %v1696 = vshrl.u32 %v1695, 7
        %v1697 = vsub.s32 0, %v1696
        %v1698 = vrot.slane %v1693, %v1697
        %v1699 = vlaneseq
        %v1700 = vshrl.u32 %v1699, 7
        %v1701 = vsub.s32 1, %v1700
        %v1702 = vrot.slane %v1693, %v1701
        %v1705 = vmul.f32 %v1687, %v1698
        %v1706 = vmul.f32 %v1669, %v1702
        %v1707 = vmul.f32 %v1688, %v1698
        %v1708 = vmul.f32 %v1670, %v1702
        %v1709 = vmul.f32 %v1689, %v1698
        %v1710 = vmul.f32 %v1671, %v1702
        %v1711 = vmul.f32 %v1690, %v1698
        %v1712 = vmul.f32 %v1672, %v1702
        %v1713 = vmul.f32 %v1691, %v1698
        %v1714 = vmul.f32 %v1673, %v1702
        %v1715 = vmul.f32 %v1692, %v1698
        %v1716 = vmul.f32 %v1674, %v1702
        %1717 = vst [vmem:[#allocation5 + $0xc0] sm:$0xff] %v1705
        %1718 = vst [vmem:[#allocation5 + $0xc8] sm:$0xff] %v1706
        %1719 = vst [vmem:[#allocation5 + $0xd0] sm:$0xff] %v1707
        %1720 = vst [vmem:[#allocation5 + $0xd8] sm:$0xff] %v1708
        %1721 = vst [vmem:[#allocation5 + $0xe0] sm:$0xff] %v1709
        %1722 = vst [vmem:[#allocation5 + $0xe8] sm:$0xff] %v1710
        %1723 = vst [vmem:[#allocation5 + $0xf0] sm:$0xff] %v1711
        %1724 = vst [vmem:[#allocation5 + $0xf8] sm:$0xff] %v1712
        %1725 = vst [vmem:[#allocation5 + $0x100] sm:$0xff] %v1713
        %1726 = vst [vmem:[#allocation5 + $0x108] sm:$0xff] %v1714
        %1727 = vst [vmem:[#allocation5 + $0x110] sm:$0xff] %v1715
        %1728 = vst [vmem:[#allocation5 + $0x118] sm:$0xff] %v1716
        %1729 = vrot.lane.b32.xlu0 %v1436, 1
        %v1730 = vpop.permute.xlu0 %1729
        %1731 = vrot.lane.b32.xlu0 %v1438, 1
        %v1732 = vpop.permute.xlu0 %1731
        %1733 = vrot.lane.b32.xlu0 %v1440, 1
        %v1734 = vpop.permute.xlu0 %1733
        %1735 = vrot.lane.b32.xlu0 %v1442, 1
        %v1736 = vpop.permute.xlu0 %1735
        %1737 = vrot.lane.b32.xlu0 %v1444, 1
        %v1738 = vpop.permute.xlu0 %1737
        %1739 = vrot.lane.b32.xlu0 %v1446, 1
        %v1740 = vpop.permute.xlu0 %1739
        %1747 = vrot.lane.b32.xlu0 %v1435, 1
        %v1748 = vpop.permute.xlu0 %1747
        %1749 = vrot.lane.b32.xlu0 %v1437, 1
        %v1750 = vpop.permute.xlu0 %1749
        %1751 = vrot.lane.b32.xlu0 %v1439, 1
        %v1752 = vpop.permute.xlu0 %1751
        %1753 = vrot.lane.b32.xlu0 %v1441, 1
        %v1754 = vpop.permute.xlu0 %1753
        %1755 = vrot.lane.b32.xlu0 %v1443, 1
        %v1756 = vpop.permute.xlu0 %1755
        %1757 = vrot.lane.b32.xlu0 %v1445, 1
        %v1758 = vpop.permute.xlu0 %1757
        %v1759 = vsel %vm457, %v1748, %v1730
        %v1760 = vsel %vm457, %v1750, %v1732
        %v1761 = vsel %vm457, %v1752, %v1734
        %v1762 = vsel %vm457, %v1754, %v1736
        %v1763 = vsel %vm457, %v1756, %v1738
        %v1764 = vsel %vm457, %v1758, %v1740
        %v1777 = vsel %vm457, %v1730, %v1748
        %v1778 = vsel %vm457, %v1732, %v1750
        %v1779 = vsel %vm457, %v1734, %v1752
        %v1780 = vsel %vm457, %v1736, %v1754
        %v1781 = vsel %vm457, %v1738, %v1756
        %v1782 = vsel %vm457, %v1740, %v1758
        %v1783 = vld [vmem:[%s462] ss:$8 sm:$0x3]
        %v1785 = vlaneseq
        %v1786 = vshrl.u32 %v1785, 7
        %v1787 = vsub.s32 0, %v1786
        %v1788 = vrot.slane %v1783, %v1787
        %v1789 = vlaneseq
        %v1790 = vshrl.u32 %v1789, 7
        %v1791 = vsub.s32 1, %v1790
        %v1792 = vrot.slane %v1783, %v1791
        %v1795 = vmul.f32 %v1777, %v1788
        %v1796 = vmul.f32 %v1759, %v1792
        %v1797 = vmul.f32 %v1778, %v1788
        %v1798 = vmul.f32 %v1760, %v1792
        %v1799 = vmul.f32 %v1779, %v1788
        %v1800 = vmul.f32 %v1761, %v1792
        %v1801 = vmul.f32 %v1780, %v1788
        %v1802 = vmul.f32 %v1762, %v1792
        %v1803 = vmul.f32 %v1781, %v1788
        %v1804 = vmul.f32 %v1763, %v1792
        %v1805 = vmul.f32 %v1782, %v1788
        %v1806 = vmul.f32 %v1764, %v1792
        %1807 = vst [vmem:[#allocation5 + $0x120] sm:$0xff] %v1795
        %1808 = vst [vmem:[#allocation5 + $0x128] sm:$0xff] %v1796
        %1809 = vst [vmem:[#allocation5 + $0x130] sm:$0xff] %v1797
        %1810 = vst [vmem:[#allocation5 + $0x138] sm:$0xff] %v1798
        %1811 = vst [vmem:[#allocation5 + $0x140] sm:$0xff] %v1799
        %1812 = vst [vmem:[#allocation5 + $0x148] sm:$0xff] %v1800
        %1813 = vst [vmem:[#allocation5 + $0x150] sm:$0xff] %v1801
        %1814 = vst [vmem:[#allocation5 + $0x158] sm:$0xff] %v1802
        %1815 = vst [vmem:[#allocation5 + $0x160] sm:$0xff] %v1803
        %1816 = vst [vmem:[#allocation5 + $0x168] sm:$0xff] %v1804
        %1817 = vst [vmem:[#allocation5 + $0x170] sm:$0xff] %v1805
        %1818 = vst [vmem:[#allocation5 + $0x178] sm:$0xff] %v1806
        %1819 = vst [vmem:[#allocation5 + $0x180] sm:$0xff] %v1435
        %1820 = vst [vmem:[#allocation5 + $0x188] sm:$0xff] %v1436
        %1821 = vst [vmem:[#allocation5 + $0x190] sm:$0xff] %v1437
        %1822 = vst [vmem:[#allocation5 + $0x198] sm:$0xff] %v1438
        %1823 = vst [vmem:[#allocation5 + $0x1a0] sm:$0xff] %v1439
        %1824 = vst [vmem:[#allocation5 + $0x1a8] sm:$0xff] %v1440
        %1825 = vst [vmem:[#allocation5 + $0x1b0] sm:$0xff] %v1441
        %1826 = vst [vmem:[#allocation5 + $0x1b8] sm:$0xff] %v1442
        %1827 = vst [vmem:[#allocation5 + $0x1c0] sm:$0xff] %v1443
        %1828 = vst [vmem:[#allocation5 + $0x1c8] sm:$0xff] %v1444
        %1829 = vst [vmem:[#allocation5 + $0x1d0] sm:$0xff] %v1445
        %1830 = vst [vmem:[#allocation5 + $0x1d8] sm:$0xff] %v1446
        %1831 = vrot.lane.b32.xlu0 %v1435, 127
        %v1832 = vpop.permute.xlu0 %1831
        %1833 = vrot.lane.b32.xlu0 %v1436, 127
        %v1834 = vpop.permute.xlu0 %1833
        %1835 = vrot.lane.b32.xlu0 %v1437, 127
        %v1836 = vpop.permute.xlu0 %1835
        %1837 = vrot.lane.b32.xlu0 %v1438, 127
        %v1838 = vpop.permute.xlu0 %1837
        %1839 = vrot.lane.b32.xlu0 %v1439, 127
        %v1840 = vpop.permute.xlu0 %1839
        %1841 = vrot.lane.b32.xlu0 %v1440, 127
        %v1842 = vpop.permute.xlu0 %1841
        %1843 = vrot.lane.b32.xlu0 %v1441, 127
        %v1844 = vpop.permute.xlu0 %1843
        %1845 = vrot.lane.b32.xlu0 %v1442, 127
        %v1846 = vpop.permute.xlu0 %1845
        %1847 = vrot.lane.b32.xlu0 %v1443, 127
        %v1848 = vpop.permute.xlu0 %1847
        %1849 = vrot.lane.b32.xlu0 %v1444, 127
        %v1850 = vpop.permute.xlu0 %1849
        %1851 = vrot.lane.b32.xlu0 %v1445, 127
        %v1852 = vpop.permute.xlu0 %1851
        %1853 = vrot.lane.b32.xlu0 %v1446, 127
        %v1854 = vpop.permute.xlu0 %1853
        %v1855 = vsel %vm485, %v1832, %v1834
        %v1856 = vsel %vm485, %v1836, %v1838
        %v1857 = vsel %vm485, %v1840, %v1842
        %v1858 = vsel %vm485, %v1844, %v1846
        %v1859 = vsel %vm485, %v1848, %v1850
        %v1860 = vsel %vm485, %v1852, %v1854
        %v1879 = vsel %vm485, %v1834, %v1832
        %v1880 = vsel %vm485, %v1838, %v1836
        %v1881 = vsel %vm485, %v1842, %v1840
        %v1882 = vsel %vm485, %v1846, %v1844
        %v1883 = vsel %vm485, %v1850, %v1848
        %v1884 = vsel %vm485, %v1854, %v1852
        %v1885 = vld [vmem:[%s491] ss:$8 sm:$0x3]
        %v1887 = vlaneseq
        %v1888 = vshrl.u32 %v1887, 7
        %v1889 = vsub.s32 0, %v1888
        %v1890 = vrot.slane %v1885, %v1889
        %v1891 = vlaneseq
        %v1892 = vshrl.u32 %v1891, 7
        %v1893 = vsub.s32 1, %v1892
        %v1894 = vrot.slane %v1885, %v1893
        %v1897 = vmul.f32 %v1855, %v1890
        %v1898 = vmul.f32 %v1879, %v1894
        %v1899 = vmul.f32 %v1856, %v1890
        %v1900 = vmul.f32 %v1880, %v1894
        %v1901 = vmul.f32 %v1857, %v1890
        %v1902 = vmul.f32 %v1881, %v1894
        %v1903 = vmul.f32 %v1858, %v1890
        %v1904 = vmul.f32 %v1882, %v1894
        %v1905 = vmul.f32 %v1859, %v1890
        %v1906 = vmul.f32 %v1883, %v1894
        %v1907 = vmul.f32 %v1860, %v1890
        %v1908 = vmul.f32 %v1884, %v1894
        %1909 = vst [vmem:[#allocation5 + $0x1e0] sm:$0xff] %v1897
        %1910 = vst [vmem:[#allocation5 + $0x1e8] sm:$0xff] %v1898
        %1911 = vst [vmem:[#allocation5 + $0x1f0] sm:$0xff] %v1899
        %1912 = vst [vmem:[#allocation5 + $0x1f8] sm:$0xff] %v1900
        %1913 = vst [vmem:[#allocation5 + $0x200] sm:$0xff] %v1901
        %1914 = vst [vmem:[#allocation5 + $0x208] sm:$0xff] %v1902
        %1915 = vst [vmem:[#allocation5 + $0x210] sm:$0xff] %v1903
        %1916 = vst [vmem:[#allocation5 + $0x218] sm:$0xff] %v1904
        %1917 = vst [vmem:[#allocation5 + $0x220] sm:$0xff] %v1905
        %1918 = vst [vmem:[#allocation5 + $0x228] sm:$0xff] %v1906
        %1919 = vst [vmem:[#allocation5 + $0x230] sm:$0xff] %v1907
        %1920 = vst [vmem:[#allocation5 + $0x238] sm:$0xff] %v1908
        %1921 = vrot.lane.b32.xlu0 %v1435, 113
        %v1922 = vpop.permute.xlu0 %1921
        %1923 = vrot.lane.b32.xlu0 %v1436, 113
        %v1924 = vpop.permute.xlu0 %1923
        %1925 = vrot.lane.b32.xlu0 %v1437, 113
        %v1926 = vpop.permute.xlu0 %1925
        %1927 = vrot.lane.b32.xlu0 %v1438, 113
        %v1928 = vpop.permute.xlu0 %1927
        %1929 = vrot.lane.b32.xlu0 %v1439, 113
        %v1930 = vpop.permute.xlu0 %1929
        %1931 = vrot.lane.b32.xlu0 %v1440, 113
        %v1932 = vpop.permute.xlu0 %1931
        %1933 = vrot.lane.b32.xlu0 %v1441, 113
        %v1934 = vpop.permute.xlu0 %1933
        %1935 = vrot.lane.b32.xlu0 %v1442, 113
        %v1936 = vpop.permute.xlu0 %1935
        %1937 = vrot.lane.b32.xlu0 %v1443, 113
        %v1938 = vpop.permute.xlu0 %1937
        %1939 = vrot.lane.b32.xlu0 %v1444, 113
        %v1940 = vpop.permute.xlu0 %1939
        %1941 = vrot.lane.b32.xlu0 %v1445, 113
        %v1942 = vpop.permute.xlu0 %1941
        %1943 = vrot.lane.b32.xlu0 %v1446, 113
        %v1944 = vpop.permute.xlu0 %1943
        %v1945 = vsel %vm512, %v1922, %v1924
        %v1946 = vsel %vm512, %v1926, %v1928
        %v1947 = vsel %vm512, %v1930, %v1932
        %v1948 = vsel %vm512, %v1934, %v1936
        %v1949 = vsel %vm512, %v1938, %v1940
        %v1950 = vsel %vm512, %v1942, %v1944
        %v1969 = vsel %vm512, %v1924, %v1922
        %v1970 = vsel %vm512, %v1928, %v1926
        %v1971 = vsel %vm512, %v1932, %v1930
        %v1972 = vsel %vm512, %v1936, %v1934
        %v1973 = vsel %vm512, %v1940, %v1938
        %v1974 = vsel %vm512, %v1944, %v1942
        %v1975 = vld [vmem:[%s518] ss:$8 sm:$0x3]
        %v1977 = vlaneseq
        %v1978 = vshrl.u32 %v1977, 7
        %v1979 = vsub.s32 0, %v1978
        %v1980 = vrot.slane %v1975, %v1979
        %v1981 = vlaneseq
        %v1982 = vshrl.u32 %v1981, 7
        %v1983 = vsub.s32 1, %v1982
        %v1984 = vrot.slane %v1975, %v1983
        %v1987 = vmul.f32 %v1945, %v1980
        %v1988 = vmul.f32 %v1969, %v1984
        %v1989 = vmul.f32 %v1946, %v1980
        %v1990 = vmul.f32 %v1970, %v1984
        %v1991 = vmul.f32 %v1947, %v1980
        %v1992 = vmul.f32 %v1971, %v1984
        %v1993 = vmul.f32 %v1948, %v1980
        %v1994 = vmul.f32 %v1972, %v1984
        %v1995 = vmul.f32 %v1949, %v1980
        %v1996 = vmul.f32 %v1973, %v1984
        %v1997 = vmul.f32 %v1950, %v1980
        %v1998 = vmul.f32 %v1974, %v1984
        %1999 = vst [vmem:[#allocation5 + $0x240] sm:$0xff] %v1987
        %2000 = vst [vmem:[#allocation5 + $0x248] sm:$0xff] %v1988
        %2001 = vst [vmem:[#allocation5 + $0x250] sm:$0xff] %v1989
        %2002 = vst [vmem:[#allocation5 + $0x258] sm:$0xff] %v1990
        %2003 = vst [vmem:[#allocation5 + $0x260] sm:$0xff] %v1991
        %2004 = vst [vmem:[#allocation5 + $0x268] sm:$0xff] %v1992
        %2005 = vst [vmem:[#allocation5 + $0x270] sm:$0xff] %v1993
        %2006 = vst [vmem:[#allocation5 + $0x278] sm:$0xff] %v1994
        %2007 = vst [vmem:[#allocation5 + $0x280] sm:$0xff] %v1995
        %2008 = vst [vmem:[#allocation5 + $0x288] sm:$0xff] %v1996
        %2009 = vst [vmem:[#allocation5 + $0x290] sm:$0xff] %v1997
        %2010 = vst [vmem:[#allocation5 + $0x298] sm:$0xff] %v1998
        %2011 = vrot.lane.b32.xlu0 %v1435, 112
        %v2012 = vpop.permute.xlu0 %2011
        %2013 = vrot.lane.b32.xlu0 %v1436, 112
        %v2014 = vpop.permute.xlu0 %2013
        %2015 = vrot.lane.b32.xlu0 %v1437, 112
        %v2016 = vpop.permute.xlu0 %2015
        %2017 = vrot.lane.b32.xlu0 %v1438, 112
        %v2018 = vpop.permute.xlu0 %2017
        %2019 = vrot.lane.b32.xlu0 %v1439, 112
        %v2020 = vpop.permute.xlu0 %2019
        %2021 = vrot.lane.b32.xlu0 %v1440, 112
        %v2022 = vpop.permute.xlu0 %2021
        %2023 = vrot.lane.b32.xlu0 %v1441, 112
        %v2024 = vpop.permute.xlu0 %2023
        %2025 = vrot.lane.b32.xlu0 %v1442, 112
        %v2026 = vpop.permute.xlu0 %2025
        %2027 = vrot.lane.b32.xlu0 %v1443, 112
        %v2028 = vpop.permute.xlu0 %2027
        %2029 = vrot.lane.b32.xlu0 %v1444, 112
        %v2030 = vpop.permute.xlu0 %2029
        %2031 = vrot.lane.b32.xlu0 %v1445, 112
        %v2032 = vpop.permute.xlu0 %2031
        %2033 = vrot.lane.b32.xlu0 %v1446, 112
        %v2034 = vpop.permute.xlu0 %2033
        %v2035 = vsel %vm539, %v2012, %v2014
        %v2036 = vsel %vm539, %v2016, %v2018
        %v2037 = vsel %vm539, %v2020, %v2022
        %v2038 = vsel %vm539, %v2024, %v2026
        %v2039 = vsel %vm539, %v2028, %v2030
        %v2040 = vsel %vm539, %v2032, %v2034
        %v2059 = vsel %vm539, %v2014, %v2012
        %v2060 = vsel %vm539, %v2018, %v2016
        %v2061 = vsel %vm539, %v2022, %v2020
        %v2062 = vsel %vm539, %v2026, %v2024
        %v2063 = vsel %vm539, %v2030, %v2028
        %v2064 = vsel %vm539, %v2034, %v2032
        %v2065 = vld [vmem:[%s545] ss:$8 sm:$0x3]
        %v2067 = vlaneseq
        %v2068 = vshrl.u32 %v2067, 7
        %v2069 = vsub.s32 0, %v2068
        %v2070 = vrot.slane %v2065, %v2069
        %v2071 = vlaneseq
        %v2072 = vshrl.u32 %v2071, 7
        %v2073 = vsub.s32 1, %v2072
        %v2074 = vrot.slane %v2065, %v2073
        %v2077 = vmul.f32 %v2035, %v2070
        %v2078 = vmul.f32 %v2059, %v2074
        %v2079 = vmul.f32 %v2036, %v2070
        %v2080 = vmul.f32 %v2060, %v2074
        %v2081 = vmul.f32 %v2037, %v2070
        %v2082 = vmul.f32 %v2061, %v2074
        %v2083 = vmul.f32 %v2038, %v2070
        %v2084 = vmul.f32 %v2062, %v2074
        %v2085 = vmul.f32 %v2039, %v2070
        %v2086 = vmul.f32 %v2063, %v2074
        %v2087 = vmul.f32 %v2040, %v2070
        %v2088 = vmul.f32 %v2064, %v2074
        %2089 = vst [vmem:[#allocation5 + $0x2a0] sm:$0xff] %v2077
        %2090 = vst [vmem:[#allocation5 + $0x2a8] sm:$0xff] %v2078
        %2091 = vst [vmem:[#allocation5 + $0x2b0] sm:$0xff] %v2079
        %2092 = vst [vmem:[#allocation5 + $0x2b8] sm:$0xff] %v2080
        %2093 = vst [vmem:[#allocation5 + $0x2c0] sm:$0xff] %v2081
        %2094 = vst [vmem:[#allocation5 + $0x2c8] sm:$0xff] %v2082
        %2095 = vst [vmem:[#allocation5 + $0x2d0] sm:$0xff] %v2083
        %2096 = vst [vmem:[#allocation5 + $0x2d8] sm:$0xff] %v2084
        %2097 = vst [vmem:[#allocation5 + $0x2e0] sm:$0xff] %v2085
        %2098 = vst [vmem:[#allocation5 + $0x2e8] sm:$0xff] %v2086
        %2099 = vst [vmem:[#allocation5 + $0x2f0] sm:$0xff] %v2087
        %2100 = vst [vmem:[#allocation5 + $0x2f8] sm:$0xff] %v2088
        %2101 = vrot.lane.b32.xlu0 %v1435, 111
        %v2102 = vpop.permute.xlu0 %2101
        %2103 = vrot.lane.b32.xlu0 %v1436, 111
        %v2104 = vpop.permute.xlu0 %2103
        %2105 = vrot.lane.b32.xlu0 %v1437, 111
        %v2106 = vpop.permute.xlu0 %2105
        %2107 = vrot.lane.b32.xlu0 %v1438, 111
        %v2108 = vpop.permute.xlu0 %2107
        %2109 = vrot.lane.b32.xlu0 %v1439, 111
        %v2110 = vpop.permute.xlu0 %2109
        %2111 = vrot.lane.b32.xlu0 %v1440, 111
        %v2112 = vpop.permute.xlu0 %2111
        %2113 = vrot.lane.b32.xlu0 %v1441, 111
        %v2114 = vpop.permute.xlu0 %2113
        %2115 = vrot.lane.b32.xlu0 %v1442, 111
        %v2116 = vpop.permute.xlu0 %2115
        %2117 = vrot.lane.b32.xlu0 %v1443, 111
        %v2118 = vpop.permute.xlu0 %2117
        %2119 = vrot.lane.b32.xlu0 %v1444, 111
        %v2120 = vpop.permute.xlu0 %2119
        %2121 = vrot.lane.b32.xlu0 %v1445, 111
        %v2122 = vpop.permute.xlu0 %2121
        %2123 = vrot.lane.b32.xlu0 %v1446, 111
        %v2124 = vpop.permute.xlu0 %2123
        %v2125 = vsel %vm566, %v2102, %v2104
        %v2126 = vsel %vm566, %v2106, %v2108
        %v2127 = vsel %vm566, %v2110, %v2112
        %v2128 = vsel %vm566, %v2114, %v2116
        %v2129 = vsel %vm566, %v2118, %v2120
        %v2130 = vsel %vm566, %v2122, %v2124
        %v2149 = vsel %vm566, %v2104, %v2102
        %v2150 = vsel %vm566, %v2108, %v2106
        %v2151 = vsel %vm566, %v2112, %v2110
        %v2152 = vsel %vm566, %v2116, %v2114
        %v2153 = vsel %vm566, %v2120, %v2118
        %v2154 = vsel %vm566, %v2124, %v2122
        %v2155 = vld [vmem:[%s572] ss:$8 sm:$0x3]
        %v2157 = vlaneseq
        %v2158 = vshrl.u32 %v2157, 7
        %v2159 = vsub.s32 0, %v2158
        %v2160 = vrot.slane %v2155, %v2159
        %v2161 = vlaneseq
        %v2162 = vshrl.u32 %v2161, 7
        %v2163 = vsub.s32 1, %v2162
        %v2164 = vrot.slane %v2155, %v2163
        %v2167 = vmul.f32 %v2125, %v2160
        %v2168 = vmul.f32 %v2149, %v2164
        %v2169 = vmul.f32 %v2126, %v2160
        %v2170 = vmul.f32 %v2150, %v2164
        %v2171 = vmul.f32 %v2127, %v2160
        %v2172 = vmul.f32 %v2151, %v2164
        %v2173 = vmul.f32 %v2128, %v2160
        %v2174 = vmul.f32 %v2152, %v2164
        %v2175 = vmul.f32 %v2129, %v2160
        %v2176 = vmul.f32 %v2153, %v2164
        %v2177 = vmul.f32 %v2130, %v2160
        %v2178 = vmul.f32 %v2154, %v2164
        %2179 = vst [vmem:[#allocation5 + $0x300] sm:$0xff] %v2167
        %2180 = vst [vmem:[#allocation5 + $0x308] sm:$0xff] %v2168
        %2181 = vst [vmem:[#allocation5 + $0x310] sm:$0xff] %v2169
        %2182 = vst [vmem:[#allocation5 + $0x318] sm:$0xff] %v2170
        %2183 = vst [vmem:[#allocation5 + $0x320] sm:$0xff] %v2171
        %2184 = vst [vmem:[#allocation5 + $0x328] sm:$0xff] %v2172
        %2185 = vst [vmem:[#allocation5 + $0x330] sm:$0xff] %v2173
        %2186 = vst [vmem:[#allocation5 + $0x338] sm:$0xff] %v2174
        %2187 = vst [vmem:[#allocation5 + $0x340] sm:$0xff] %v2175
        %2188 = vst [vmem:[#allocation5 + $0x348] sm:$0xff] %v2176
        %2189 = vst [vmem:[#allocation5 + $0x350] sm:$0xff] %v2177
        %2190 = vst [vmem:[#allocation5 + $0x358] sm:$0xff] %v2178
        %v2191 = vld [vmem:[%s5] sm:$0xff]
        %v2192 = vld [vmem:[%s5 + $0x8] sm:$0xff]
        %v2193 = vld [vmem:[%s5 + $0x10] sm:$0xff]
        %v2194 = vld [vmem:[%s5 + $0x18] sm:$0xff]
        %v2195 = vld [vmem:[%s5 + $0x20] sm:$0xff]
        %v2196 = vld [vmem:[%s5 + $0x28] sm:$0xff]
        %v2197 = vld [vmem:[%s5 + $0x30] sm:$0xff]
        %v2198 = vld [vmem:[%s5 + $0x38] sm:$0xff]
        %v2199 = vld [vmem:[#allocation5] sm:$0xff]
        %v2200 = vld [vmem:[#allocation5 + $0x8] sm:$0xff]
        %v2201 = vld [vmem:[#allocation5 + $0x10] sm:$0xff]
        %v2202 = vld [vmem:[#allocation5 + $0x18] sm:$0xff]
        %v2203 = vld [vmem:[#allocation5 + $0x20] sm:$0xff]
        %v2204 = vld [vmem:[#allocation5 + $0x28] sm:$0xff]
        %v2205 = vld [vmem:[#allocation5 + $0x30] sm:$0xff]
        %v2206 = vld [vmem:[#allocation5 + $0x38] sm:$0xff]
        %v2207 = vld [vmem:[#allocation5 + $0x40] sm:$0xff]
        %v2208 = vld [vmem:[#allocation5 + $0x48] sm:$0xff]
        %v2209 = vld [vmem:[#allocation5 + $0x50] sm:$0xff]
        %v2210 = vld [vmem:[#allocation5 + $0x58] sm:$0xff]
        %v2211 = vld [vmem:[#allocation5 + $0x60] sm:$0xff]
        %v2212 = vld [vmem:[#allocation5 + $0x68] sm:$0xff]
        %v2213 = vld [vmem:[#allocation5 + $0x70] sm:$0xff]
        %v2214 = vld [vmem:[#allocation5 + $0x78] sm:$0xff]
        %v2215 = vld [vmem:[#allocation5 + $0x80] sm:$0xff]
        %v2216 = vld [vmem:[#allocation5 + $0x88] sm:$0xff]
        %v2217 = vld [vmem:[#allocation5 + $0x90] sm:$0xff]
        %v2218 = vld [vmem:[#allocation5 + $0x98] sm:$0xff]
        %v2219 = vld [vmem:[#allocation5 + $0xa0] sm:$0xff]
        %v2220 = vld [vmem:[#allocation5 + $0xa8] sm:$0xff]
        %v2221 = vld [vmem:[#allocation5 + $0xb0] sm:$0xff]
        %v2222 = vld [vmem:[#allocation5 + $0xb8] sm:$0xff]
        %v2223 = vld [vmem:[#allocation5 + $0xc0] sm:$0xff]
        %v2224 = vld [vmem:[#allocation5 + $0xc8] sm:$0xff]
        %v2225 = vld [vmem:[#allocation5 + $0xd0] sm:$0xff]
        %v2226 = vld [vmem:[#allocation5 + $0xd8] sm:$0xff]
        %v2227 = vld [vmem:[#allocation5 + $0xe0] sm:$0xff]
        %v2228 = vld [vmem:[#allocation5 + $0xe8] sm:$0xff]
        %v2229 = vld [vmem:[#allocation5 + $0xf0] sm:$0xff]
        %v2230 = vld [vmem:[#allocation5 + $0xf8] sm:$0xff]
        %v2231 = vld [vmem:[#allocation5 + $0x100] sm:$0xff]
        %v2232 = vld [vmem:[#allocation5 + $0x108] sm:$0xff]
        %v2233 = vld [vmem:[#allocation5 + $0x110] sm:$0xff]
        %v2234 = vld [vmem:[#allocation5 + $0x118] sm:$0xff]
        %v2235 = vld [vmem:[#allocation5 + $0x120] sm:$0xff]
        %v2236 = vld [vmem:[#allocation5 + $0x128] sm:$0xff]
        %v2237 = vld [vmem:[#allocation5 + $0x130] sm:$0xff]
        %v2238 = vld [vmem:[#allocation5 + $0x138] sm:$0xff]
        %v2239 = vld [vmem:[#allocation5 + $0x140] sm:$0xff]
        %v2240 = vld [vmem:[#allocation5 + $0x148] sm:$0xff]
        %v2241 = vld [vmem:[#allocation5 + $0x150] sm:$0xff]
        %v2242 = vld [vmem:[#allocation5 + $0x158] sm:$0xff]
        %v2243 = vld [vmem:[#allocation5 + $0x160] sm:$0xff]
        %v2244 = vld [vmem:[#allocation5 + $0x168] sm:$0xff]
        %v2245 = vld [vmem:[#allocation5 + $0x170] sm:$0xff]
        %v2246 = vld [vmem:[#allocation5 + $0x178] sm:$0xff]
        %v2247 = vld [vmem:[#allocation5 + $0x180] sm:$0xff]
        %v2248 = vld [vmem:[#allocation5 + $0x188] sm:$0xff]
        %v2249 = vld [vmem:[#allocation5 + $0x190] sm:$0xff]
        %v2250 = vld [vmem:[#allocation5 + $0x198] sm:$0xff]
        %v2251 = vld [vmem:[#allocation5 + $0x1a0] sm:$0xff]
        %v2252 = vld [vmem:[#allocation5 + $0x1a8] sm:$0xff]
        %v2253 = vld [vmem:[#allocation5 + $0x1b0] sm:$0xff]
        %v2254 = vld [vmem:[#allocation5 + $0x1b8] sm:$0xff]
        %v2255 = vld [vmem:[#allocation5 + $0x1c0] sm:$0xff]
        %v2256 = vld [vmem:[#allocation5 + $0x1c8] sm:$0xff]
        %v2257 = vld [vmem:[#allocation5 + $0x1d0] sm:$0xff]
        %v2258 = vld [vmem:[#allocation5 + $0x1d8] sm:$0xff]
        %v2259 = vld [vmem:[#allocation5 + $0x1e0] sm:$0xff]
        %v2260 = vld [vmem:[#allocation5 + $0x1e8] sm:$0xff]
        %v2261 = vld [vmem:[#allocation5 + $0x1f0] sm:$0xff]
        %v2262 = vld [vmem:[#allocation5 + $0x1f8] sm:$0xff]
        %v2263 = vld [vmem:[#allocation5 + $0x200] sm:$0xff]
        %v2264 = vld [vmem:[#allocation5 + $0x208] sm:$0xff]
        %v2265 = vld [vmem:[#allocation5 + $0x210] sm:$0xff]
        %v2266 = vld [vmem:[#allocation5 + $0x218] sm:$0xff]
        %v2267 = vld [vmem:[#allocation5 + $0x220] sm:$0xff]
        %v2268 = vld [vmem:[#allocation5 + $0x228] sm:$0xff]
        %v2269 = vld [vmem:[#allocation5 + $0x230] sm:$0xff]
        %v2270 = vld [vmem:[#allocation5 + $0x238] sm:$0xff]
        %v2271 = vld [vmem:[#allocation5 + $0x240] sm:$0xff]
        %v2272 = vld [vmem:[#allocation5 + $0x248] sm:$0xff]
        %v2273 = vld [vmem:[#allocation5 + $0x250] sm:$0xff]
        %v2274 = vld [vmem:[#allocation5 + $0x258] sm:$0xff]
        %v2275 = vld [vmem:[#allocation5 + $0x260] sm:$0xff]
        %v2276 = vld [vmem:[#allocation5 + $0x268] sm:$0xff]
        %v2277 = vld [vmem:[#allocation5 + $0x270] sm:$0xff]
        %v2278 = vld [vmem:[#allocation5 + $0x278] sm:$0xff]
        %v2279 = vld [vmem:[#allocation5 + $0x280] sm:$0xff]
        %v2280 = vld [vmem:[#allocation5 + $0x288] sm:$0xff]
        %v2281 = vld [vmem:[#allocation5 + $0x290] sm:$0xff]
        %v2282 = vld [vmem:[#allocation5 + $0x298] sm:$0xff]
        %v2283 = vld [vmem:[#allocation5 + $0x2a0] sm:$0xff]
        %v2284 = vld [vmem:[#allocation5 + $0x2a8] sm:$0xff]
        %v2285 = vld [vmem:[#allocation5 + $0x2b0] sm:$0xff]
        %v2286 = vld [vmem:[#allocation5 + $0x2b8] sm:$0xff]
        %v2287 = vld [vmem:[#allocation5 + $0x2c0] sm:$0xff]
        %v2288 = vld [vmem:[#allocation5 + $0x2c8] sm:$0xff]
        %v2289 = vld [vmem:[#allocation5 + $0x2d0] sm:$0xff]
        %v2290 = vld [vmem:[#allocation5 + $0x2d8] sm:$0xff]
        %v2291 = vld [vmem:[#allocation5 + $0x2e0] sm:$0xff]
        %v2292 = vld [vmem:[#allocation5 + $0x2e8] sm:$0xff]
        %v2293 = vld [vmem:[#allocation5 + $0x2f0] sm:$0xff]
        %v2294 = vld [vmem:[#allocation5 + $0x2f8] sm:$0xff]
        %v2295 = vld [vmem:[#allocation5 + $0x300] sm:$0xff]
        %v2296 = vld [vmem:[#allocation5 + $0x308] sm:$0xff]
        %v2297 = vld [vmem:[#allocation5 + $0x310] sm:$0xff]
        %v2298 = vld [vmem:[#allocation5 + $0x318] sm:$0xff]
        %v2299 = vld [vmem:[#allocation5 + $0x320] sm:$0xff]
        %v2300 = vld [vmem:[#allocation5 + $0x328] sm:$0xff]
        %v2301 = vld [vmem:[#allocation5 + $0x330] sm:$0xff]
        %v2302 = vld [vmem:[#allocation5 + $0x338] sm:$0xff]
        %v2303 = vld [vmem:[#allocation5 + $0x340] sm:$0xff]
        %v2304 = vld [vmem:[#allocation5 + $0x348] sm:$0xff]
        %v2305 = vld [vmem:[#allocation5 + $0x350] sm:$0xff]
        %v2306 = vld [vmem:[#allocation5 + $0x358] sm:$0xff]
        %v2307 = vld [vmem:[%s6] sm:$0xff]
        %v2308 = vld [vmem:[%s6 + $0x8] sm:$0xff]
        %2310 = vset.pattern.permute.xlu0 0
        %2311 = vperm.xlu0 %2310, %v2307
        %v2312 = vpop.permute.xlu0 %2311
        %2315 = vset.pattern.permute.xlu0 0
        %2316 = vperm.xlu0 %2315, %v2308
        %v2317 = vpop.permute.xlu0 %2316
        %vm2319 = vcmask 392192
        %v2321 = vsel %vm2319, %v2194, 0
        %v2324 = vsel %vm2319, %v2198, 0
        %2326 = vmatprep.subr.mxu0 %v2200
        %2327 = vmatpush1.msra.mxu0 %v2199
        %2328 = vmatprep.subr.mxu0 %v2202
        %2329 = vmatpush1.msra.mxu0 %v2201
        %2330 = vmatprep.subr.mxu0 %v2204
        %2331 = vmatpush1.msra.mxu0 %v2203
        %2332 = vmatprep.subr.mxu0 %v2206
        %2333 = vmatpush1.msra.mxu0 %v2205
        %2334 = vmatprep.subr.mxu0 %v2208
        %2335 = vmatpush1.msra.mxu0 %v2207
        %2336 = vmatprep.subr.mxu0 %v2210
        %2337 = vmatpush1.msra.mxu0 %v2209
        %2338 = vmatprep.subr.mxu0 %v2212
        %2339 = vmatpush1.msra.mxu0 %v2211
        %2340 = vmatprep.subr.mxu0 %v2214
        %2341 = vmatpush1.msra.mxu0 %v2213
        %2342 = vmatprep.subr.mxu0 %v2216
        %2343 = vmatpush1.msra.mxu0 %v2215
        %2344 = vmatprep.subr.mxu0 %v2218
        %2345 = vmatpush1.msra.mxu0 %v2217
        %2346 = vmatprep.subr.mxu0 %v2220
        %2347 = vmatpush1.msra.mxu0 %v2219
        %2348 = vmatprep.subr.mxu0 %v2222
        %2349 = vmatpush1.msra.mxu0 %v2221
        %2350 = vmatprep.subr.mxu0 %v2224
        %2351 = vmatpush1.msra.mxu0 %v2223
        %2352 = vmatprep.subr.mxu0 %v2226
        %2353 = vmatpush1.msra.mxu0 %v2225
        %2354 = vmatprep.subr.mxu0 %v2228
        %2355 = vmatpush1.msra.mxu0 %v2227
        %2356 = vmatprep.subr.mxu0 %v2230
        %2357 = vmatpush1.msra.mxu0 %v2229
        %2358 = vmatprep.subr.mxu0 %v2232
        %2359 = vmatpush1.msra.mxu0 %v2231
        %2360 = vmatprep.subr.mxu0 %v2234
        %2361 = vmatpush1.msra.mxu0 %v2233
        %2362 = vmatprep.subr.mxu0 %v2236
        %2363 = vmatpush1.msra.mxu0 %v2235
        %2364 = vmatprep.subr.mxu0 %v2238
        %2365 = vmatpush1.msra.mxu0 %v2237
        %2366 = vmatprep.subr.mxu0 %v2240
        %2367 = vmatpush1.msra.mxu0 %v2239
        %2368 = vmatprep.subr.mxu0 %v2242
        %2369 = vmatpush1.msra.mxu0 %v2241
        %2370 = vmatprep.subr.mxu0 %v2244
        %2371 = vmatpush1.msra.mxu0 %v2243
        %2372 = vmatprep.subr.mxu0 %v2246
        %2373 = vmatpush1.msra.mxu0 %v2245
        %2374 = vmatprep.subr.mxu0 %v2248
        %2375 = vmatpush1.msra.mxu0 %v2247
        %2376 = vmatprep.subr.mxu0 %v2250
        %2377 = vmatpush1.msra.mxu0 %v2249
        %2378 = vmatprep.subr.mxu0 %v2252
        %2379 = vmatpush1.msra.mxu0 %v2251
        %2380 = vmatprep.subr.mxu0 %v2254
        %2381 = vmatpush1.msra.mxu0 %v2253
        %2382 = vmatprep.subr.mxu0 %v2256
        %2383 = vmatpush1.msra.mxu0 %v2255
        %2384 = vmatprep.subr.mxu0 %v2258
        %2385 = vmatpush1.msra.mxu0 %v2257
        %2386 = vmatprep.subr.mxu0 %v2260
        %2387 = vmatpush1.msra.mxu0 %v2259
        %2388 = vmatprep.subr.mxu0 %v2262
        %2389 = vmatpush1.msra.mxu0 %v2261
        %2390 = vmatprep.mubr.f32.mxu0 %v2192
        %2391 = vmatmul.mubr.f32.gmra.mrb[0].mxu0 %v2191
        %v2392 = vpop.f32.mrb[0].mxu0
        %v2393 = vadd.f32 %v2312, %v2392
        %v2394 = vpop.f32.mrb[0].mxu0
        %v2395 = vadd.f32 %v2312, %v2394
        %2396 = vmatprep.mubr.f32.mxu0 %v2196
        %2397 = vmatmul.mubr.f32.gmra.mrb[0].mxu0 %v2195
        %v2398 = vpop.f32.mrb[0].mxu0
        %v2399 = vadd.f32 %v2317, %v2398
        %v2400 = vpop.f32.mrb[0].mxu0
        %v2401 = vadd.f32 %v2317, %v2400
        %2402 = vdwg.mxu0
        %2403 = vmatprep.subr.mxu0 %v2264
        %2404 = vmatpush1.msra.mxu0 %v2263
        %2405 = vmatprep.subr.mxu0 %v2266
        %2406 = vmatpush1.msra.mxu0 %v2265
        %2407 = vmatprep.subr.mxu0 %v2268
        %2408 = vmatpush1.msra.mxu0 %v2267
        %2409 = vmatprep.subr.mxu0 %v2270
        %2410 = vmatpush1.msra.mxu0 %v2269
        %2411 = vmatprep.subr.mxu0 %v2272
        %2412 = vmatpush1.msra.mxu0 %v2271
        %2413 = vmatprep.subr.mxu0 %v2274
        %2414 = vmatpush1.msra.mxu0 %v2273
        %2415 = vmatprep.subr.mxu0 %v2276
        %2416 = vmatpush1.msra.mxu0 %v2275
        %2417 = vmatprep.subr.mxu0 %v2278
        %2418 = vmatpush1.msra.mxu0 %v2277
        %2419 = vmatprep.subr.mxu0 %v2280
        %2420 = vmatpush1.msra.mxu0 %v2279
        %2421 = vmatprep.subr.mxu0 %v2282
        %2422 = vmatpush1.msra.mxu0 %v2281
        %2423 = vmatprep.subr.mxu0 %v2284
        %2424 = vmatpush1.msra.mxu0 %v2283
        %2425 = vmatprep.subr.mxu0 %v2286
        %2426 = vmatpush1.msra.mxu0 %v2285
        %2427 = vmatprep.subr.mxu0 %v2288
        %2428 = vmatpush1.msra.mxu0 %v2287
        %2429 = vmatprep.subr.mxu0 %v2290
        %2430 = vmatpush1.msra.mxu0 %v2289
        %2431 = vmatprep.subr.mxu0 %v2292
        %2432 = vmatpush1.msra.mxu0 %v2291
        %2433 = vmatprep.subr.mxu0 %v2294
        %2434 = vmatpush1.msra.mxu0 %v2293
        %2435 = vmatprep.subr.mxu0 %v2296
        %2436 = vmatpush1.msra.mxu0 %v2295
        %2437 = vmatprep.subr.mxu0 %v2298
        %2438 = vmatpush1.msra.mxu0 %v2297
        %2439 = vmatprep.subr.mxu0 %v2300
        %2440 = vmatpush1.msra.mxu0 %v2299
        %2441 = vmatprep.subr.mxu0 %v2302
        %2442 = vmatpush1.msra.mxu0 %v2301
        %2443 = vmatprep.subr.mxu0 %v2304
        %2444 = vmatpush1.msra.mxu0 %v2303
        %2445 = vmatprep.subr.mxu0 %v2306
        %2446 = vmatpush1.msra.mxu0 %v2305
        %2447 = vmatprep.subr.mxu0 0.0
        %2448 = vmatpush1.msra.mxu0 0.0
        %2449 = vmatprep.subr.mxu0 0.0
        %2450 = vmatpush1.msra.mxu0 0.0
        %2451 = vmatprep.subr.mxu0 0.0
        %2452 = vmatpush1.msra.mxu0 0.0
        %2453 = vmatprep.subr.mxu0 0.0
        %2454 = vmatpush1.msra.mxu0 0.0
        %2455 = vmatprep.subr.mxu0 0.0
        %2456 = vmatpush1.msra.mxu0 0.0
        %2457 = vmatprep.subr.mxu0 0.0
        %2458 = vmatpush1.msra.mxu0 0.0
        %2459 = vmatprep.subr.mxu0 0.0
        %2460 = vmatpush1.msra.mxu0 0.0
        %2461 = vmatprep.subr.mxu0 0.0
        %2462 = vmatpush1.msra.mxu0 0.0
        %2463 = vmatprep.subr.mxu0 0.0
        %2464 = vmatpush1.msra.mxu0 0.0
        %2465 = vmatprep.subr.mxu0 0.0
        %2466 = vmatpush1.msra.mxu0 0.0
        %2467 = vmatprep.mubr.f32.mxu0 %v2321
        %2468 = vmatmul.mubr.f32.gmra.mrb[0].mxu0 %v2193
        %v2469 = vpop.f32.mrb[0].mxu0
        %v2470 = vadd.f32 %v2393, %v2469
        %v2471 = vpop.f32.mrb[0].mxu0
        %v2472 = vadd.f32 %v2395, %v2471
        %2473 = vmatprep.mubr.f32.mxu0 %v2324
        %2474 = vmatmul.mubr.f32.gmra.mrb[0].mxu0 %v2197
        %v2475 = vpop.f32.mrb[0].mxu0
        %v2476 = vadd.f32 %v2399, %v2475
        %v2477 = vpop.f32.mrb[0].mxu0
        %v2478 = vadd.f32 %v2401, %v2477
        %2479 = vdwg.mxu0
        %2480 = vst [vmem:[#allocation4] sm:$0xff] %v2470
        %2481 = vst [vmem:[#allocation4 + $0x8] sm:$0xff] %v2472
        %2482 = vst [vmem:[#allocation4 + $0x10] sm:$0xff] %v2476
        %2483 = vst [vmem:[#allocation4 + $0x18] sm:$0xff] %v2478
        %v2484 = vld [vmem:[#allocation4] sm:$0xff]
        %v2485 = vld [vmem:[#allocation4 + $0x8] sm:$0xff]
        %v2486 = vld [vmem:[#allocation4 + $0x10] sm:$0xff]
        %v2487 = vld [vmem:[#allocation4 + $0x18] sm:$0xff]
        %2490 = vrot.lane.b32.xlu0 %v2485, 17
        %v2491 = vpop.permute.xlu0 %2490
        %2492 = vrot.lane.b32.xlu0 %v2487, 17
        %v2493 = vpop.permute.xlu0 %2492
        %2498 = vrot.lane.b32.xlu0 %v2484, 17
        %v2499 = vpop.permute.xlu0 %2498
        %2500 = vrot.lane.b32.xlu0 %v2486, 17
        %v2501 = vpop.permute.xlu0 %2500
        %v2502 = vsel %vm377, %v2499, %v2491
        %v2503 = vsel %vm377, %v2501, %v2493
        %v2508 = vsel %vm377, %v2491, %v2499
        %v2509 = vsel %vm377, %v2493, %v2501
        %v2510 = vld [vmem:[%s2] ss:$8 sm:$0x3]
        %v2512 = vlaneseq
        %v2513 = vshrl.u32 %v2512, 7
        %v2514 = vsub.s32 0, %v2513
        %v2515 = vrot.slane %v2510, %v2514
        %v2516 = vlaneseq
        %v2517 = vshrl.u32 %v2516, 7
        %v2518 = vsub.s32 1, %v2517
        %v2519 = vrot.slane %v2510, %v2518
        %v2522 = vmul.f32 %v2508, %v2515
        %v2523 = vmul.f32 %v2502, %v2519
        %v2524 = vmul.f32 %v2509, %v2515
        %v2525 = vmul.f32 %v2503, %v2519
        %2526 = vst [vmem:[#allocation5] sm:$0xff] %v2522
        %2527 = vst [vmem:[#allocation5 + $0x8] sm:$0xff] %v2523
        %2528 = vst [vmem:[#allocation5 + $0x10] sm:$0xff] %v2524
        %2529 = vst [vmem:[#allocation5 + $0x18] sm:$0xff] %v2525
        %2530 = vrot.lane.b32.xlu0 %v2485, 16
        %v2531 = vpop.permute.xlu0 %2530
        %2532 = vrot.lane.b32.xlu0 %v2487, 16
        %v2533 = vpop.permute.xlu0 %2532
        %2536 = vrot.lane.b32.xlu0 %v2484, 16
        %v2537 = vpop.permute.xlu0 %2536
        %2538 = vrot.lane.b32.xlu0 %v2486, 16
        %v2539 = vpop.permute.xlu0 %2538
        %v2540 = vsel %vm403, %v2537, %v2531
        %v2541 = vsel %vm403, %v2539, %v2533
        %v2546 = vsel %vm403, %v2531, %v2537
        %v2547 = vsel %vm403, %v2533, %v2539
        %v2548 = vld [vmem:[%s408] ss:$8 sm:$0x3]
        %v2550 = vlaneseq
        %v2551 = vshrl.u32 %v2550, 7
        %v2552 = vsub.s32 0, %v2551
        %v2553 = vrot.slane %v2548, %v2552
        %v2554 = vlaneseq
        %v2555 = vshrl.u32 %v2554, 7
        %v2556 = vsub.s32 1, %v2555
        %v2557 = vrot.slane %v2548, %v2556
        %v2560 = vmul.f32 %v2546, %v2553
        %v2561 = vmul.f32 %v2540, %v2557
        %v2562 = vmul.f32 %v2547, %v2553
        %v2563 = vmul.f32 %v2541, %v2557
        %2564 = vst [vmem:[#allocation5 + $0x20] sm:$0xff] %v2560
        %2565 = vst [vmem:[#allocation5 + $0x28] sm:$0xff] %v2561
        %2566 = vst [vmem:[#allocation5 + $0x30] sm:$0xff] %v2562
        %2567 = vst [vmem:[#allocation5 + $0x38] sm:$0xff] %v2563
        %2568 = vrot.lane.b32.xlu0 %v2485, 15
        %v2569 = vpop.permute.xlu0 %2568
        %2570 = vrot.lane.b32.xlu0 %v2487, 15
        %v2571 = vpop.permute.xlu0 %2570
        %2574 = vrot.lane.b32.xlu0 %v2484, 15
        %v2575 = vpop.permute.xlu0 %2574
        %2576 = vrot.lane.b32.xlu0 %v2486, 15
        %v2577 = vpop.permute.xlu0 %2576
        %v2578 = vsel %vm430, %v2575, %v2569
        %v2579 = vsel %vm430, %v2577, %v2571
        %v2584 = vsel %vm430, %v2569, %v2575
        %v2585 = vsel %vm430, %v2571, %v2577
        %v2586 = vld [vmem:[%s435] ss:$8 sm:$0x3]
        %v2588 = vlaneseq
        %v2589 = vshrl.u32 %v2588, 7
        %v2590 = vsub.s32 0, %v2589
        %v2591 = vrot.slane %v2586, %v2590
        %v2592 = vlaneseq
        %v2593 = vshrl.u32 %v2592, 7
        %v2594 = vsub.s32 1, %v2593
        %v2595 = vrot.slane %v2586, %v2594
        %v2598 = vmul.f32 %v2584, %v2591
        %v2599 = vmul.f32 %v2578, %v2595
        %v2600 = vmul.f32 %v2585, %v2591
        %v2601 = vmul.f32 %v2579, %v2595
        %2602 = vst [vmem:[#allocation5 + $0x40] sm:$0xff] %v2598
        %2603 = vst [vmem:[#allocation5 + $0x48] sm:$0xff] %v2599
        %2604 = vst [vmem:[#allocation5 + $0x50] sm:$0xff] %v2600
        %2605 = vst [vmem:[#allocation5 + $0x58] sm:$0xff] %v2601
        %2606 = vrot.lane.b32.xlu0 %v2485, 1
        %v2607 = vpop.permute.xlu0 %2606
        %2608 = vrot.lane.b32.xlu0 %v2487, 1
        %v2609 = vpop.permute.xlu0 %2608
        %2612 = vrot.lane.b32.xlu0 %v2484, 1
        %v2613 = vpop.permute.xlu0 %2612
        %2614 = vrot.lane.b32.xlu0 %v2486, 1
        %v2615 = vpop.permute.xlu0 %2614
        %v2616 = vsel %vm457, %v2613, %v2607
        %v2617 = vsel %vm457, %v2615, %v2609
        %v2622 = vsel %vm457, %v2607, %v2613
        %v2623 = vsel %vm457, %v2609, %v2615
        %v2624 = vld [vmem:[%s462] ss:$8 sm:$0x3]
        %v2626 = vlaneseq
        %v2627 = vshrl.u32 %v2626, 7
        %v2628 = vsub.s32 0, %v2627
        %v2629 = vrot.slane %v2624, %v2628
        %v2630 = vlaneseq
        %v2631 = vshrl.u32 %v2630, 7
        %v2632 = vsub.s32 1, %v2631
        %v2633 = vrot.slane %v2624, %v2632
        %v2636 = vmul.f32 %v2622, %v2629
        %v2637 = vmul.f32 %v2616, %v2633
        %v2638 = vmul.f32 %v2623, %v2629
        %v2639 = vmul.f32 %v2617, %v2633
        %2640 = vst [vmem:[#allocation5 + $0x60] sm:$0xff] %v2636
        %2641 = vst [vmem:[#allocation5 + $0x68] sm:$0xff] %v2637
        %2642 = vst [vmem:[#allocation5 + $0x70] sm:$0xff] %v2638
        %2643 = vst [vmem:[#allocation5 + $0x78] sm:$0xff] %v2639
        %2644 = vst [vmem:[#allocation5 + $0x80] sm:$0xff] %v2484
        %2645 = vst [vmem:[#allocation5 + $0x88] sm:$0xff] %v2485
        %2646 = vst [vmem:[#allocation5 + $0x90] sm:$0xff] %v2486
        %2647 = vst [vmem:[#allocation5 + $0x98] sm:$0xff] %v2487
        %2648 = vrot.lane.b32.xlu0 %v2484, 127
        %v2649 = vpop.permute.xlu0 %2648
        %2650 = vrot.lane.b32.xlu0 %v2485, 127
        %v2651 = vpop.permute.xlu0 %2650
        %2652 = vrot.lane.b32.xlu0 %v2486, 127
        %v2653 = vpop.permute.xlu0 %2652
        %2654 = vrot.lane.b32.xlu0 %v2487, 127
        %v2655 = vpop.permute.xlu0 %2654
        %v2656 = vsel %vm485, %v2649, %v2651
        %v2657 = vsel %vm485, %v2653, %v2655
        %v2664 = vsel %vm485, %v2651, %v2649
        %v2665 = vsel %vm485, %v2655, %v2653
        %v2666 = vld [vmem:[%s491] ss:$8 sm:$0x3]
        %v2668 = vlaneseq
        %v2669 = vshrl.u32 %v2668, 7
        %v2670 = vsub.s32 0, %v2669
        %v2671 = vrot.slane %v2666, %v2670
        %v2672 = vlaneseq
        %v2673 = vshrl.u32 %v2672, 7
        %v2674 = vsub.s32 1, %v2673
        %v2675 = vrot.slane %v2666, %v2674
        %v2678 = vmul.f32 %v2656, %v2671
        %v2679 = vmul.f32 %v2664, %v2675
        %v2680 = vmul.f32 %v2657, %v2671
        %v2681 = vmul.f32 %v2665, %v2675
        %2682 = vst [vmem:[#allocation5 + $0xa0] sm:$0xff] %v2678
        %2683 = vst [vmem:[#allocation5 + $0xa8] sm:$0xff] %v2679
        %2684 = vst [vmem:[#allocation5 + $0xb0] sm:$0xff] %v2680
        %2685 = vst [vmem:[#allocation5 + $0xb8] sm:$0xff] %v2681
        %2686 = vrot.lane.b32.xlu0 %v2484, 113
        %v2687 = vpop.permute.xlu0 %2686
        %2688 = vrot.lane.b32.xlu0 %v2485, 113
        %v2689 = vpop.permute.xlu0 %2688
        %2690 = vrot.lane.b32.xlu0 %v2486, 113
        %v2691 = vpop.permute.xlu0 %2690
        %2692 = vrot.lane.b32.xlu0 %v2487, 113
        %v2693 = vpop.permute.xlu0 %2692
        %v2694 = vsel %vm512, %v2687, %v2689
        %v2695 = vsel %vm512, %v2691, %v2693
        %v2702 = vsel %vm512, %v2689, %v2687
        %v2703 = vsel %vm512, %v2693, %v2691
        %v2704 = vld [vmem:[%s518] ss:$8 sm:$0x3]
        %v2706 = vlaneseq
        %v2707 = vshrl.u32 %v2706, 7
        %v2708 = vsub.s32 0, %v2707
        %v2709 = vrot.slane %v2704, %v2708
        %v2710 = vlaneseq
        %v2711 = vshrl.u32 %v2710, 7
        %v2712 = vsub.s32 1, %v2711
        %v2713 = vrot.slane %v2704, %v2712
        %v2716 = vmul.f32 %v2694, %v2709
        %v2717 = vmul.f32 %v2702, %v2713
        %v2718 = vmul.f32 %v2695, %v2709
        %v2719 = vmul.f32 %v2703, %v2713
        %2720 = vst [vmem:[#allocation5 + $0xc0] sm:$0xff] %v2716
        %2721 = vst [vmem:[#allocation5 + $0xc8] sm:$0xff] %v2717
        %2722 = vst [vmem:[#allocation5 + $0xd0] sm:$0xff] %v2718
        %2723 = vst [vmem:[#allocation5 + $0xd8] sm:$0xff] %v2719
        %2724 = vrot.lane.b32.xlu0 %v2484, 112
        %v2725 = vpop.permute.xlu0 %2724
        %2726 = vrot.lane.b32.xlu0 %v2485, 112
        %v2727 = vpop.permute.xlu0 %2726
        %2728 = vrot.lane.b32.xlu0 %v2486, 112
        %v2729 = vpop.permute.xlu0 %2728
        %2730 = vrot.lane.b32.xlu0 %v2487, 112
        %v2731 = vpop.permute.xlu0 %2730
        %v2732 = vsel %vm539, %v2725, %v2727
        %v2733 = vsel %vm539, %v2729, %v2731
        %v2740 = vsel %vm539, %v2727, %v2725
        %v2741 = vsel %vm539, %v2731, %v2729
        %v2742 = vld [vmem:[%s545] ss:$8 sm:$0x3]
        %v2744 = vlaneseq
        %v2745 = vshrl.u32 %v2744, 7
        %v2746 = vsub.s32 0, %v2745
        %v2747 = vrot.slane %v2742, %v2746
        %v2748 = vlaneseq
        %v2749 = vshrl.u32 %v2748, 7
        %v2750 = vsub.s32 1, %v2749
        %v2751 = vrot.slane %v2742, %v2750
        %v2754 = vmul.f32 %v2732, %v2747
        %v2755 = vmul.f32 %v2740, %v2751
        %v2756 = vmul.f32 %v2733, %v2747
        %v2757 = vmul.f32 %v2741, %v2751
        %2758 = vst [vmem:[#allocation5 + $0xe0] sm:$0xff] %v2754
        %2759 = vst [vmem:[#allocation5 + $0xe8] sm:$0xff] %v2755
        %2760 = vst [vmem:[#allocation5 + $0xf0] sm:$0xff] %v2756
        %2761 = vst [vmem:[#allocation5 + $0xf8] sm:$0xff] %v2757
        %2762 = vrot.lane.b32.xlu0 %v2484, 111
        %v2763 = vpop.permute.xlu0 %2762
        %2764 = vrot.lane.b32.xlu0 %v2485, 111
        %v2765 = vpop.permute.xlu0 %2764
        %2766 = vrot.lane.b32.xlu0 %v2486, 111
        %v2767 = vpop.permute.xlu0 %2766
        %2768 = vrot.lane.b32.xlu0 %v2487, 111
        %v2769 = vpop.permute.xlu0 %2768
        %v2770 = vsel %vm566, %v2763, %v2765
        %v2771 = vsel %vm566, %v2767, %v2769
        %v2778 = vsel %vm566, %v2765, %v2763
        %v2779 = vsel %vm566, %v2769, %v2767
        %v2780 = vld [vmem:[%s572] ss:$8 sm:$0x3]
        %v2782 = vlaneseq
        %v2783 = vshrl.u32 %v2782, 7
        %v2784 = vsub.s32 0, %v2783
        %v2785 = vrot.slane %v2780, %v2784
        %v2786 = vlaneseq
        %v2787 = vshrl.u32 %v2786, 7
        %v2788 = vsub.s32 1, %v2787
        %v2789 = vrot.slane %v2780, %v2788
        %v2792 = vmul.f32 %v2770, %v2785
        %v2793 = vmul.f32 %v2778, %v2789
        %v2794 = vmul.f32 %v2771, %v2785
        %v2795 = vmul.f32 %v2779, %v2789
        %2796 = vst [vmem:[#allocation5 + $0x100] sm:$0xff] %v2792
        %2797 = vst [vmem:[#allocation5 + $0x108] sm:$0xff] %v2793
        %2798 = vst [vmem:[#allocation5 + $0x110] sm:$0xff] %v2794
        %2799 = vst [vmem:[#allocation5 + $0x118] sm:$0xff] %v2795
        %v2800 = vld [vmem:[%s7] sm:$0x77]
        %v2801 = vld [vmem:[#allocation5] sm:$0xff]
        %v2802 = vld [vmem:[#allocation5 + $0x8] sm:$0xff]
        %v2803 = vld [vmem:[#allocation5 + $0x10] sm:$0xff]
        %v2804 = vld [vmem:[#allocation5 + $0x18] sm:$0xff]
        %v2805 = vld [vmem:[#allocation5 + $0x20] sm:$0xff]
        %v2806 = vld [vmem:[#allocation5 + $0x28] sm:$0xff]
        %v2807 = vld [vmem:[#allocation5 + $0x30] sm:$0xff]
        %v2808 = vld [vmem:[#allocation5 + $0x38] sm:$0xff]
        %v2809 = vld [vmem:[#allocation5 + $0x40] sm:$0xff]
        %v2810 = vld [vmem:[#allocation5 + $0x48] sm:$0xff]
        %v2811 = vld [vmem:[#allocation5 + $0x50] sm:$0xff]
        %v2812 = vld [vmem:[#allocation5 + $0x58] sm:$0xff]
        %v2813 = vld [vmem:[#allocation5 + $0x60] sm:$0xff]
        %v2814 = vld [vmem:[#allocation5 + $0x68] sm:$0xff]
        %v2815 = vld [vmem:[#allocation5 + $0x70] sm:$0xff]
        %v2816 = vld [vmem:[#allocation5 + $0x78] sm:$0xff]
        %v2817 = vld [vmem:[#allocation5 + $0x80] sm:$0xff]
        %v2818 = vld [vmem:[#allocation5 + $0x88] sm:$0xff]
        %v2819 = vld [vmem:[#allocation5 + $0x90] sm:$0xff]
        %v2820 = vld [vmem:[#allocation5 + $0x98] sm:$0xff]
        %v2821 = vld [vmem:[#allocation5 + $0xa0] sm:$0xff]
        %v2822 = vld [vmem:[#allocation5 + $0xa8] sm:$0xff]
        %v2823 = vld [vmem:[#allocation5 + $0xb0] sm:$0xff]
        %v2824 = vld [vmem:[#allocation5 + $0xb8] sm:$0xff]
        %v2825 = vld [vmem:[#allocation5 + $0xc0] sm:$0xff]
        %v2826 = vld [vmem:[#allocation5 + $0xc8] sm:$0xff]
        %v2827 = vld [vmem:[#allocation5 + $0xd0] sm:$0xff]
        %v2828 = vld [vmem:[#allocation5 + $0xd8] sm:$0xff]
        %v2829 = vld [vmem:[#allocation5 + $0xe0] sm:$0xff]
        %v2830 = vld [vmem:[#allocation5 + $0xe8] sm:$0xff]
        %v2831 = vld [vmem:[#allocation5 + $0xf0] sm:$0xff]
        %v2832 = vld [vmem:[#allocation5 + $0xf8] sm:$0xff]
        %v2833 = vld [vmem:[#allocation5 + $0x100] sm:$0xff]
        %v2834 = vld [vmem:[#allocation5 + $0x108] sm:$0xff]
        %v2835 = vld [vmem:[#allocation5 + $0x110] sm:$0xff]
        %v2836 = vld [vmem:[#allocation5 + $0x118] sm:$0xff]
        %v2837 = vld [vmem:[%s8] sm:$0x7]
        %2839 = vset.pattern.permute.xlu0 0
        %2840 = vperm.xlu0 %2839, %v2837
        %v2841 = vpop.permute.xlu0 %2840
        %v2844 = vcombine.high %v2800, %v2800
        %v2845 = vsel %vm403, %v2844, 0
        %2847 = vmatprep.subr.mxu0 %v2802
        %2848 = vmatpush1.msra.mxu0 %v2801
        %2849 = vmatprep.subr.mxu0 %v2804
        %2850 = vmatpush1.msra.mxu0 %v2803
        %2851 = vmatprep.subr.mxu0 %v2806
        %2852 = vmatpush1.msra.mxu0 %v2805
        %2853 = vmatprep.subr.mxu0 %v2808
        %2854 = vmatpush1.msra.mxu0 %v2807
        %2855 = vmatprep.subr.mxu0 %v2810
        %2856 = vmatpush1.msra.mxu0 %v2809
        %2857 = vmatprep.subr.mxu0 %v2812
        %2858 = vmatpush1.msra.mxu0 %v2811
        %2859 = vmatprep.subr.mxu0 %v2814
        %2860 = vmatpush1.msra.mxu0 %v2813
        %2861 = vmatprep.subr.mxu0 %v2816
        %2862 = vmatpush1.msra.mxu0 %v2815
        %2863 = vmatprep.subr.mxu0 %v2818
        %2864 = vmatpush1.msra.mxu0 %v2817
        %2865 = vmatprep.subr.mxu0 %v2820
        %2866 = vmatpush1.msra.mxu0 %v2819
        %2867 = vmatprep.subr.mxu0 %v2822
        %2868 = vmatpush1.msra.mxu0 %v2821
        %2869 = vmatprep.subr.mxu0 %v2824
        %2870 = vmatpush1.msra.mxu0 %v2823
        %2871 = vmatprep.subr.mxu0 %v2826
        %2872 = vmatpush1.msra.mxu0 %v2825
        %2873 = vmatprep.subr.mxu0 %v2828
        %2874 = vmatpush1.msra.mxu0 %v2827
        %2875 = vmatprep.subr.mxu0 %v2830
        %2876 = vmatpush1.msra.mxu0 %v2829
        %2877 = vmatprep.subr.mxu0 %v2832
        %2878 = vmatpush1.msra.mxu0 %v2831
        %2879 = vmatprep.subr.mxu0 %v2834
        %2880 = vmatpush1.msra.mxu0 %v2833
        %2881 = vmatprep.subr.mxu0 %v2836
        %2882 = vmatpush1.msra.mxu0 %v2835
        %2883 = vmatprep.subr.mxu0 0.0
        %2884 = vmatpush1.msra.mxu0 0.0
        %2885 = vmatprep.subr.mxu0 0.0
        %2886 = vmatpush1.msra.mxu0 0.0
        %2887 = vmatprep.subr.mxu0 0.0
        %2888 = vmatpush1.msra.mxu0 0.0
        %2889 = vmatprep.subr.mxu0 0.0
        %2890 = vmatpush1.msra.mxu0 0.0
        %2891 = vmatprep.subr.mxu0 0.0
        %2892 = vmatpush1.msra.mxu0 0.0
        %2893 = vmatprep.subr.mxu0 0.0
        %2894 = vmatpush1.msra.mxu0 0.0
        %2895 = vmatprep.subr.mxu0 0.0
        %2896 = vmatpush1.msra.mxu0 0.0
        %2897 = vmatprep.subr.mxu0 0.0
        %2898 = vmatpush1.msra.mxu0 0.0
        %2899 = vmatprep.subr.mxu0 0.0
        %2900 = vmatpush1.msra.mxu0 0.0
        %2901 = vmatprep.subr.mxu0 0.0
        %2902 = vmatpush1.msra.mxu0 0.0
        %2903 = vmatprep.subr.mxu0 0.0
        %2904 = vmatpush1.msra.mxu0 0.0
        %2905 = vmatprep.subr.mxu0 0.0
        %2906 = vmatpush1.msra.mxu0 0.0
        %2907 = vmatprep.subr.mxu0 0.0
        %2908 = vmatpush1.msra.mxu0 0.0
        %2909 = vmatprep.subr.mxu0 0.0
        %2910 = vmatpush1.msra.mxu0 0.0
        %2911 = vmatprep.mubr.f32.mxu0 %v2845
        %2912 = vmatmul.mubr.f32.gmra.mrb[0].mxu0 %v2800
        %v2913 = vpop.f32.mrb[0].mxu0
        %v2914 = vadd.f32 %v2841, %v2913
        %v2915 = vpop.f32.mrb[0].mxu0
        %v2916 = vadd.f32 %v2841, %v2915
        %2917 = vdwg.mxu0
        %v2918 = vmax.f32 %v2914, 0.0
        %v2919 = vmax.f32 %v2916, 0.0
        %v2922 = vcombine.low %v2918, %v2919
        %2924 = vst [vmem:[%s346] sm:$0x77] %v2922
        %p2925 = scmp.lt.s32.totalorder %s21, 1
        %s2926 = scalar_select %p2925, %s21, 1
        %s2927 = smul.addr %s2926, 2
        %s2928 = smul.addr %s2927, 4
        %s2929 = scalar_lea.vmem %s9, %s2928
        // Predicated region
        $region61: #{toy_hdr_forward.1} parent=55 // pred_check
          %p2930 = pneg %p233
        $region62: #{toy_hdr_forward.1} parent=55 // pred_check_branch
          %2932 = sbr.rel (%p2930) target = $region64
        $region63: #{toy_hdr_forward.1} parent=55 // pred_region
          _
        $region64: #{toy_hdr_forward.1} parent=55 // pred_fallthru
          _
      $region56: #{toy_hdr_forward.1} parent=5 // pred_fallthru
        _
      %p2933 = scmp.le.s32.totalorder 2, %s16
      // Predicated region
      $region65: #{toy_hdr_forward.1} parent=5 // pred_check
        %p2934 = pneg %p2933
      $region66: #{toy_hdr_forward.1} parent=5 // pred_check_branch
        %2936 = sbr.rel (%p2934) target = $region68
      $region67: #{toy_hdr_forward.1} parent=5 // pred_region
        %s2937 = ssub.s32 %s16, 2
        // Predicated region
        $region69: #{toy_hdr_forward.1} parent=67 // pred_check
          %p2938 = pneg %p239
        $region70: #{toy_hdr_forward.1} parent=67 // pred_check_branch
          %2940 = sbr.rel (%p2938) target = $region72
        $region71: #{toy_hdr_forward.1} parent=67 // pred_region
          %p2941 = scmp.lt.s32.totalorder %s22, 1
          %s2942 = scalar_select %p2941, %s22, 1
          %s2943 = smul.addr %s2942, 2
          %s2944 = smul.addr %s2943, 4
          %s2945 = scalar_lea.vmem %s9, %s2944
        $region72: #{toy_hdr_forward.1} parent=67 // pred_fallthru
          _
      $region68: #{toy_hdr_forward.1} parent=5 // pred_fallthru
        _
    $region6: #{toy_hdr_forward.1} parent=1 // loop_footer
      %s20 = sadd.s32 1, %s16
    $region7: #{toy_hdr_forward.1} parent=1 // loop_footer_branch
      %15 = sbr.rel target = $region3
    $region8: #{toy_hdr_forward.1} parent=1 // loop_exit
      _
    %2946 = vsyncpa [#allocation7], 1
    %s2947 = scalar_lea.sflag [#allocation7], 1
    %2948 = vsyncpa %s2947, 1

</llo_original>
